<compile_context>
chip_gen: v6e
topology: v6e:2x2x1
jax: 0.10.0
libtpu: 0.0.40
codegen_flags: <defaults>
</compile_context>

<pallas_src>
import jax
import jax.numpy as jnp
from jax.experimental import pallas as pl
from jax.experimental.pallas import tpu as pltpu

D = 384  # fixed by nn.Linear(384, ...) in the module


def _round_up(x, m):
    return ((x + m - 1) // m) * m


def _vmem_bytes(tb, n_nodes, lp):
    """Rough per-step VMEM footprint (default double-buffering everywhere)."""
    emb_tile = 2 * tb * n_nodes * D * 4           # f32 emb batch tile
    outs     = 2 * (tb * D * 4 + tb * lp * 4)     # f32 graph_emb + logits tiles
    label    = 2 * lp * D * 4                     # f32 label block (grid-invariant)
    w_fwd    = 2 * D * D * 2                      # bf16 fwd_proj weight
    small    = 2 * (D * 4 + D * 4)                # att weight + fwd bias
    return emb_tile + outs + label + w_fwd + small


def _pick_tb(batch, n_nodes, lp, *, cap=256, vmem_budget=24 * 1024 * 1024):
    """Batch-tile heuristic: as large as the cap / VMEM budget allows, but
    >= 2 grid steps when B > 8 so the parallel axis shards across v7x's 2 TCs.
    cap=256 matches the v6e/v7x MXU width (two full 128-row passes on v5e)."""
    b8 = _round_up(max(batch, 1), 8)
    if b8 <= 8:
        tb = b8
    else:
        tb = min(_round_up(pl.cdiv(b8, 2), 8), cap)
    while tb > 8 and _vmem_bytes(tb, n_nodes, lp) > vmem_budget:
        tb = _round_up(max(tb // 2, 8), 8)
    return tb


def att_proj_kernel(emb_ref, label_ref, w_att_ref, b_att_ref, w_fwd_ref, b_fwd_ref,
                    graph_out_ref, logits_out_ref):
    tb, n_nodes, d = emb_ref.shape

    emb = emb_ref[...].astype(jnp.float32)           # (TB, N, D)
    w_att = w_att_ref[...].astype(jnp.float32)       # (1, D)  torch weight (1, 384)
    b_att = b_att_ref[0]                              # scalar bias from SMEM

    # --- attention scores over nodes: (TB, N) ---
    # TODO(synk): perf review suggests routing this through the MXU via
    # dot_general(emb.reshape(TB*N, D), w_att); at small N the kernel is bound
    # by the emb HBM DMA and the (TB*N,1)->(TB,N) relayout would cost more than
    # the VALU reduce it saves, so the VPU form is kept here.
    scores = jnp.sum(emb * w_att[0][None, None, :], axis=-1) + b_att

    # numerically-stable softmax; denominator via approximate EUP reciprocal
    m = jnp.max(scores, axis=-1, keepdims=True)
    e = jnp.exp(scores - m)
    p = e * pl.reciprocal(jnp.sum(e, axis=-1, keepdims=True), approx=True)

    # --- weighted sum over nodes: (TB, D) ---
    if n_nodes >= 64:
        # Perf review: for large N move the reduction onto the MXU as a batched
        # (1,N)x(N,D) matmul instead of a VPU multiply + sublane reduce.
        graph_emb = jnp.einsum('bn,bnd->bd', p, emb,
                               preferred_element_type=jnp.float32)
    else:
        graph_emb = jnp.sum(emb * p[:, :, None], axis=1)

    # fwd_proj: x @ W.T on the MXU, bf16 operands, f32 accumulation.
    new_graph_emb = jax.lax.dot_general(
        graph_emb.astype(jnp.bfloat16), w_fwd_ref[...],          # w_fwd is bf16
        dimension_numbers=(((1,), (1,)), ((), ())),
        preferred_element_type=jnp.float32) + b_fwd_ref[...].astype(jnp.float32)

    def l2n(x):
        ss = jnp.sum(x * x, axis=-1, keepdims=True)
        return x * jax.lax.rsqrt(jnp.maximum(ss, 1e-12))

    g = l2n(l2n(graph_emb) + l2n(new_graph_emb))                 # (TB, D) f32
    lab = l2n(label_ref[...].astype(jnp.float32))                # (Lp, D) f32

    # logits = g @ lab.T  (contract dim 1 with dim 1, no transpose; bf16 MXU).
    logits = jax.lax.dot_general(
        g.astype(jnp.bfloat16), lab.astype(jnp.bfloat16),
        dimension_numbers=(((1,), (1,)), ((), ())),
        preferred_element_type=jnp.float32)                      # (TB, Lp)

    graph_out_ref[...] = g.astype(graph_out_ref.dtype)
    logits_out_ref[...] = logits.astype(logits_out_ref.dtype)


def att_proj_forward(emb, label_emb, w_att, b_att, w_fwd, b_fwd, *, tb=None):
    # torch.squeeze(emb): strip only the leading singleton dim (B==1/N==1 safe).
    if emb.ndim == 4 and emb.shape[0] == 1:
        emb = emb[0]                                  # -> (B, N, D)
    B, N, d = emb.shape
    assert d == D
    lab = label_emb[0]                                # -> (L, D)
    L = lab.shape[0]

    # Lane-dense logits: pad labels to a multiple of 128 rows (zero rows give
    # zero logits thanks to the eps-clamped l2n); slice columns back after.
    Lp = _round_up(max(L, 1), 128)
    if Lp != L:
        lab = jnp.concatenate(
            [lab, jnp.zeros((Lp - L, D), lab.dtype)], axis=0)

    if tb is None:
        tb = _pick_tb(B, N, Lp)
    tb = max(8, _round_up(tb, 8))

    # Pad the batch so B need not divide the tile; padded rows produce finite
    # garbage that is sliced off below.
    Bp = _round_up(max(B, 1), tb)
    if Bp != B:
        emb = jnp.concatenate(
            [emb, jnp.zeros((Bp - B, N, D), emb.dtype)], axis=0)

    grid = (Bp // tb,)

    out_shapes = (jax.ShapeDtypeStruct((Bp, D), jnp.float32),
                  jax.ShapeDtypeStruct((Bp, Lp), jnp.float32))

    graph, logits = pl.pallas_call(
        att_proj_kernel,
        out_shape=out_shapes,
        grid=grid,
        in_specs=[
            pl.BlockSpec((tb, N, D), lambda i: (i, 0, 0)),        # emb batch tile
            pl.BlockSpec((Lp, D),    lambda i: (0, 0)),           # padded labels (resident)
            pl.BlockSpec((1, D),     lambda i: (0, 0)),           # att_proj.weight (resident)
            pl.BlockSpec(memory_space=pltpu.MemorySpace.SMEM),    # att_proj.bias (scalar)
            pl.BlockSpec((D, D),     lambda i: (0, 0)),           # fwd_proj.weight bf16 (resident)
            pl.BlockSpec((1, D),     lambda i: (0, 0)),           # fwd_proj.bias (resident)
        ],
        out_specs=(
            pl.BlockSpec((tb, D),  lambda i: (i, 0)),
            pl.BlockSpec((tb, Lp), lambda i: (i, 0)),
        ),
        compiler_params=pltpu.CompilerParams(
            dimension_semantics=("parallel",),        # batch axis shards across TCs (v7x)
            vmem_limit_bytes=32 * 1024 * 1024),       # explicit scoped-VMEM limit (v5e/v7x safe)
    )(
        emb,
        lab,
        w_att,
        b_att.reshape(1).astype(jnp.float32),
        w_fwd.astype(jnp.bfloat16),                   # halve weight DMA / residency
        b_fwd.reshape(1, D),
    )
    return graph[:B], logits[:B, :L]


def _reference(emb, label_emb, w_att, b_att, w_fwd, b_fwd):
    # pure-JAX reference mirroring the torch forward exactly
    emb = emb[0]
    gw = emb @ w_att.T + b_att                      # (B, N, 1)
    gw = jnp.squeeze(gw, -1)
    gw = jax.nn.softmax(gw, axis=-1)[..., None]
    ge = jnp.sum(emb * gw, axis=1)                  # (B, D)
    new = ge @ w_fwd.T + b_fwd
    ge_n = ge / jnp.linalg.norm(ge, axis=1, keepdims=True)
    new_n = new / jnp.linalg.norm(new, axis=1, keepdims=True)
    g = ge_n + new_n
    g = g / jnp.linalg.norm(g, axis=1, keepdims=True)
    lab = label_emb[0]
    lab = lab / jnp.linalg.norm(lab, axis=1, keepdims=True)
    return g, g @ lab.T


if __name__ == "__main__":
    key = jax.random.PRNGKey(0)
    k_emb, k_lab, k_wa, k_ba, k_wf, k_bf = jax.random.split(key, 6)

    # B=20 exercises the batch-padding path (20 -> tile 16 -> padded 32, grid=2,
    # so the "parallel" batch axis has work for both v7x TensorCores).
    B, N, L = 20, 8, 8
    # emb carries a leading singleton dim (exercises the torch.squeeze glue)
    emb = jax.random.normal(k_emb, (1, B, N, D), dtype=jnp.float32)
    label_emb = jax.random.normal(k_lab, (1, L, D), dtype=jnp.float32)

    # deterministic parameter init (torch.nn.Linear-style uniform bounds)
    bound = 1.0 / (D ** 0.5)
    w_att = jax.random.uniform(k_wa, (1, D), jnp.float32, -bound, bound)
    b_att = jax.random.uniform(k_ba, (1,),   jnp.float32, -bound, bound)
    w_fwd = jax.random.uniform(k_wf, (D, D), jnp.float32, -bound, bound)
    b_fwd = jax.random.uniform(k_bf, (D,),   jnp.float32, -bound, bound)

    graph_emb, logits = att_proj_forward(emb, label_emb, w_att, b_att, w_fwd, b_fwd)
    jax.block_until_ready((graph_emb, logits))

    g_ref, l_ref = _reference(emb, label_emb, w_att, b_att, w_fwd, b_fwd)
    assert graph_emb.shape == (B, D) and logits.shape == (B, L)
    # tolerance covers bf16 MXU operands (f32 accumulation) plus the ~2^-12
    # relative error of the approximate EUP reciprocal in the softmax.
    assert jnp.allclose(graph_emb, g_ref, atol=3e-3, rtol=3e-3)
    assert jnp.allclose(logits, l_ref, atol=3e-3, rtol=3e-3)

    print("KERNEL_OK")
</pallas_src>

<mosaic_0001>
module attributes {stable_mosaic.version = 11 : i64} {
  func.func @att_proj_kernel(%arg0: i32, %arg1: memref<16x8x384xf32, #tpu.memory_space<vmem>>, %arg2: memref<128x384xf32, #tpu.memory_space<vmem>>, %arg3: memref<1x384xf32, #tpu.memory_space<vmem>>, %arg4: memref<1xf32, #tpu.memory_space<smem>>, %arg5: memref<384x384xbf16, #tpu.memory_space<vmem>>, %arg6: memref<1x384xf32, #tpu.memory_space<vmem>>, %arg7: memref<16x384xf32, #tpu.memory_space<vmem>>, %arg8: memref<16x128xf32, #tpu.memory_space<vmem>>) attributes {dimension_semantics = [#tpu.dimension_semantics<parallel>], iteration_bounds = array<i64: 2>, scalar_prefetch = 0 : i64, scratch_operands = 0 : i64, tpu.core_type = #tpu.core_type<tc>, window_params = [{transform_indices = @transform_0, window_bounds = array<i64: 16, 8, 384>}, {pipeline_mode = #tpu.pipeline_mode<synchronous>, transform_indices = @transform_1, window_bounds = array<i64: 128, 384>}, {pipeline_mode = #tpu.pipeline_mode<synchronous>, transform_indices = @transform_2, window_bounds = array<i64: 1, 384>}, {transform_indices = @transform_3, window_bounds = array<i64: 1>}, {pipeline_mode = #tpu.pipeline_mode<synchronous>, transform_indices = @transform_4, window_bounds = array<i64: 384, 384>}, {pipeline_mode = #tpu.pipeline_mode<synchronous>, transform_indices = @transform_5, window_bounds = array<i64: 1, 384>}, {transform_indices = @transform_6, window_bounds = array<i64: 16, 384>}, {transform_indices = @transform_7, window_bounds = array<i64: 16, 128>}]} {
    %c0 = arith.constant 0 : index
    %c0_0 = arith.constant 0 : index
    %c0_1 = arith.constant 0 : index
    %0 = vector.load %arg1[%c0, %c0_0, %c0_1] : memref<16x8x384xf32, #tpu.memory_space<vmem>>, vector<16x8x384xf32>
    %c0_2 = arith.constant 0 : index
    %c0_3 = arith.constant 0 : index
    %1 = vector.load %arg3[%c0_2, %c0_3] : memref<1x384xf32, #tpu.memory_space<vmem>>, vector<1x384xf32>
    %c0_4 = arith.constant 0 : index
    %2 = memref.load %arg4[%c0_4] : memref<1xf32, #tpu.memory_space<smem>>
    %3 = vector.shape_cast %1 : vector<1x384xf32> to vector<384xf32>
    %4 = vector.shape_cast %3 : vector<384xf32> to vector<1x1x384xf32>
    %5 = vector.broadcast %4 : vector<1x1x384xf32> to vector<16x8x384xf32>
    %6 = arith.mulf %0, %5 : vector<16x8x384xf32>
    %cst = arith.constant dense<0.000000e+00> : vector<16x8xf32>
    %7 = vector.multi_reduction <add>, %6, %cst [2] : vector<16x8x384xf32> to vector<16x8xf32>
    %8 = vector.broadcast %2 : f32 to vector<16x8xf32>
    %9 = arith.addf %7, %8 : vector<16x8xf32>
    %cst_5 = arith.constant dense<0xFF800000> : vector<16xf32>
    %10 = vector.multi_reduction <maximumf>, %9, %cst_5 [1] : vector<16x8xf32> to vector<16xf32>
    %11 = vector.shape_cast %10 : vector<16xf32> to vector<16x1xf32>
    %12 = vector.broadcast %11 : vector<16x1xf32> to vector<16x8xf32>
    %13 = arith.subf %9, %12 : vector<16x8xf32>
    %14 = math.exp %13 : vector<16x8xf32>
    %cst_6 = arith.constant dense<0.000000e+00> : vector<16xf32>
    %15 = vector.multi_reduction <add>, %14, %cst_6 [1] : vector<16x8xf32> to vector<16xf32>
    %16 = vector.shape_cast %15 : vector<16xf32> to vector<16x1xf32>
    %17 = tpu.reciprocal %16 {approx = true} : vector<16x1xf32> -> vector<16x1xf32>
    %18 = vector.broadcast %17 : vector<16x1xf32> to vector<16x8xf32>
    %19 = arith.mulf %14, %18 : vector<16x8xf32>
    %20 = vector.shape_cast %19 : vector<16x8xf32> to vector<16x8x1xf32>
    %21 = vector.broadcast %20 : vector<16x8x1xf32> to vector<16x8x384xf32>
    %22 = arith.mulf %0, %21 : vector<16x8x384xf32>
    %cst_7 = arith.constant dense<0.000000e+00> : vector<16x384xf32>
    %23 = vector.multi_reduction <add>, %22, %cst_7 [1] : vector<16x8x384xf32> to vector<16x384xf32>
    %24 = arith.truncf %23 : vector<16x384xf32> to vector<16x384xbf16>
    %c0_8 = arith.constant 0 : index
    %c0_9 = arith.constant 0 : index
    %25 = vector.load %arg5[%c0_8, %c0_9] : memref<384x384xbf16, #tpu.memory_space<vmem>>, vector<384x384xbf16>
    %cst_10 = arith.constant dense<0.000000e+00> : vector<16x384xf32>
    %26 = tpu.matmul %24, %25, %cst_10 {dimension_numbers = #tpu.dot_dimension_numbers<[1], [1], [0], [0], [0, 0, 1, 0], [], []>} : vector<16x384xbf16>, vector<384x384xbf16>, vector<16x384xf32> -> vector<16x384xf32>
    %c0_11 = arith.constant 0 : index
    %c0_12 = arith.constant 0 : index
    %27 = vector.load %arg6[%c0_11, %c0_12] : memref<1x384xf32, #tpu.memory_space<vmem>>, vector<1x384xf32>
    %28 = vector.broadcast %27 : vector<1x384xf32> to vector<16x384xf32>
    %29 = arith.addf %26, %28 : vector<16x384xf32>
    %30 = arith.mulf %23, %23 : vector<16x384xf32>
    %cst_13 = arith.constant dense<0.000000e+00> : vector<16xf32>
    %31 = vector.multi_reduction <add>, %30, %cst_13 [1] : vector<16x384xf32> to vector<16xf32>
    %32 = vector.shape_cast %31 : vector<16xf32> to vector<16x1xf32>
    %cst_14 = arith.constant 9.99999996E-13 : f32
    %33 = vector.broadcast %cst_14 : f32 to vector<16x1xf32>
    %34 = arith.maximumf %32, %33 : vector<16x1xf32>
    %35 = math.rsqrt %34 : vector<16x1xf32>
    %36 = vector.broadcast %35 : vector<16x1xf32> to vector<16x384xf32>
    %37 = arith.mulf %23, %36 : vector<16x384xf32>
    %38 = arith.mulf %29, %29 : vector<16x384xf32>
    %cst_15 = arith.constant dense<0.000000e+00> : vector<16xf32>
    %39 = vector.multi_reduction <add>, %38, %cst_15 [1] : vector<16x384xf32> to vector<16xf32>
    %40 = vector.shape_cast %39 : vector<16xf32> to vector<16x1xf32>
    %cst_16 = arith.constant 9.99999996E-13 : f32
    %41 = vector.broadcast %cst_16 : f32 to vector<16x1xf32>
    %42 = arith.maximumf %40, %41 : vector<16x1xf32>
    %43 = math.rsqrt %42 : vector<16x1xf32>
    %44 = vector.broadcast %43 : vector<16x1xf32> to vector<16x384xf32>
    %45 = arith.mulf %29, %44 : vector<16x384xf32>
    %46 = arith.addf %37, %45 : vector<16x384xf32>
    %47 = arith.mulf %46, %46 : vector<16x384xf32>
    %cst_17 = arith.constant dense<0.000000e+00> : vector<16xf32>
    %48 = vector.multi_reduction <add>, %47, %cst_17 [1] : vector<16x384xf32> to vector<16xf32>
    %49 = vector.shape_cast %48 : vector<16xf32> to vector<16x1xf32>
    %cst_18 = arith.constant 9.99999996E-13 : f32
    %50 = vector.broadcast %cst_18 : f32 to vector<16x1xf32>
    %51 = arith.maximumf %49, %50 : vector<16x1xf32>
    %52 = math.rsqrt %51 : vector<16x1xf32>
    %53 = vector.broadcast %52 : vector<16x1xf32> to vector<16x384xf32>
    %54 = arith.mulf %46, %53 : vector<16x384xf32>
    %c0_19 = arith.constant 0 : index
    %c0_20 = arith.constant 0 : index
    %55 = vector.load %arg2[%c0_19, %c0_20] : memref<128x384xf32, #tpu.memory_space<vmem>>, vector<128x384xf32>
    %56 = arith.mulf %55, %55 : vector<128x384xf32>
    %cst_21 = arith.constant dense<0.000000e+00> : vector<128xf32>
    %57 = vector.multi_reduction <add>, %56, %cst_21 [1] : vector<128x384xf32> to vector<128xf32>
    %58 = vector.shape_cast %57 : vector<128xf32> to vector<128x1xf32>
    %cst_22 = arith.constant 9.99999996E-13 : f32
    %59 = vector.broadcast %cst_22 : f32 to vector<128x1xf32>
    %60 = arith.maximumf %58, %59 : vector<128x1xf32>
    %61 = math.rsqrt %60 : vector<128x1xf32>
    %62 = vector.broadcast %61 : vector<128x1xf32> to vector<128x384xf32>
    %63 = arith.mulf %55, %62 : vector<128x384xf32>
    %64 = arith.truncf %54 : vector<16x384xf32> to vector<16x384xbf16>
    %65 = arith.truncf %63 : vector<128x384xf32> to vector<128x384xbf16>
    %cst_23 = arith.constant dense<0.000000e+00> : vector<16x128xf32>
    %66 = tpu.matmul %64, %65, %cst_23 {dimension_numbers = #tpu.dot_dimension_numbers<[1], [1], [0], [0], [0, 0, 1, 0], [], []>} : vector<16x384xbf16>, vector<128x384xbf16>, vector<16x128xf32> -> vector<16x128xf32>
    %c0_24 = arith.constant 0 : index
    %c0_25 = arith.constant 0 : index
    %67 = vector.load %arg7[%c0_24, %c0_25] : memref<16x384xf32, #tpu.memory_space<vmem>>, vector<16x384xf32>
    tpu.vector_store %arg7[%c0_24, %c0_25], %54 {strides = array<i32>} : memref<16x384xf32, #tpu.memory_space<vmem>>, vector<16x384xf32>,
    %c0_26 = arith.constant 0 : index
    %c0_27 = arith.constant 0 : index
    %68 = vector.load %arg8[%c0_26, %c0_27] : memref<16x128xf32, #tpu.memory_space<vmem>>, vector<16x128xf32>
    tpu.vector_store %arg8[%c0_26, %c0_27], %66 {strides = array<i32>} : memref<16x128xf32, #tpu.memory_space<vmem>>, vector<16x128xf32>,
    return
  }
  func.func @transform_0(%arg0: i32) -> (i32, i32, i32) {
    %c0_i32 = arith.constant 0 : i32
    %c0_i32_0 = arith.constant 0 : i32
    %c0_i32_1 = arith.constant 0 : i32
    return %arg0, %c0_i32, %c0_i32_0 : i32, i32, i32
  }
  func.func @transform_1(%arg0: i32) -> (i32, i32) {
    %c0_i32 = arith.constant 0 : i32
    %c0_i32_0 = arith.constant 0 : i32
    %c0_i32_1 = arith.constant 0 : i32
    return %c0_i32, %c0_i32_0 : i32, i32
  }
  func.func @transform_2(%arg0: i32) -> (i32, i32) {
    %c0_i32 = arith.constant 0 : i32
    %c0_i32_0 = arith.constant 0 : i32
    %c0_i32_1 = arith.constant 0 : i32
    return %c0_i32, %c0_i32_0 : i32, i32
  }
  func.func @transform_3(%arg0: i32) -> i32 {
    %c0_i32 = arith.constant 0 : i32
    %c0_i32_0 = arith.constant 0 : i32
    return %c0_i32 : i32
  }
  func.func @transform_4(%arg0: i32) -> (i32, i32) {
    %c0_i32 = arith.constant 0 : i32
    %c0_i32_0 = arith.constant 0 : i32
    %c0_i32_1 = arith.constant 0 : i32
    return %c0_i32, %c0_i32_0 : i32, i32
  }
  func.func @transform_5(%arg0: i32) -> (i32, i32) {
    %c0_i32 = arith.constant 0 : i32
    %c0_i32_0 = arith.constant 0 : i32
    %c0_i32_1 = arith.constant 0 : i32
    return %c0_i32, %c0_i32_0 : i32, i32
  }
  func.func @transform_6(%arg0: i32) -> (i32, i32) {
    %c0_i32 = arith.constant 0 : i32
    %c0_i32_0 = arith.constant 0 : i32
    return %arg0, %c0_i32 : i32, i32
  }
  func.func @transform_7(%arg0: i32) -> (i32, i32) {
    %c0_i32 = arith.constant 0 : i32
    %c0_i32_0 = arith.constant 0 : i32
    return %arg0, %c0_i32 : i32, i32
  }
}

</mosaic_0001>

<llo_original>
// kernel: tpu_custom_call.1
$region0: #{tpu_custom_call.1}
  #allocation0 [shape = 'u32[]', space=smem, size = 0x4, offset = 0x4, fixed_abs, tag = 'smem constant byte address 0x4 - core index']
  #allocation1 [shape = 'u32[144,128]{1,0:T(1,128)}', space=vmem, size = 0x12000, scoped, tag = 'internal scratch']
  #allocation2 [shape = 'f32[1]{0:T(128)S(6)}', space=smem, size = 0x200, scoped, tag = 'scoped memory for tpu_custom_call.1']
  %s0 = inlined_call_operand.hbm [shape: f32[32,8,384], index: 0, kind: input, shape index: {}]
  %s1 = inlined_call_operand.hbm [shape: f32[128,384], index: 1, kind: input, shape index: {}]
  %s2 = inlined_call_operand.vmem [shape: f32[1,384], index: 2, kind: input, shape index: {}]
  %s3 = inlined_call_operand.<no memory space> [shape: f32[1], index: 3, kind: input, shape index: {}]
  %s4 = inlined_call_operand.hbm [shape: bf16[384,384], index: 4, kind: input, shape index: {}]
  %s5 = inlined_call_operand.vmem [shape: f32[1,384], index: 5, kind: input, shape index: {}]
  %s6 = inlined_call_operand.hbm [shape: f32[32,384], index: 6, kind: output, shape index: {0}]
  %s7 = inlined_call_operand.hbm [shape: f32[32,128], index: 7, kind: output, shape index: {1}]
  %8 = xla_tuple %s6, %s7
  %s9 = sld [smem:[#allocation0]]
  $region77: #{tpu_custom_call.1} parent=0
    _
  %s11 = ssub.s32 1, %s9
  %s12 = scalar_select 0, %s11, %s9
  %13 = sst [smem:[#allocation2]] %s3
  $region1: #{tpu_custom_call.1} parent=0
    #allocation3 [shape = 'u8[393216]{0}', space=vmem, size = 0x60000, scoped, tag = 'input window, operand 0']
    #allocation4 [shape = 's32[2]{0}', space=sflag, size = 0x8, scoped, tag = 'scoped memory for tpu_custom_call.1']
    #allocation5 [shape = 's32[2]{0}', space=sflag, size = 0x8, scoped, tag = 'scoped memory for tpu_custom_call.1']
    #allocation6 [shape = 'u8[196608]{0}', space=vmem, size = 0x30000, scoped, tag = 'input window, operand 1, single buffered']
    #allocation7 [shape = 's32[1]{0}', space=sflag, size = 0x4, scoped, tag = 'scoped memory for tpu_custom_call.1']
    #allocation8 [shape = 'u8[294912]{0}', space=vmem, size = 0x48000, scoped, tag = 'input window, operand 4, single buffered']
    #allocation9 [shape = 'u8[49152]{0}', space=vmem, size = 0xc000, scoped, tag = 'output window, operand 0']
    #allocation10 [shape = 'u8[16384]{0}', space=vmem, size = 0x4000, scoped, tag = 'output window, operand 1']
    #allocation11 [shape = 's32[2]{0}', space=sflag, size = 0x8, scoped, tag = 'scoped memory for tpu_custom_call.1']
    %14 = vsyncpa [#allocation4], 0
    %s15 = scalar_lea.sflag [#allocation4], 1
    %16 = vsyncpa %s15, 0
    %17 = vsyncpa [#allocation7], 0
    %18 = vsyncpa [#allocation5], 0
    %s19 = scalar_lea.sflag [#allocation5], 1
    %20 = vsyncpa %s19, 0
    %21 = vsyncpa [#allocation11], 0
    %s22 = scalar_lea.sflag [#allocation11], 1
    %23 = vsyncpa %s22, 0
    loop: start=0, step=1, limit=4
    $region2: #{tpu_custom_call.1} parent=1 // loop_pre_header
      _
    $region3: #{tpu_custom_call.1} parent=1 // loop_header
      %s25 = sphi 0, %s29
      %p26 = scmp.ge.s32.totalorder %s25, 4
      %s35 = sphi 0, %s37
      %s38 = sphi 0, %s35
      %s39 = sphi 0, %s38
      %s55 = sphi 0, %s39
      %s59 = sphi 0, %s59
      %s61 = sphi 0, %s59
      %s62 = sphi 0, %s61
      %s76 = sphi 0, %s62
      %s80 = sphi 0, %s80
      %s82 = sphi 0, %s80
      %s83 = sphi 0, %s82
      %s97 = sphi 0, %s83
      %s101 = sphi 0, %s101
      %s103 = sphi 0, %s101
      %s104 = sphi 0, %s103
      %s118 = sphi 0, %s104
      %s122 = sphi 0, %s122
      %s124 = sphi 0, %s122
      %s125 = sphi 0, %s124
      %s139 = sphi 0, %s125
      %s143 = sphi 0, %s143
      %s145 = sphi 0, %s143
      %s146 = sphi 0, %s145
      %s160 = sphi 0, %s146
      %s166 = sphi 0, %s168
      %s169 = sphi 0, %s166
      %s170 = sphi 0, %s169
      %s186 = sphi 0, %s170
      %s192 = sphi 0, %s194
      %s195 = sphi 0, %s192
      %s196 = sphi 0, %s195
      %s212 = sphi 0, %s196
    $region4: #{tpu_custom_call.1} parent=1 // loop_header_branch
      %28 = sbr.rel (%p26) target = $region8
    $region5: #{tpu_custom_call.1} parent=1 // loop_body
      %s30 = ssub.s32 %s25, 1
      %s31 = ssub.s32 %s25, 2
      %s32 = sadd.s32 %s25, 1
      %s33 = ssub.s32 %s25, %s32
      %p34 = scmp.eq.s32.totalorder %s33, 0
      %s36 = sadd.s32 %s35, 1
      %s37 = scalar_select %p34, %s35, %s36
      %p40 = pneg %p34
      %p41 = scmp.eq.s32.totalorder %s25, 1
      %p42 = por %p40, %p41
      %p43 = scmp.ne.s32.totalorder %s35, %s38
      %p44 = scmp.eq.s32.totalorder %s25, 0
      %p45 = por %p43, %p44
      %p46 = scmp.ne.s32.totalorder %s35, %s38
      %p47 = scmp.eq.s32.totalorder %s30, 1
      %p48 = por %p46, %p47
      %p49 = scmp.ne.s32.totalorder %s38, %s39
      %p50 = scmp.eq.s32.totalorder %s30, 0
      %p51 = por %p49, %p50
      %p52 = scmp.ne.s32.totalorder %s38, %s39
      %p53 = scmp.eq.s32.totalorder %s31, 1
      %p54 = por %p52, %p53
      %p56 = scmp.ne.s32.totalorder %s39, %s55
      %p57 = scmp.eq.s32.totalorder %s31, 0
      %p58 = por %p56, %p57
      %s60 = sadd.s32 %s59, 1
      %p63 = scmp.eq.s32.totalorder %s25, 1
      %p64 = scmp.ne.s32.totalorder %s59, %s61
      %p65 = scmp.eq.s32.totalorder %s25, 0
      %p66 = por %p64, %p65
      %p67 = scmp.ne.s32.totalorder %s59, %s61
      %p68 = scmp.eq.s32.totalorder %s30, 1
      %p69 = por %p67, %p68
      %p70 = scmp.ne.s32.totalorder %s61, %s62
      %p71 = scmp.eq.s32.totalorder %s30, 0
      %p72 = por %p70, %p71
      %p73 = scmp.ne.s32.totalorder %s61, %s62
      %p74 = scmp.eq.s32.totalorder %s31, 1
      %p75 = por %p73, %p74
      %p77 = scmp.ne.s32.totalorder %s62, %s76
      %p78 = scmp.eq.s32.totalorder %s31, 0
      %p79 = por %p77, %p78
      %s81 = sadd.s32 %s80, 1
      %p84 = scmp.eq.s32.totalorder %s25, 1
      %p85 = scmp.ne.s32.totalorder %s80, %s82
      %p86 = scmp.eq.s32.totalorder %s25, 0
      %p87 = por %p85, %p86
      %p88 = scmp.ne.s32.totalorder %s80, %s82
      %p89 = scmp.eq.s32.totalorder %s30, 1
      %p90 = por %p88, %p89
      %p91 = scmp.ne.s32.totalorder %s82, %s83
      %p92 = scmp.eq.s32.totalorder %s30, 0
      %p93 = por %p91, %p92
      %p94 = scmp.ne.s32.totalorder %s82, %s83
      %p95 = scmp.eq.s32.totalorder %s31, 1
      %p96 = por %p94, %p95
      %p98 = scmp.ne.s32.totalorder %s83, %s97
      %p99 = scmp.eq.s32.totalorder %s31, 0
      %p100 = por %p98, %p99
      %s102 = sadd.s32 %s101, 1
      %p105 = scmp.eq.s32.totalorder %s25, 1
      %p106 = scmp.ne.s32.totalorder %s101, %s103
      %p107 = scmp.eq.s32.totalorder %s25, 0
      %p108 = por %p106, %p107
      %p109 = scmp.ne.s32.totalorder %s101, %s103
      %p110 = scmp.eq.s32.totalorder %s30, 1
      %p111 = por %p109, %p110
      %p112 = scmp.ne.s32.totalorder %s103, %s104
      %p113 = scmp.eq.s32.totalorder %s30, 0
      %p114 = por %p112, %p113
      %p115 = scmp.ne.s32.totalorder %s103, %s104
      %p116 = scmp.eq.s32.totalorder %s31, 1
      %p117 = por %p115, %p116
      %p119 = scmp.ne.s32.totalorder %s104, %s118
      %p120 = scmp.eq.s32.totalorder %s31, 0
      %p121 = por %p119, %p120
      %s123 = sadd.s32 %s122, 1
      %p126 = scmp.eq.s32.totalorder %s25, 1
      %p127 = scmp.ne.s32.totalorder %s122, %s124
      %p128 = scmp.eq.s32.totalorder %s25, 0
      %p129 = por %p127, %p128
      %p130 = scmp.ne.s32.totalorder %s122, %s124
      %p131 = scmp.eq.s32.totalorder %s30, 1
      %p132 = por %p130, %p131
      %p133 = scmp.ne.s32.totalorder %s124, %s125
      %p134 = scmp.eq.s32.totalorder %s30, 0
      %p135 = por %p133, %p134
      %p136 = scmp.ne.s32.totalorder %s124, %s125
      %p137 = scmp.eq.s32.totalorder %s31, 1
      %p138 = por %p136, %p137
      %p140 = scmp.ne.s32.totalorder %s125, %s139
      %p141 = scmp.eq.s32.totalorder %s31, 0
      %p142 = por %p140, %p141
      %s144 = sadd.s32 %s143, 1
      %p147 = scmp.eq.s32.totalorder %s25, 1
      %p148 = scmp.ne.s32.totalorder %s143, %s145
      %p149 = scmp.eq.s32.totalorder %s25, 0
      %p150 = por %p148, %p149
      %p151 = scmp.ne.s32.totalorder %s143, %s145
      %p152 = scmp.eq.s32.totalorder %s30, 1
      %p153 = por %p151, %p152
      %p154 = scmp.ne.s32.totalorder %s145, %s146
      %p155 = scmp.eq.s32.totalorder %s30, 0
      %p156 = por %p154, %p155
      %p157 = scmp.ne.s32.totalorder %s145, %s146
      %p158 = scmp.eq.s32.totalorder %s31, 1
      %p159 = por %p157, %p158
      %p161 = scmp.ne.s32.totalorder %s146, %s160
      %p162 = scmp.eq.s32.totalorder %s31, 0
      %p163 = por %p161, %p162
      %s164 = ssub.s32 %s25, %s32
      %p165 = scmp.eq.s32.totalorder %s164, 0
      %s167 = sadd.s32 %s166, 1
      %s168 = scalar_select %p165, %s166, %s167
      %p171 = pneg %p165
      %p172 = scmp.eq.s32.totalorder %s25, 1
      %p173 = por %p171, %p172
      %p174 = scmp.ne.s32.totalorder %s166, %s169
      %p175 = scmp.eq.s32.totalorder %s25, 0
      %p176 = por %p174, %p175
      %p177 = scmp.ne.s32.totalorder %s166, %s169
      %p178 = scmp.eq.s32.totalorder %s30, 1
      %p179 = por %p177, %p178
      %p180 = scmp.ne.s32.totalorder %s169, %s170
      %p181 = scmp.eq.s32.totalorder %s30, 0
      %p182 = por %p180, %p181
      %p183 = scmp.ne.s32.totalorder %s169, %s170
      %p184 = scmp.eq.s32.totalorder %s31, 1
      %p185 = por %p183, %p184
      %p187 = scmp.ne.s32.totalorder %s170, %s186
      %p188 = scmp.eq.s32.totalorder %s31, 0
      %p189 = por %p187, %p188
      %s190 = ssub.s32 %s25, %s32
      %p191 = scmp.eq.s32.totalorder %s190, 0
      %s193 = sadd.s32 %s192, 1
      %s194 = scalar_select %p191, %s192, %s193
      %p197 = pneg %p191
      %p198 = scmp.eq.s32.totalorder %s25, 1
      %p199 = por %p197, %p198
      %p200 = scmp.ne.s32.totalorder %s192, %s195
      %p201 = scmp.eq.s32.totalorder %s25, 0
      %p202 = por %p200, %p201
      %p203 = scmp.ne.s32.totalorder %s192, %s195
      %p204 = scmp.eq.s32.totalorder %s30, 1
      %p205 = por %p203, %p204
      %p206 = scmp.ne.s32.totalorder %s195, %s196
      %p207 = scmp.eq.s32.totalorder %s30, 0
      %p208 = por %p206, %p207
      %p209 = scmp.ne.s32.totalorder %s195, %s196
      %p210 = scmp.eq.s32.totalorder %s31, 1
      %p211 = por %p209, %p210
      %p213 = scmp.ne.s32.totalorder %s196, %s212
      %p214 = scmp.eq.s32.totalorder %s31, 0
      %p215 = por %p213, %p214
      %p216 = scmp.le.s32.totalorder 1, %s25
      %p217 = scmp.lt.s32.totalorder %s25, 3
      %p218 = pnand %p216, %p217
      %p219 = pneg %p218
      // Predicated region
      $region9: #{tpu_custom_call.1} parent=5 // pred_check
        _
      $region10: #{tpu_custom_call.1} parent=5 // pred_check_branch
        %221 = sbr.rel (%p218) target = $region12
      $region11: #{tpu_custom_call.1} parent=5 // pred_region
        %s222 = ssub.s32 %s25, 1
        // Predicated region
        $region13: #{tpu_custom_call.1} parent=11 // pred_check
          %p223 = pneg %p72
        $region14: #{tpu_custom_call.1} parent=11 // pred_check_branch
          %225 = sbr.rel (%p223) target = $region16
        $region15: #{tpu_custom_call.1} parent=11 // pred_region
          %s227 = ssub.s32 6144, 6144
          %228 = vsyncadd [#allocation7], %s227
          %s229 = sshll.u32 [#allocation6], 4
          %s230 = int_to_ptr.vmem [resolvable:$true] %s229
          %235 = dma.hbm_to_vmem [thread:$0]  %s1, 6144, %s230, [#allocation7], 384, 384, 24
        $region16: #{tpu_custom_call.1} parent=11 // pred_fallthru
          _
        // Predicated region
        $region17: #{tpu_custom_call.1} parent=11 // pred_check
          %p236 = pneg %p93
        $region18: #{tpu_custom_call.1} parent=11 // pred_check_branch
          %238 = sbr.rel (%p236) target = $region20
        $region19: #{tpu_custom_call.1} parent=11 // pred_region
          _
        $region20: #{tpu_custom_call.1} parent=11 // pred_fallthru
          _
        // Predicated region
        $region21: #{tpu_custom_call.1} parent=11 // pred_check
          %p239 = pneg %p114
        $region22: #{tpu_custom_call.1} parent=11 // pred_check_branch
          %241 = sbr.rel (%p239) target = $region24
        $region23: #{tpu_custom_call.1} parent=11 // pred_region
          _
        $region24: #{tpu_custom_call.1} parent=11 // pred_fallthru
          _
        // Predicated region
        $region25: #{tpu_custom_call.1} parent=11 // pred_check
          %p242 = pneg %p135
        $region26: #{tpu_custom_call.1} parent=11 // pred_check_branch
          %244 = sbr.rel (%p242) target = $region28
        $region27: #{tpu_custom_call.1} parent=11 // pred_region
          %s246 = ssub.s32 9216, 9216
          %247 = vsyncadd [#allocation7], %s246
          %s248 = sshll.u32 [#allocation8], 4
          %s249 = int_to_ptr.vmem [resolvable:$true] %s248
          %254 = dma.hbm_to_vmem [thread:$0]  %s4, 9216, %s249, [#allocation7], 192, 192, 12
        $region28: #{tpu_custom_call.1} parent=11 // pred_fallthru
          _
        // Predicated region
        $region29: #{tpu_custom_call.1} parent=11 // pred_check
          %p255 = pneg %p156
        $region30: #{tpu_custom_call.1} parent=11 // pred_check_branch
          %257 = sbr.rel (%p255) target = $region32
        $region31: #{tpu_custom_call.1} parent=11 // pred_region
          _
        $region32: #{tpu_custom_call.1} parent=11 // pred_fallthru
          _
      $region12: #{tpu_custom_call.1} parent=5 // pred_fallthru
        _
      %p258 = scmp.lt.s32.totalorder %s25, 2
      // Predicated region
      $region33: #{tpu_custom_call.1} parent=5 // pred_check
        %p259 = pneg %p258
      $region34: #{tpu_custom_call.1} parent=5 // pred_check_branch
        %261 = sbr.rel (%p259) target = $region36
      $region35: #{tpu_custom_call.1} parent=5 // pred_region
        // Predicated region
        $region37: #{tpu_custom_call.1} parent=35 // pred_check
          %p262 = pneg %p45
        $region38: #{tpu_custom_call.1} parent=35 // pred_check_branch
          %264 = sbr.rel (%p262) target = $region40
        $region39: #{tpu_custom_call.1} parent=35 // pred_region
          %s265 = sand.u32 %s35, 1
          %s266 = scalar_lea.sflag [#allocation4], %s265
          %s267 = sand.u32 %s35, 1
          %s268 = smul.addr %s267, 384
          %s269 = scalar_lea.vmem [#allocation3], %s268
          %s270 = smul.u32 16, %s25
          %s272 = ssub.s32 6144, 6144
          %273 = vsyncadd %s266, %s272
          %s274 = smul.addr %s270, 3
          %s275 = smul.addr %s274, 128
          %s276 = scalar_lea.hbm %s0, %s275
          %s277 = sshll.u32 %s269, 4
          %s278 = int_to_ptr.vmem [resolvable:$true] %s277
          %283 = dma.hbm_to_vmem [thread:$0]  %s276, 6144, %s278, %s266, 384, 384, 24
        $region40: #{tpu_custom_call.1} parent=35 // pred_fallthru
          _
      $region36: #{tpu_custom_call.1} parent=5 // pred_fallthru
        _
      %p284 = scmp.le.s32.totalorder 1, %s25
      %p285 = scmp.lt.s32.totalorder %s25, 3
      %p286 = pnand %p284, %p285
      %p287 = pneg %p286
      // Predicated region
      $region41: #{tpu_custom_call.1} parent=5 // pred_check
        _
      $region42: #{tpu_custom_call.1} parent=5 // pred_check_branch
        %289 = sbr.rel (%p286) target = $region44
      $region43: #{tpu_custom_call.1} parent=5 // pred_region
        %s290 = ssub.s32 %s25, 1
        %s291 = sand.u32 %s38, 1
        %s292 = scalar_lea.sflag [#allocation4], %s291
        %s293 = sand.u32 %s38, 1
        %s294 = smul.addr %s293, 384
        %s295 = scalar_lea.vmem [#allocation3], %s294
        // Predicated region
        $region45: #{tpu_custom_call.1} parent=43 // pred_check
          %p296 = pneg %p51
        $region46: #{tpu_custom_call.1} parent=43 // pred_check_branch
          %298 = sbr.rel (%p296) target = $region48
        $region47: #{tpu_custom_call.1} parent=43 // pred_region
          %299 = dma.done %s292, 6144
        $region48: #{tpu_custom_call.1} parent=43 // pred_fallthru
          _
        // Predicated region
        $region49: #{tpu_custom_call.1} parent=43 // pred_check
          %p300 = pneg %p72
        $region50: #{tpu_custom_call.1} parent=43 // pred_check_branch
          %302 = sbr.rel (%p300) target = $region52
        $region51: #{tpu_custom_call.1} parent=43 // pred_region
          %303 = dma.done [#allocation7], 6144
        $region52: #{tpu_custom_call.1} parent=43 // pred_fallthru
          _
        // Predicated region
        $region53: #{tpu_custom_call.1} parent=43 // pred_check
          %p304 = pneg %p135
        $region54: #{tpu_custom_call.1} parent=43 // pred_check_branch
          %306 = sbr.rel (%p304) target = $region56
        $region55: #{tpu_custom_call.1} parent=43 // pred_region
          %307 = dma.done [#allocation7], 9216
        $region56: #{tpu_custom_call.1} parent=43 // pred_fallthru
          _
        %s308 = sand.u32 %s38, 1
        %s309 = scalar_lea.sflag [#allocation4], %s308
        %s310 = sand.u32 %s38, 1
        %s311 = smul.addr %s310, 384
        %s312 = scalar_lea.vmem [#allocation3], %s311
        %p313 = pneg %p51
        %p314 = pneg %p48
        %p315 = pneg %p72
        %p316 = pneg %p69
        %p317 = pneg %p93
        %p318 = pneg %p90
        %p319 = pneg %p114
        %p320 = pneg %p111
        %p321 = pneg %p135
        %p322 = pneg %p132
        %p323 = pneg %p156
        %p324 = pneg %p153
        %p325 = pneg %p182
        %p326 = pneg %p179
        %s327 = sand.u32 %s169, 1
        %s328 = scalar_lea.sflag [#allocation5], %s327
        %s329 = sand.u32 %s169, 1
        %s330 = smul.addr %s329, 48
        %s331 = scalar_lea.vmem [#allocation9], %s330
        %p332 = pneg %p208
        %p333 = pneg %p205
        %s334 = sand.u32 %s195, 1
        %s335 = scalar_lea.sflag [#allocation11], %s334
        %s336 = sand.u32 %s195, 1
        %s337 = smul.addr %s336, 16
        %s338 = scalar_lea.vmem [#allocation10], %s337
        %s339 = smul.u32 16, %s30
        %s340 = smul.u32 2, %s30
        %s341 = smul.u32 2, %s30
        %v343 = vld [vmem:[%s295] sm:$0xff]
        %v344 = vld [vmem:[%s295 + $0x8] sm:$0xff]
        %v345 = vld [vmem:[%s295 + $0x10] sm:$0xff]
        %v346 = vld [vmem:[%s295 + $0x18] sm:$0xff]
        %v347 = vld [vmem:[%s295 + $0x20] sm:$0xff]
        %v348 = vld [vmem:[%s295 + $0x28] sm:$0xff]
        %v349 = vld [vmem:[%s295 + $0x30] sm:$0xff]
        %v350 = vld [vmem:[%s295 + $0x38] sm:$0xff]
        %v351 = vld [vmem:[%s295 + $0x40] sm:$0xff]
        %v352 = vld [vmem:[%s295 + $0x48] sm:$0xff]
        %v353 = vld [vmem:[%s295 + $0x50] sm:$0xff]
        %v354 = vld [vmem:[%s295 + $0x58] sm:$0xff]
        %v355 = vld [vmem:[%s295 + $0x60] sm:$0xff]
        %v356 = vld [vmem:[%s295 + $0x68] sm:$0xff]
        %v357 = vld [vmem:[%s295 + $0x70] sm:$0xff]
        %v358 = vld [vmem:[%s295 + $0x78] sm:$0xff]
        %v359 = vld [vmem:[%s295 + $0x80] sm:$0xff]
        %v360 = vld [vmem:[%s295 + $0x88] sm:$0xff]
        %v361 = vld [vmem:[%s295 + $0x90] sm:$0xff]
        %v362 = vld [vmem:[%s295 + $0x98] sm:$0xff]
        %v363 = vld [vmem:[%s295 + $0xa0] sm:$0xff]
        %v364 = vld [vmem:[%s295 + $0xa8] sm:$0xff]
        %v365 = vld [vmem:[%s295 + $0xb0] sm:$0xff]
        %v366 = vld [vmem:[%s295 + $0xb8] sm:$0xff]
        %v367 = vld [vmem:[%s295 + $0xc0] sm:$0xff]
        %v368 = vld [vmem:[%s295 + $0xc8] sm:$0xff]
        %v369 = vld [vmem:[%s295 + $0xd0] sm:$0xff]
        %v370 = vld [vmem:[%s295 + $0xd8] sm:$0xff]
        %v371 = vld [vmem:[%s295 + $0xe0] sm:$0xff]
        %v372 = vld [vmem:[%s295 + $0xe8] sm:$0xff]
        %v373 = vld [vmem:[%s295 + $0xf0] sm:$0xff]
        %v374 = vld [vmem:[%s295 + $0xf8] sm:$0xff]
        %v375 = vld [vmem:[%s295 + $0x100] sm:$0xff]
        %v376 = vld [vmem:[%s295 + $0x108] sm:$0xff]
        %v377 = vld [vmem:[%s295 + $0x110] sm:$0xff]
        %v378 = vld [vmem:[%s295 + $0x118] sm:$0xff]
        %v379 = vld [vmem:[%s295 + $0x120] sm:$0xff]
        %v380 = vld [vmem:[%s295 + $0x128] sm:$0xff]
        %v381 = vld [vmem:[%s295 + $0x130] sm:$0xff]
        %v382 = vld [vmem:[%s295 + $0x138] sm:$0xff]
        %v383 = vld [vmem:[%s295 + $0x140] sm:$0xff]
        %v384 = vld [vmem:[%s295 + $0x148] sm:$0xff]
        %v385 = vld [vmem:[%s295 + $0x150] sm:$0xff]
        %v386 = vld [vmem:[%s295 + $0x158] sm:$0xff]
        %v387 = vld [vmem:[%s295 + $0x160] sm:$0xff]
        %v388 = vld [vmem:[%s295 + $0x168] sm:$0xff]
        %v389 = vld [vmem:[%s295 + $0x170] sm:$0xff]
        %v390 = vld [vmem:[%s295 + $0x178] sm:$0xff]
        %v391 = vld [vmem:[%s2] sm:$0x7]
        %s392 = sld [smem:[#allocation2]]
        %v394 = vlaneseq
        %v395 = vshrl.u32 %v394, 7
        %v396 = vsub.s32 0, %v395
        %v397 = vrot.slane %v391, %v396
        %v398 = vlaneseq
        %v399 = vshrl.u32 %v398, 7
        %v400 = vsub.s32 1, %v399
        %v401 = vrot.slane %v391, %v400
        %v402 = vlaneseq
        %v403 = vshrl.u32 %v402, 7
        %v404 = vsub.s32 2, %v403
        %v405 = vrot.slane %v391, %v404
        %v409 = vmul.f32 %v343, %v397
        %v410 = vmul.f32 %v344, %v401
        %v411 = vmul.f32 %v345, %v405
        %v412 = vmul.f32 %v346, %v397
        %v413 = vmul.f32 %v347, %v401
        %v414 = vmul.f32 %v348, %v405
        %v415 = vmul.f32 %v349, %v397
        %v416 = vmul.f32 %v350, %v401
        %v417 = vmul.f32 %v351, %v405
        %v418 = vmul.f32 %v352, %v397
        %v419 = vmul.f32 %v353, %v401
        %v420 = vmul.f32 %v354, %v405
        %v421 = vmul.f32 %v355, %v397
        %v422 = vmul.f32 %v356, %v401
        %v423 = vmul.f32 %v357, %v405
        %v424 = vmul.f32 %v358, %v397
        %v425 = vmul.f32 %v359, %v401
        %v426 = vmul.f32 %v360, %v405
        %v427 = vmul.f32 %v361, %v397
        %v428 = vmul.f32 %v362, %v401
        %v429 = vmul.f32 %v363, %v405
        %v430 = vmul.f32 %v364, %v397
        %v431 = vmul.f32 %v365, %v401
        %v432 = vmul.f32 %v366, %v405
        %v433 = vmul.f32 %v367, %v397
        %v434 = vmul.f32 %v368, %v401
        %v435 = vmul.f32 %v369, %v405
        %v436 = vmul.f32 %v370, %v397
        %v437 = vmul.f32 %v371, %v401
        %v438 = vmul.f32 %v372, %v405
        %v439 = vmul.f32 %v373, %v397
        %v440 = vmul.f32 %v374, %v401
        %v441 = vmul.f32 %v375, %v405
        %v442 = vmul.f32 %v376, %v397
        %v443 = vmul.f32 %v377, %v401
        %v444 = vmul.f32 %v378, %v405
        %v445 = vmul.f32 %v379, %v397
        %v446 = vmul.f32 %v380, %v401
        %v447 = vmul.f32 %v381, %v405
        %v448 = vmul.f32 %v382, %v397
        %v449 = vmul.f32 %v383, %v401
        %v450 = vmul.f32 %v384, %v405
        %v451 = vmul.f32 %v385, %v397
        %v452 = vmul.f32 %v386, %v401
        %v453 = vmul.f32 %v387, %v405
        %v454 = vmul.f32 %v388, %v397
        %v455 = vmul.f32 %v389, %v401
        %v456 = vmul.f32 %v390, %v405
        %v457 = vadd.f32 %v409, %v410
        %v458 = vadd.f32 %v457, %v411
        %459 = vadd.xlane.f32.xlu0 %v458
        %v460 = vpop.xlane.xlu0 %459
        %v461 = vadd.f32 %v412, %v413
        %v462 = vadd.f32 %v461, %v414
        %463 = vadd.xlane.f32.xlu0 %v462
        %v464 = vpop.xlane.xlu0 %463
        %v465 = vadd.f32 %v415, %v416
        %v466 = vadd.f32 %v465, %v417
        %467 = vadd.xlane.f32.xlu0 %v466
        %v468 = vpop.xlane.xlu0 %467
        %v469 = vadd.f32 %v418, %v419
        %v470 = vadd.f32 %v469, %v420
        %471 = vadd.xlane.f32.xlu0 %v470
        %v472 = vpop.xlane.xlu0 %471
        %v473 = vadd.f32 %v421, %v422
        %v474 = vadd.f32 %v473, %v423
        %475 = vadd.xlane.f32.xlu0 %v474
        %v476 = vpop.xlane.xlu0 %475
        %v477 = vadd.f32 %v424, %v425
        %v478 = vadd.f32 %v477, %v426
        %479 = vadd.xlane.f32.xlu0 %v478
        %v480 = vpop.xlane.xlu0 %479
        %v481 = vadd.f32 %v427, %v428
        %v482 = vadd.f32 %v481, %v429
        %483 = vadd.xlane.f32.xlu0 %v482
        %v484 = vpop.xlane.xlu0 %483
        %v485 = vadd.f32 %v430, %v431
        %v486 = vadd.f32 %v485, %v432
        %487 = vadd.xlane.f32.xlu0 %v486
        %v488 = vpop.xlane.xlu0 %487
        %v489 = vadd.f32 %v433, %v434
        %v490 = vadd.f32 %v489, %v435
        %491 = vadd.xlane.f32.xlu0 %v490
        %v492 = vpop.xlane.xlu0 %491
        %v493 = vadd.f32 %v436, %v437
        %v494 = vadd.f32 %v493, %v438
        %495 = vadd.xlane.f32.xlu0 %v494
        %v496 = vpop.xlane.xlu0 %495
        %v497 = vadd.f32 %v439, %v440
        %v498 = vadd.f32 %v497, %v441
        %499 = vadd.xlane.f32.xlu0 %v498
        %v500 = vpop.xlane.xlu0 %499
        %v501 = vadd.f32 %v442, %v443
        %v502 = vadd.f32 %v501, %v444
        %503 = vadd.xlane.f32.xlu0 %v502
        %v504 = vpop.xlane.xlu0 %503
        %v505 = vadd.f32 %v445, %v446
        %v506 = vadd.f32 %v505, %v447
        %507 = vadd.xlane.f32.xlu0 %v506
        %v508 = vpop.xlane.xlu0 %507
        %v509 = vadd.f32 %v448, %v449
        %v510 = vadd.f32 %v509, %v450
        %511 = vadd.xlane.f32.xlu0 %v510
        %v512 = vpop.xlane.xlu0 %511
        %v513 = vadd.f32 %v451, %v452
        %v514 = vadd.f32 %v513, %v453
        %515 = vadd.xlane.f32.xlu0 %v514
        %v516 = vpop.xlane.xlu0 %515
        %v517 = vadd.f32 %v454, %v455
        %v518 = vadd.f32 %v517, %v456
        %519 = vadd.xlane.f32.xlu0 %v518
        %v520 = vpop.xlane.xlu0 %519
        %v521 = vstv %s392
        %v522 = vadd.f32 %v460, %v521
        %v523 = vadd.f32 %v464, %v521
        %v524 = vadd.f32 %v468, %v521
        %v525 = vadd.f32 %v472, %v521
        %v526 = vadd.f32 %v476, %v521
        %v527 = vadd.f32 %v480, %v521
        %v528 = vadd.f32 %v484, %v521
        %v529 = vadd.f32 %v488, %v521
        %v530 = vadd.f32 %v492, %v521
        %v531 = vadd.f32 %v496, %v521
        %v532 = vadd.f32 %v500, %v521
        %v533 = vadd.f32 %v504, %v521
        %v534 = vadd.f32 %v508, %v521
        %v535 = vadd.f32 %v512, %v521
        %v536 = vadd.f32 %v516, %v521
        %v537 = vadd.f32 %v520, %v521
        %v554 = vlaneseq
        %v555 = vand.u32 %v554, 127
        %v556 = vlaneseq
        %v557 = vshrl.u32 %v556, 7
        %v558 = vsub.s32 %v555, %v557
        %v559 = vrot.slane %v522, %v558
        %v560 = vlaneseq
        %v561 = vshrl.u32 %v560, 7
        %v562 = vsub.s32 %v555, %v561
        %v563 = vrot.slane %v523, %v562
        %v564 = vlaneseq
        %v565 = vshrl.u32 %v564, 7
        %v566 = vsub.s32 %v555, %v565
        %v567 = vrot.slane %v524, %v566
        %v568 = vlaneseq
        %v569 = vshrl.u32 %v568, 7
        %v570 = vsub.s32 %v555, %v569
        %v571 = vrot.slane %v525, %v570
        %v572 = vlaneseq
        %v573 = vshrl.u32 %v572, 7
        %v574 = vsub.s32 %v555, %v573
        %v575 = vrot.slane %v526, %v574
        %v576 = vlaneseq
        %v577 = vshrl.u32 %v576, 7
        %v578 = vsub.s32 %v555, %v577
        %v579 = vrot.slane %v527, %v578
        %v580 = vlaneseq
        %v581 = vshrl.u32 %v580, 7
        %v582 = vsub.s32 %v555, %v581
        %v583 = vrot.slane %v528, %v582
        %v584 = vlaneseq
        %v585 = vshrl.u32 %v584, 7
        %v586 = vsub.s32 %v555, %v585
        %v587 = vrot.slane %v529, %v586
        %v588 = vlaneseq
        %v589 = vshrl.u32 %v588, 7
        %v590 = vsub.s32 %v555, %v589
        %v591 = vrot.slane %v530, %v590
        %v592 = vlaneseq
        %v593 = vshrl.u32 %v592, 7
        %v594 = vsub.s32 %v555, %v593
        %v595 = vrot.slane %v531, %v594
        %v596 = vlaneseq
        %v597 = vshrl.u32 %v596, 7
        %v598 = vsub.s32 %v555, %v597
        %v599 = vrot.slane %v532, %v598
        %v600 = vlaneseq
        %v601 = vshrl.u32 %v600, 7
        %v602 = vsub.s32 %v555, %v601
        %v603 = vrot.slane %v533, %v602
        %v604 = vlaneseq
        %v605 = vshrl.u32 %v604, 7
        %v606 = vsub.s32 %v555, %v605
        %v607 = vrot.slane %v534, %v606
        %v608 = vlaneseq
        %v609 = vshrl.u32 %v608, 7
        %v610 = vsub.s32 %v555, %v609
        %v611 = vrot.slane %v535, %v610
        %v612 = vlaneseq
        %v613 = vshrl.u32 %v612, 7
        %v614 = vsub.s32 %v555, %v613
        %v615 = vrot.slane %v536, %v614
        %v616 = vlaneseq
        %v617 = vshrl.u32 %v616, 7
        %v618 = vsub.s32 %v555, %v617
        %v619 = vrot.slane %v537, %v618
        %vm620 = vcmask 1041409
        %v621 = vsel %vm620, %v563, %v559
        %vm622 = vcmask 1042434
        %v623 = vsel %vm622, %v567, %v621
        %vm624 = vcmask 1043459
        %v625 = vsel %vm624, %v571, %v623
        %vm626 = vcmask 1044484
        %v627 = vsel %vm626, %v575, %v625
        %vm628 = vcmask 1045509
        %v629 = vsel %vm628, %v579, %v627
        %vm630 = vcmask 1046534
        %v631 = vsel %vm630, %v583, %v629
        %vm632 = vcmask 1047559
        %v633 = vsel %vm632, %v587, %v631
        %v634 = vsel %vm620, %v595, %v591
        %v635 = vsel %vm622, %v599, %v634
        %v636 = vsel %vm624, %v603, %v635
        %v637 = vsel %vm626, %v607, %v636
        %v638 = vsel %vm628, %v611, %v637
        %v639 = vsel %vm630, %v615, %v638
        %v640 = vsel %vm632, %v619, %v639
        %vm643 = vcmask 64512
        %v644 = vsel %vm643, %v633, -inf
        %645 = vmax.xlane.f32.xlu0 %v644
        %v646 = vpop.xlane.xlu0 %645
        %v647 = vsel %vm643, %v640, -inf
        %648 = vmax.xlane.f32.xlu0 %v647
        %v649 = vpop.xlane.xlu0 %648
        %v652 = vlaneseq
        %v653 = vshrl.u32 %v652, 7
        %v654 = vsub.s32 0, %v653
        %v655 = vrot.slane %v646, %v654
        %v656 = vlaneseq
        %v657 = vshrl.u32 %v656, 7
        %v658 = vsub.s32 1, %v657
        %v659 = vrot.slane %v646, %v658
        %v660 = vlaneseq
        %v661 = vshrl.u32 %v660, 7
        %v662 = vsub.s32 2, %v661
        %v663 = vrot.slane %v646, %v662
        %v664 = vlaneseq
        %v665 = vshrl.u32 %v664, 7
        %v666 = vsub.s32 3, %v665
        %v667 = vrot.slane %v646, %v666
        %v668 = vlaneseq
        %v669 = vshrl.u32 %v668, 7
        %v670 = vsub.s32 4, %v669
        %v671 = vrot.slane %v646, %v670
        %v672 = vlaneseq
        %v673 = vshrl.u32 %v672, 7
        %v674 = vsub.s32 5, %v673
        %v675 = vrot.slane %v646, %v674
        %v676 = vlaneseq
        %v677 = vshrl.u32 %v676, 7
        %v678 = vsub.s32 6, %v677
        %v679 = vrot.slane %v646, %v678
        %v680 = vlaneseq
        %v681 = vshrl.u32 %v680, 7
        %v682 = vsub.s32 7, %v681
        %v683 = vrot.slane %v646, %v682
        %v684 = vlaneseq
        %v685 = vshrl.u32 %v684, 7
        %v686 = vsub.s32 0, %v685
        %v687 = vrot.slane %v649, %v686
        %v688 = vlaneseq
        %v689 = vshrl.u32 %v688, 7
        %v690 = vsub.s32 1, %v689
        %v691 = vrot.slane %v649, %v690
        %v692 = vlaneseq
        %v693 = vshrl.u32 %v692, 7
        %v694 = vsub.s32 2, %v693
        %v695 = vrot.slane %v649, %v694
        %v696 = vlaneseq
        %v697 = vshrl.u32 %v696, 7
        %v698 = vsub.s32 3, %v697
        %v699 = vrot.slane %v649, %v698
        %v700 = vlaneseq
        %v701 = vshrl.u32 %v700, 7
        %v702 = vsub.s32 4, %v701
        %v703 = vrot.slane %v649, %v702
        %v704 = vlaneseq
        %v705 = vshrl.u32 %v704, 7
        %v706 = vsub.s32 5, %v705
        %v707 = vrot.slane %v649, %v706
        %v708 = vlaneseq
        %v709 = vshrl.u32 %v708, 7
        %v710 = vsub.s32 6, %v709
        %v711 = vrot.slane %v649, %v710
        %v712 = vlaneseq
        %v713 = vshrl.u32 %v712, 7
        %v714 = vsub.s32 7, %v713
        %v715 = vrot.slane %v649, %v714
        %v732 = vsub.f32 %v522, %v655
        %v733 = vsub.f32 %v523, %v659
        %v734 = vsub.f32 %v524, %v663
        %v735 = vsub.f32 %v525, %v667
        %v736 = vsub.f32 %v526, %v671
        %v737 = vsub.f32 %v527, %v675
        %v738 = vsub.f32 %v528, %v679
        %v739 = vsub.f32 %v529, %v683
        %v740 = vsub.f32 %v530, %v687
        %v741 = vsub.f32 %v531, %v691
        %v742 = vsub.f32 %v532, %v695
        %v743 = vsub.f32 %v533, %v699
        %v744 = vsub.f32 %v534, %v703
        %v745 = vsub.f32 %v535, %v707
        %v746 = vsub.f32 %v536, %v711
        %v747 = vsub.f32 %v537, %v715
        %v748 = vmul.f32 %v732, 1.442695
        %v749 = vpow.pop %v748
        %v750 = vmul.f32 %v733, 1.442695
        %v751 = vpow.pop %v750
        %v752 = vmul.f32 %v734, 1.442695
        %v753 = vpow.pop %v752
        %v754 = vmul.f32 %v735, 1.442695
        %v755 = vpow.pop %v754
        %v756 = vmul.f32 %v736, 1.442695
        %v757 = vpow.pop %v756
        %v758 = vmul.f32 %v737, 1.442695
        %v759 = vpow.pop %v758
        %v760 = vmul.f32 %v738, 1.442695
        %v761 = vpow.pop %v760
        %v762 = vmul.f32 %v739, 1.442695
        %v763 = vpow.pop %v762
        %v764 = vmul.f32 %v740, 1.442695
        %v765 = vpow.pop %v764
        %v766 = vmul.f32 %v741, 1.442695
        %v767 = vpow.pop %v766
        %v768 = vmul.f32 %v742, 1.442695
        %v769 = vpow.pop %v768
        %v770 = vmul.f32 %v743, 1.442695
        %v771 = vpow.pop %v770
        %v772 = vmul.f32 %v744, 1.442695
        %v773 = vpow.pop %v772
        %v774 = vmul.f32 %v745, 1.442695
        %v775 = vpow.pop %v774
        %v776 = vmul.f32 %v746, 1.442695
        %v777 = vpow.pop %v776
        %v778 = vmul.f32 %v747, 1.442695
        %v779 = vpow.pop %v778
        %796 = vset.pattern.permute.xlu0 0
        %797 = vperm.xlu0 %796, %v749
        %v798 = vpop.permute.xlu0 %797
        %799 = vset.pattern.permute.xlu0 0
        %800 = vperm.xlu0 %799, %v751
        %v801 = vpop.permute.xlu0 %800
        %802 = vset.pattern.permute.xlu0 0
        %803 = vperm.xlu0 %802, %v753
        %v804 = vpop.permute.xlu0 %803
        %805 = vset.pattern.permute.xlu0 0
        %806 = vperm.xlu0 %805, %v755
        %v807 = vpop.permute.xlu0 %806
        %808 = vset.pattern.permute.xlu0 0
        %809 = vperm.xlu0 %808, %v757
        %v810 = vpop.permute.xlu0 %809
        %811 = vset.pattern.permute.xlu0 0
        %812 = vperm.xlu0 %811, %v759
        %v813 = vpop.permute.xlu0 %812
        %814 = vset.pattern.permute.xlu0 0
        %815 = vperm.xlu0 %814, %v761
        %v816 = vpop.permute.xlu0 %815
        %817 = vset.pattern.permute.xlu0 0
        %818 = vperm.xlu0 %817, %v763
        %v819 = vpop.permute.xlu0 %818
        %820 = vset.pattern.permute.xlu0 0
        %821 = vperm.xlu0 %820, %v765
        %v822 = vpop.permute.xlu0 %821
        %823 = vset.pattern.permute.xlu0 0
        %824 = vperm.xlu0 %823, %v767
        %v825 = vpop.permute.xlu0 %824
        %826 = vset.pattern.permute.xlu0 0
        %827 = vperm.xlu0 %826, %v769
        %v828 = vpop.permute.xlu0 %827
        %829 = vset.pattern.permute.xlu0 0
        %830 = vperm.xlu0 %829, %v771
        %v831 = vpop.permute.xlu0 %830
        %832 = vset.pattern.permute.xlu0 0
        %833 = vperm.xlu0 %832, %v773
        %v834 = vpop.permute.xlu0 %833
        %835 = vset.pattern.permute.xlu0 0
        %836 = vperm.xlu0 %835, %v775
        %v837 = vpop.permute.xlu0 %836
        %838 = vset.pattern.permute.xlu0 0
        %839 = vperm.xlu0 %838, %v777
        %v840 = vpop.permute.xlu0 %839
        %841 = vset.pattern.permute.xlu0 0
        %842 = vperm.xlu0 %841, %v779
        %v843 = vpop.permute.xlu0 %842
        %v844 = vlaneseq
        %v845 = vshrl.u32 %v844, 7
        %v846 = vsub.s32 %v555, %v845
        %v847 = vrot.slane %v798, %v846
        %v848 = vlaneseq
        %v849 = vshrl.u32 %v848, 7
        %v850 = vsub.s32 %v555, %v849
        %v851 = vrot.slane %v801, %v850
        %v852 = vlaneseq
        %v853 = vshrl.u32 %v852, 7
        %v854 = vsub.s32 %v555, %v853
        %v855 = vrot.slane %v804, %v854
        %v856 = vlaneseq
        %v857 = vshrl.u32 %v856, 7
        %v858 = vsub.s32 %v555, %v857
        %v859 = vrot.slane %v807, %v858
        %v860 = vlaneseq
        %v861 = vshrl.u32 %v860, 7
        %v862 = vsub.s32 %v555, %v861
        %v863 = vrot.slane %v810, %v862
        %v864 = vlaneseq
        %v865 = vshrl.u32 %v864, 7
        %v866 = vsub.s32 %v555, %v865
        %v867 = vrot.slane %v813, %v866
        %v868 = vlaneseq
        %v869 = vshrl.u32 %v868, 7
        %v870 = vsub.s32 %v555, %v869
        %v871 = vrot.slane %v816, %v870
        %v872 = vlaneseq
        %v873 = vshrl.u32 %v872, 7
        %v874 = vsub.s32 %v555, %v873
        %v875 = vrot.slane %v819, %v874
        %v876 = vlaneseq
        %v877 = vshrl.u32 %v876, 7
        %v878 = vsub.s32 %v555, %v877
        %v879 = vrot.slane %v822, %v878
        %v880 = vlaneseq
        %v881 = vshrl.u32 %v880, 7
        %v882 = vsub.s32 %v555, %v881
        %v883 = vrot.slane %v825, %v882
        %v884 = vlaneseq
        %v885 = vshrl.u32 %v884, 7
        %v886 = vsub.s32 %v555, %v885
        %v887 = vrot.slane %v828, %v886
        %v888 = vlaneseq
        %v889 = vshrl.u32 %v888, 7
        %v890 = vsub.s32 %v555, %v889
        %v891 = vrot.slane %v831, %v890
        %v892 = vlaneseq
        %v893 = vshrl.u32 %v892, 7
        %v894 = vsub.s32 %v555, %v893
        %v895 = vrot.slane %v834, %v894
        %v896 = vlaneseq
        %v897 = vshrl.u32 %v896, 7
        %v898 = vsub.s32 %v555, %v897
        %v899 = vrot.slane %v837, %v898
        %v900 = vlaneseq
        %v901 = vshrl.u32 %v900, 7
        %v902 = vsub.s32 %v555, %v901
        %v903 = vrot.slane %v840, %v902
        %v904 = vlaneseq
        %v905 = vshrl.u32 %v904, 7
        %v906 = vsub.s32 %v555, %v905
        %v907 = vrot.slane %v843, %v906
        %v908 = vsel %vm620, %v851, %v847
        %v909 = vsel %vm622, %v855, %v908
        %v910 = vsel %vm624, %v859, %v909
        %v911 = vsel %vm626, %v863, %v910
        %v912 = vsel %vm628, %v867, %v911
        %v913 = vsel %vm630, %v871, %v912
        %v914 = vsel %vm632, %v875, %v913
        %v915 = vsel %vm620, %v883, %v879
        %v916 = vsel %vm622, %v887, %v915
        %v917 = vsel %vm624, %v891, %v916
        %v918 = vsel %vm626, %v895, %v917
        %v919 = vsel %vm628, %v899, %v918
        %v920 = vsel %vm630, %v903, %v919
        %v921 = vsel %vm632, %v907, %v920
        %v924 = vsel %vm643, %v914, 0.0
        %925 = vadd.xlane.f32.xlu0 %v924
        %v926 = vpop.xlane.xlu0 %925
        %v927 = vsel %vm643, %v921, 0.0
        %928 = vadd.xlane.f32.xlu0 %v927
        %v929 = vpop.xlane.xlu0 %928
        %v930 = vrcp.pop %v926
        %v931 = vrcp.pop %v929
        %v934 = vlaneseq
        %v935 = vshrl.u32 %v934, 7
        %v936 = vsub.s32 0, %v935
        %v937 = vrot.slane %v930, %v936
        %v938 = vlaneseq
        %v939 = vshrl.u32 %v938, 7
        %v940 = vsub.s32 1, %v939
        %v941 = vrot.slane %v930, %v940
        %v942 = vlaneseq
        %v943 = vshrl.u32 %v942, 7
        %v944 = vsub.s32 2, %v943
        %v945 = vrot.slane %v930, %v944
        %v946 = vlaneseq
        %v947 = vshrl.u32 %v946, 7
        %v948 = vsub.s32 3, %v947
        %v949 = vrot.slane %v930, %v948
        %v950 = vlaneseq
        %v951 = vshrl.u32 %v950, 7
        %v952 = vsub.s32 4, %v951
        %v953 = vrot.slane %v930, %v952
        %v954 = vlaneseq
        %v955 = vshrl.u32 %v954, 7
        %v956 = vsub.s32 5, %v955
        %v957 = vrot.slane %v930, %v956
        %v958 = vlaneseq
        %v959 = vshrl.u32 %v958, 7
        %v960 = vsub.s32 6, %v959
        %v961 = vrot.slane %v930, %v960
        %v962 = vlaneseq
        %v963 = vshrl.u32 %v962, 7
        %v964 = vsub.s32 7, %v963
        %v965 = vrot.slane %v930, %v964
        %v966 = vlaneseq
        %v967 = vshrl.u32 %v966, 7
        %v968 = vsub.s32 0, %v967
        %v969 = vrot.slane %v931, %v968
        %v970 = vlaneseq
        %v971 = vshrl.u32 %v970, 7
        %v972 = vsub.s32 1, %v971
        %v973 = vrot.slane %v931, %v972
        %v974 = vlaneseq
        %v975 = vshrl.u32 %v974, 7
        %v976 = vsub.s32 2, %v975
        %v977 = vrot.slane %v931, %v976
        %v978 = vlaneseq
        %v979 = vshrl.u32 %v978, 7
        %v980 = vsub.s32 3, %v979
        %v981 = vrot.slane %v931, %v980
        %v982 = vlaneseq
        %v983 = vshrl.u32 %v982, 7
        %v984 = vsub.s32 4, %v983
        %v985 = vrot.slane %v931, %v984
        %v986 = vlaneseq
        %v987 = vshrl.u32 %v986, 7
        %v988 = vsub.s32 5, %v987
        %v989 = vrot.slane %v931, %v988
        %v990 = vlaneseq
        %v991 = vshrl.u32 %v990, 7
        %v992 = vsub.s32 6, %v991
        %v993 = vrot.slane %v931, %v992
        %v994 = vlaneseq
        %v995 = vshrl.u32 %v994, 7
        %v996 = vsub.s32 7, %v995
        %v997 = vrot.slane %v931, %v996
        %v1014 = vmul.f32 %v749, %v937
        %v1015 = vmul.f32 %v751, %v941
        %v1016 = vmul.f32 %v753, %v945
        %v1017 = vmul.f32 %v755, %v949
        %v1018 = vmul.f32 %v757, %v953
        %v1019 = vmul.f32 %v759, %v957
        %v1020 = vmul.f32 %v761, %v961
        %v1021 = vmul.f32 %v763, %v965
        %v1022 = vmul.f32 %v765, %v969
        %v1023 = vmul.f32 %v767, %v973
        %v1024 = vmul.f32 %v769, %v977
        %v1025 = vmul.f32 %v771, %v981
        %v1026 = vmul.f32 %v773, %v985
        %v1027 = vmul.f32 %v775, %v989
        %v1028 = vmul.f32 %v777, %v993
        %v1029 = vmul.f32 %v779, %v997
        %1031 = vset.pattern.permute.xlu0 0
        %1032 = vperm.xlu0 %1031, %v1014
        %v1033 = vpop.permute.xlu0 %1032
        %1036 = vset.pattern.permute.xlu0 0
        %1037 = vperm.xlu0 %1036, %v1015
        %v1038 = vpop.permute.xlu0 %1037
        %1041 = vset.pattern.permute.xlu0 0
        %1042 = vperm.xlu0 %1041, %v1016
        %v1043 = vpop.permute.xlu0 %1042
        %1046 = vset.pattern.permute.xlu0 0
        %1047 = vperm.xlu0 %1046, %v1017
        %v1048 = vpop.permute.xlu0 %1047
        %1051 = vset.pattern.permute.xlu0 0
        %1052 = vperm.xlu0 %1051, %v1018
        %v1053 = vpop.permute.xlu0 %1052
        %1056 = vset.pattern.permute.xlu0 0
        %1057 = vperm.xlu0 %1056, %v1019
        %v1058 = vpop.permute.xlu0 %1057
        %1061 = vset.pattern.permute.xlu0 0
        %1062 = vperm.xlu0 %1061, %v1020
        %v1063 = vpop.permute.xlu0 %1062
        %1066 = vset.pattern.permute.xlu0 0
        %1067 = vperm.xlu0 %1066, %v1021
        %v1068 = vpop.permute.xlu0 %1067
        %1071 = vset.pattern.permute.xlu0 0
        %1072 = vperm.xlu0 %1071, %v1022
        %v1073 = vpop.permute.xlu0 %1072
        %1076 = vset.pattern.permute.xlu0 0
        %1077 = vperm.xlu0 %1076, %v1023
        %v1078 = vpop.permute.xlu0 %1077
        %1081 = vset.pattern.permute.xlu0 0
        %1082 = vperm.xlu0 %1081, %v1024
        %v1083 = vpop.permute.xlu0 %1082
        %1086 = vset.pattern.permute.xlu0 0
        %1087 = vperm.xlu0 %1086, %v1025
        %v1088 = vpop.permute.xlu0 %1087
        %1091 = vset.pattern.permute.xlu0 0
        %1092 = vperm.xlu0 %1091, %v1026
        %v1093 = vpop.permute.xlu0 %1092
        %1096 = vset.pattern.permute.xlu0 0
        %1097 = vperm.xlu0 %1096, %v1027
        %v1098 = vpop.permute.xlu0 %1097
        %1101 = vset.pattern.permute.xlu0 0
        %1102 = vperm.xlu0 %1101, %v1028
        %v1103 = vpop.permute.xlu0 %1102
        %1106 = vset.pattern.permute.xlu0 0
        %1107 = vperm.xlu0 %1106, %v1029
        %v1108 = vpop.permute.xlu0 %1107
        %v1110 = vmul.f32 %v343, %v1033
        %v1111 = vmul.f32 %v344, %v1033
        %v1112 = vmul.f32 %v345, %v1033
        %v1113 = vmul.f32 %v346, %v1038
        %v1114 = vmul.f32 %v347, %v1038
        %v1115 = vmul.f32 %v348, %v1038
        %v1116 = vmul.f32 %v349, %v1043
        %v1117 = vmul.f32 %v350, %v1043
        %v1118 = vmul.f32 %v351, %v1043
        %v1119 = vmul.f32 %v352, %v1048
        %v1120 = vmul.f32 %v353, %v1048
        %v1121 = vmul.f32 %v354, %v1048
        %v1122 = vmul.f32 %v355, %v1053
        %v1123 = vmul.f32 %v356, %v1053
        %v1124 = vmul.f32 %v357, %v1053
        %v1125 = vmul.f32 %v358, %v1058
        %v1126 = vmul.f32 %v359, %v1058
        %v1127 = vmul.f32 %v360, %v1058
        %v1128 = vmul.f32 %v361, %v1063
        %v1129 = vmul.f32 %v362, %v1063
        %v1130 = vmul.f32 %v363, %v1063
        %v1131 = vmul.f32 %v364, %v1068
        %v1132 = vmul.f32 %v365, %v1068
        %v1133 = vmul.f32 %v366, %v1068
        %v1134 = vmul.f32 %v367, %v1073
        %v1135 = vmul.f32 %v368, %v1073
        %v1136 = vmul.f32 %v369, %v1073
        %v1137 = vmul.f32 %v370, %v1078
        %v1138 = vmul.f32 %v371, %v1078
        %v1139 = vmul.f32 %v372, %v1078
        %v1140 = vmul.f32 %v373, %v1083
        %v1141 = vmul.f32 %v374, %v1083
        %v1142 = vmul.f32 %v375, %v1083
        %v1143 = vmul.f32 %v376, %v1088
        %v1144 = vmul.f32 %v377, %v1088
        %v1145 = vmul.f32 %v378, %v1088
        %v1146 = vmul.f32 %v379, %v1093
        %v1147 = vmul.f32 %v380, %v1093
        %v1148 = vmul.f32 %v381, %v1093
        %v1149 = vmul.f32 %v382, %v1098
        %v1150 = vmul.f32 %v383, %v1098
        %v1151 = vmul.f32 %v384, %v1098
        %v1152 = vmul.f32 %v385, %v1103
        %v1153 = vmul.f32 %v386, %v1103
        %v1154 = vmul.f32 %v387, %v1103
        %v1155 = vmul.f32 %v388, %v1108
        %v1156 = vmul.f32 %v389, %v1108
        %v1157 = vmul.f32 %v390, %v1108
        %v1158 = vrot.slane %v1110, 4
        %v1159 = vadd.f32 %v1110, %v1158
        %v1160 = vrot.slane %v1159, 2
        %v1161 = vadd.f32 %v1159, %v1160
        %v1162 = vrot.slane %v1161, 1
        %v1163 = vadd.f32 %v1161, %v1162
        %v1164 = vrot.slane %v1111, 4
        %v1165 = vadd.f32 %v1111, %v1164
        %v1166 = vrot.slane %v1165, 2
        %v1167 = vadd.f32 %v1165, %v1166
        %v1168 = vrot.slane %v1167, 1
        %v1169 = vadd.f32 %v1167, %v1168
        %v1170 = vrot.slane %v1112, 4
        %v1171 = vadd.f32 %v1112, %v1170
        %v1172 = vrot.slane %v1171, 2
        %v1173 = vadd.f32 %v1171, %v1172
        %v1174 = vrot.slane %v1173, 1
        %v1175 = vadd.f32 %v1173, %v1174
        %v1176 = vrot.slane %v1113, 4
        %v1177 = vadd.f32 %v1113, %v1176
        %v1178 = vrot.slane %v1177, 2
        %v1179 = vadd.f32 %v1177, %v1178
        %v1180 = vrot.slane %v1179, 1
        %v1181 = vadd.f32 %v1179, %v1180
        %v1182 = vrot.slane %v1114, 4
        %v1183 = vadd.f32 %v1114, %v1182
        %v1184 = vrot.slane %v1183, 2
        %v1185 = vadd.f32 %v1183, %v1184
        %v1186 = vrot.slane %v1185, 1
        %v1187 = vadd.f32 %v1185, %v1186
        %v1188 = vrot.slane %v1115, 4
        %v1189 = vadd.f32 %v1115, %v1188
        %v1190 = vrot.slane %v1189, 2
        %v1191 = vadd.f32 %v1189, %v1190
        %v1192 = vrot.slane %v1191, 1
        %v1193 = vadd.f32 %v1191, %v1192
        %v1194 = vrot.slane %v1116, 4
        %v1195 = vadd.f32 %v1116, %v1194
        %v1196 = vrot.slane %v1195, 2
        %v1197 = vadd.f32 %v1195, %v1196
        %v1198 = vrot.slane %v1197, 1
        %v1199 = vadd.f32 %v1197, %v1198
        %v1200 = vrot.slane %v1117, 4
        %v1201 = vadd.f32 %v1117, %v1200
        %v1202 = vrot.slane %v1201, 2
        %v1203 = vadd.f32 %v1201, %v1202
        %v1204 = vrot.slane %v1203, 1
        %v1205 = vadd.f32 %v1203, %v1204
        %v1206 = vrot.slane %v1118, 4
        %v1207 = vadd.f32 %v1118, %v1206
        %v1208 = vrot.slane %v1207, 2
        %v1209 = vadd.f32 %v1207, %v1208
        %v1210 = vrot.slane %v1209, 1
        %v1211 = vadd.f32 %v1209, %v1210
        %v1212 = vrot.slane %v1119, 4
        %v1213 = vadd.f32 %v1119, %v1212
        %v1214 = vrot.slane %v1213, 2
        %v1215 = vadd.f32 %v1213, %v1214
        %v1216 = vrot.slane %v1215, 1
        %v1217 = vadd.f32 %v1215, %v1216
        %v1218 = vrot.slane %v1120, 4
        %v1219 = vadd.f32 %v1120, %v1218
        %v1220 = vrot.slane %v1219, 2
        %v1221 = vadd.f32 %v1219, %v1220
        %v1222 = vrot.slane %v1221, 1
        %v1223 = vadd.f32 %v1221, %v1222
        %v1224 = vrot.slane %v1121, 4
        %v1225 = vadd.f32 %v1121, %v1224
        %v1226 = vrot.slane %v1225, 2
        %v1227 = vadd.f32 %v1225, %v1226
        %v1228 = vrot.slane %v1227, 1
        %v1229 = vadd.f32 %v1227, %v1228
        %v1230 = vrot.slane %v1122, 4
        %v1231 = vadd.f32 %v1122, %v1230
        %v1232 = vrot.slane %v1231, 2
        %v1233 = vadd.f32 %v1231, %v1232
        %v1234 = vrot.slane %v1233, 1
        %v1235 = vadd.f32 %v1233, %v1234
        %v1236 = vrot.slane %v1123, 4
        %v1237 = vadd.f32 %v1123, %v1236
        %v1238 = vrot.slane %v1237, 2
        %v1239 = vadd.f32 %v1237, %v1238
        %v1240 = vrot.slane %v1239, 1
        %v1241 = vadd.f32 %v1239, %v1240
        %v1242 = vrot.slane %v1124, 4
        %v1243 = vadd.f32 %v1124, %v1242
        %v1244 = vrot.slane %v1243, 2
        %v1245 = vadd.f32 %v1243, %v1244
        %v1246 = vrot.slane %v1245, 1
        %v1247 = vadd.f32 %v1245, %v1246
        %v1248 = vrot.slane %v1125, 4
        %v1249 = vadd.f32 %v1125, %v1248
        %v1250 = vrot.slane %v1249, 2
        %v1251 = vadd.f32 %v1249, %v1250
        %v1252 = vrot.slane %v1251, 1
        %v1253 = vadd.f32 %v1251, %v1252
        %v1254 = vrot.slane %v1126, 4
        %v1255 = vadd.f32 %v1126, %v1254
        %v1256 = vrot.slane %v1255, 2
        %v1257 = vadd.f32 %v1255, %v1256
        %v1258 = vrot.slane %v1257, 1
        %v1259 = vadd.f32 %v1257, %v1258
        %v1260 = vrot.slane %v1127, 4
        %v1261 = vadd.f32 %v1127, %v1260
        %v1262 = vrot.slane %v1261, 2
        %v1263 = vadd.f32 %v1261, %v1262
        %v1264 = vrot.slane %v1263, 1
        %v1265 = vadd.f32 %v1263, %v1264
        %v1266 = vrot.slane %v1128, 4
        %v1267 = vadd.f32 %v1128, %v1266
        %v1268 = vrot.slane %v1267, 2
        %v1269 = vadd.f32 %v1267, %v1268
        %v1270 = vrot.slane %v1269, 1
        %v1271 = vadd.f32 %v1269, %v1270
        %v1272 = vrot.slane %v1129, 4
        %v1273 = vadd.f32 %v1129, %v1272
        %v1274 = vrot.slane %v1273, 2
        %v1275 = vadd.f32 %v1273, %v1274
        %v1276 = vrot.slane %v1275, 1
        %v1277 = vadd.f32 %v1275, %v1276
        %v1278 = vrot.slane %v1130, 4
        %v1279 = vadd.f32 %v1130, %v1278
        %v1280 = vrot.slane %v1279, 2
        %v1281 = vadd.f32 %v1279, %v1280
        %v1282 = vrot.slane %v1281, 1
        %v1283 = vadd.f32 %v1281, %v1282
        %v1284 = vrot.slane %v1131, 4
        %v1285 = vadd.f32 %v1131, %v1284
        %v1286 = vrot.slane %v1285, 2
        %v1287 = vadd.f32 %v1285, %v1286
        %v1288 = vrot.slane %v1287, 1
        %v1289 = vadd.f32 %v1287, %v1288
        %v1290 = vrot.slane %v1132, 4
        %v1291 = vadd.f32 %v1132, %v1290
        %v1292 = vrot.slane %v1291, 2
        %v1293 = vadd.f32 %v1291, %v1292
        %v1294 = vrot.slane %v1293, 1
        %v1295 = vadd.f32 %v1293, %v1294
        %v1296 = vrot.slane %v1133, 4
        %v1297 = vadd.f32 %v1133, %v1296
        %v1298 = vrot.slane %v1297, 2
        %v1299 = vadd.f32 %v1297, %v1298
        %v1300 = vrot.slane %v1299, 1
        %v1301 = vadd.f32 %v1299, %v1300
        %v1302 = vrot.slane %v1134, 4
        %v1303 = vadd.f32 %v1134, %v1302
        %v1304 = vrot.slane %v1303, 2
        %v1305 = vadd.f32 %v1303, %v1304
        %v1306 = vrot.slane %v1305, 1
        %v1307 = vadd.f32 %v1305, %v1306
        %v1308 = vrot.slane %v1135, 4
        %v1309 = vadd.f32 %v1135, %v1308
        %v1310 = vrot.slane %v1309, 2
        %v1311 = vadd.f32 %v1309, %v1310
        %v1312 = vrot.slane %v1311, 1
        %v1313 = vadd.f32 %v1311, %v1312
        %v1314 = vrot.slane %v1136, 4
        %v1315 = vadd.f32 %v1136, %v1314
        %v1316 = vrot.slane %v1315, 2
        %v1317 = vadd.f32 %v1315, %v1316
        %v1318 = vrot.slane %v1317, 1
        %v1319 = vadd.f32 %v1317, %v1318
        %v1320 = vrot.slane %v1137, 4
        %v1321 = vadd.f32 %v1137, %v1320
        %v1322 = vrot.slane %v1321, 2
        %v1323 = vadd.f32 %v1321, %v1322
        %v1324 = vrot.slane %v1323, 1
        %v1325 = vadd.f32 %v1323, %v1324
        %v1326 = vrot.slane %v1138, 4
        %v1327 = vadd.f32 %v1138, %v1326
        %v1328 = vrot.slane %v1327, 2
        %v1329 = vadd.f32 %v1327, %v1328
        %v1330 = vrot.slane %v1329, 1
        %v1331 = vadd.f32 %v1329, %v1330
        %v1332 = vrot.slane %v1139, 4
        %v1333 = vadd.f32 %v1139, %v1332
        %v1334 = vrot.slane %v1333, 2
        %v1335 = vadd.f32 %v1333, %v1334
        %v1336 = vrot.slane %v1335, 1
        %v1337 = vadd.f32 %v1335, %v1336
        %v1338 = vrot.slane %v1140, 4
        %v1339 = vadd.f32 %v1140, %v1338
        %v1340 = vrot.slane %v1339, 2
        %v1341 = vadd.f32 %v1339, %v1340
        %v1342 = vrot.slane %v1341, 1
        %v1343 = vadd.f32 %v1341, %v1342
        %v1344 = vrot.slane %v1141, 4
        %v1345 = vadd.f32 %v1141, %v1344
        %v1346 = vrot.slane %v1345, 2
        %v1347 = vadd.f32 %v1345, %v1346
        %v1348 = vrot.slane %v1347, 1
        %v1349 = vadd.f32 %v1347, %v1348
        %v1350 = vrot.slane %v1142, 4
        %v1351 = vadd.f32 %v1142, %v1350
        %v1352 = vrot.slane %v1351, 2
        %v1353 = vadd.f32 %v1351, %v1352
        %v1354 = vrot.slane %v1353, 1
        %v1355 = vadd.f32 %v1353, %v1354
        %v1356 = vrot.slane %v1143, 4
        %v1357 = vadd.f32 %v1143, %v1356
        %v1358 = vrot.slane %v1357, 2
        %v1359 = vadd.f32 %v1357, %v1358
        %v1360 = vrot.slane %v1359, 1
        %v1361 = vadd.f32 %v1359, %v1360
        %v1362 = vrot.slane %v1144, 4
        %v1363 = vadd.f32 %v1144, %v1362
        %v1364 = vrot.slane %v1363, 2
        %v1365 = vadd.f32 %v1363, %v1364
        %v1366 = vrot.slane %v1365, 1
        %v1367 = vadd.f32 %v1365, %v1366
        %v1368 = vrot.slane %v1145, 4
        %v1369 = vadd.f32 %v1145, %v1368
        %v1370 = vrot.slane %v1369, 2
        %v1371 = vadd.f32 %v1369, %v1370
        %v1372 = vrot.slane %v1371, 1
        %v1373 = vadd.f32 %v1371, %v1372
        %v1374 = vrot.slane %v1146, 4
        %v1375 = vadd.f32 %v1146, %v1374
        %v1376 = vrot.slane %v1375, 2
        %v1377 = vadd.f32 %v1375, %v1376
        %v1378 = vrot.slane %v1377, 1
        %v1379 = vadd.f32 %v1377, %v1378
        %v1380 = vrot.slane %v1147, 4
        %v1381 = vadd.f32 %v1147, %v1380
        %v1382 = vrot.slane %v1381, 2
        %v1383 = vadd.f32 %v1381, %v1382
        %v1384 = vrot.slane %v1383, 1
        %v1385 = vadd.f32 %v1383, %v1384
        %v1386 = vrot.slane %v1148, 4
        %v1387 = vadd.f32 %v1148, %v1386
        %v1388 = vrot.slane %v1387, 2
        %v1389 = vadd.f32 %v1387, %v1388
        %v1390 = vrot.slane %v1389, 1
        %v1391 = vadd.f32 %v1389, %v1390
        %v1392 = vrot.slane %v1149, 4
        %v1393 = vadd.f32 %v1149, %v1392
        %v1394 = vrot.slane %v1393, 2
        %v1395 = vadd.f32 %v1393, %v1394
        %v1396 = vrot.slane %v1395, 1
        %v1397 = vadd.f32 %v1395, %v1396
        %v1398 = vrot.slane %v1150, 4
        %v1399 = vadd.f32 %v1150, %v1398
        %v1400 = vrot.slane %v1399, 2
        %v1401 = vadd.f32 %v1399, %v1400
        %v1402 = vrot.slane %v1401, 1
        %v1403 = vadd.f32 %v1401, %v1402
        %v1404 = vrot.slane %v1151, 4
        %v1405 = vadd.f32 %v1151, %v1404
        %v1406 = vrot.slane %v1405, 2
        %v1407 = vadd.f32 %v1405, %v1406
        %v1408 = vrot.slane %v1407, 1
        %v1409 = vadd.f32 %v1407, %v1408
        %v1410 = vrot.slane %v1152, 4
        %v1411 = vadd.f32 %v1152, %v1410
        %v1412 = vrot.slane %v1411, 2
        %v1413 = vadd.f32 %v1411, %v1412
        %v1414 = vrot.slane %v1413, 1
        %v1415 = vadd.f32 %v1413, %v1414
        %v1416 = vrot.slane %v1153, 4
        %v1417 = vadd.f32 %v1153, %v1416
        %v1418 = vrot.slane %v1417, 2
        %v1419 = vadd.f32 %v1417, %v1418
        %v1420 = vrot.slane %v1419, 1
        %v1421 = vadd.f32 %v1419, %v1420
        %v1422 = vrot.slane %v1154, 4
        %v1423 = vadd.f32 %v1154, %v1422
        %v1424 = vrot.slane %v1423, 2
        %v1425 = vadd.f32 %v1423, %v1424
        %v1426 = vrot.slane %v1425, 1
        %v1427 = vadd.f32 %v1425, %v1426
        %v1428 = vrot.slane %v1155, 4
        %v1429 = vadd.f32 %v1155, %v1428
        %v1430 = vrot.slane %v1429, 2
        %v1431 = vadd.f32 %v1429, %v1430
        %v1432 = vrot.slane %v1431, 1
        %v1433 = vadd.f32 %v1431, %v1432
        %v1434 = vrot.slane %v1156, 4
        %v1435 = vadd.f32 %v1156, %v1434
        %v1436 = vrot.slane %v1435, 2
        %v1437 = vadd.f32 %v1435, %v1436
        %v1438 = vrot.slane %v1437, 1
        %v1439 = vadd.f32 %v1437, %v1438
        %v1440 = vrot.slane %v1157, 4
        %v1441 = vadd.f32 %v1157, %v1440
        %v1442 = vrot.slane %v1441, 2
        %v1443 = vadd.f32 %v1441, %v1442
        %v1444 = vrot.slane %v1443, 1
        %v1445 = vadd.f32 %v1443, %v1444
        %v1446 = vpack.c.bf16 %v1163, %v1163
        %v1447 = vpack.c.bf16 %v1169, %v1169
        %v1448 = vpack.c.bf16 %v1175, %v1175
        %v1449 = vpack.c.bf16 %v1181, %v1181
        %v1450 = vpack.c.bf16 %v1187, %v1187
        %v1451 = vpack.c.bf16 %v1193, %v1193
        %v1452 = vpack.c.bf16 %v1199, %v1199
        %v1453 = vpack.c.bf16 %v1205, %v1205
        %v1454 = vpack.c.bf16 %v1211, %v1211
        %v1455 = vpack.c.bf16 %v1217, %v1217
        %v1456 = vpack.c.bf16 %v1223, %v1223
        %v1457 = vpack.c.bf16 %v1229, %v1229
        %v1458 = vpack.c.bf16 %v1235, %v1235
        %v1459 = vpack.c.bf16 %v1241, %v1241
        %v1460 = vpack.c.bf16 %v1247, %v1247
        %v1461 = vpack.c.bf16 %v1253, %v1253
        %v1462 = vpack.c.bf16 %v1259, %v1259
        %v1463 = vpack.c.bf16 %v1265, %v1265
        %v1464 = vpack.c.bf16 %v1271, %v1271
        %v1465 = vpack.c.bf16 %v1277, %v1277
        %v1466 = vpack.c.bf16 %v1283, %v1283
        %v1467 = vpack.c.bf16 %v1289, %v1289
        %v1468 = vpack.c.bf16 %v1295, %v1295
        %v1469 = vpack.c.bf16 %v1301, %v1301
        %v1470 = vpack.c.bf16 %v1307, %v1307
        %v1471 = vpack.c.bf16 %v1313, %v1313
        %v1472 = vpack.c.bf16 %v1319, %v1319
        %v1473 = vpack.c.bf16 %v1325, %v1325
        %v1474 = vpack.c.bf16 %v1331, %v1331
        %v1475 = vpack.c.bf16 %v1337, %v1337
        %v1476 = vpack.c.bf16 %v1343, %v1343
        %v1477 = vpack.c.bf16 %v1349, %v1349
        %v1478 = vpack.c.bf16 %v1355, %v1355
        %v1479 = vpack.c.bf16 %v1361, %v1361
        %v1480 = vpack.c.bf16 %v1367, %v1367
        %v1481 = vpack.c.bf16 %v1373, %v1373
        %v1482 = vpack.c.bf16 %v1379, %v1379
        %v1483 = vpack.c.bf16 %v1385, %v1385
        %v1484 = vpack.c.bf16 %v1391, %v1391
        %v1485 = vpack.c.bf16 %v1397, %v1397
        %v1486 = vpack.c.bf16 %v1403, %v1403
        %v1487 = vpack.c.bf16 %v1409, %v1409
        %v1488 = vpack.c.bf16 %v1415, %v1415
        %v1489 = vpack.c.bf16 %v1421, %v1421
        %v1490 = vpack.c.bf16 %v1427, %v1427
        %v1491 = vpack.c.bf16 %v1433, %v1433
        %v1492 = vpack.c.bf16 %v1439, %v1439
        %v1493 = vpack.c.bf16 %v1445, %v1445
        %v1494 = vld [vmem:[#allocation8] sm:$0xff]
        %v1495 = vld [vmem:[#allocation8 + $0x8] sm:$0xf]
        %v1496 = vld [vmem:[#allocation8 + $0xc] sm:$0xff]
        %v1497 = vld [vmem:[#allocation8 + $0x14] sm:$0xf]
        %v1498 = vld [vmem:[#allocation8 + $0x18] sm:$0xff]
        %v1499 = vld [vmem:[#allocation8 + $0x20] sm:$0xf]
        %v1500 = vld [vmem:[#allocation8 + $0x24] sm:$0xff]
        %v1501 = vld [vmem:[#allocation8 + $0x2c] sm:$0xf]
        %v1502 = vld [vmem:[#allocation8 + $0x30] sm:$0xff]
        %v1503 = vld [vmem:[#allocation8 + $0x38] sm:$0xf]
        %v1504 = vld [vmem:[#allocation8 + $0x3c] sm:$0xff]
        %v1505 = vld [vmem:[#allocation8 + $0x44] sm:$0xf]
        %v1506 = vld [vmem:[#allocation8 + $0x48] sm:$0xff]
        %v1507 = vld [vmem:[#allocation8 + $0x50] sm:$0xf]
        %v1508 = vld [vmem:[#allocation8 + $0x54] sm:$0xff]
        %v1509 = vld [vmem:[#allocation8 + $0x5c] sm:$0xf]
        %v1510 = vld [vmem:[#allocation8 + $0x60] sm:$0xff]
        %v1511 = vld [vmem:[#allocation8 + $0x68] sm:$0xf]
        %v1512 = vld [vmem:[#allocation8 + $0x6c] sm:$0xff]
        %v1513 = vld [vmem:[#allocation8 + $0x74] sm:$0xf]
        %v1514 = vld [vmem:[#allocation8 + $0x78] sm:$0xff]
        %v1515 = vld [vmem:[#allocation8 + $0x80] sm:$0xf]
        %v1516 = vld [vmem:[#allocation8 + $0x84] sm:$0xff]
        %v1517 = vld [vmem:[#allocation8 + $0x8c] sm:$0xf]
        %v1518 = vld [vmem:[#allocation8 + $0x90] sm:$0xff]
        %v1519 = vld [vmem:[#allocation8 + $0x98] sm:$0xf]
        %v1520 = vld [vmem:[#allocation8 + $0x9c] sm:$0xff]
        %v1521 = vld [vmem:[#allocation8 + $0xa4] sm:$0xf]
        %v1522 = vld [vmem:[#allocation8 + $0xa8] sm:$0xff]
        %v1523 = vld [vmem:[#allocation8 + $0xb0] sm:$0xf]
        %v1524 = vld [vmem:[#allocation8 + $0xb4] sm:$0xff]
        %v1525 = vld [vmem:[#allocation8 + $0xbc] sm:$0xf]
        %v1526 = vld [vmem:[#allocation8 + $0xc0] sm:$0xff]
        %v1527 = vld [vmem:[#allocation8 + $0xc8] sm:$0xf]
        %v1528 = vld [vmem:[#allocation8 + $0xcc] sm:$0xff]
        %v1529 = vld [vmem:[#allocation8 + $0xd4] sm:$0xf]
        %v1530 = vld [vmem:[#allocation8 + $0xd8] sm:$0xff]
        %v1531 = vld [vmem:[#allocation8 + $0xe0] sm:$0xf]
        %v1532 = vld [vmem:[#allocation8 + $0xe4] sm:$0xff]
        %v1533 = vld [vmem:[#allocation8 + $0xec] sm:$0xf]
        %v1534 = vld [vmem:[#allocation8 + $0xf0] sm:$0xff]
        %v1535 = vld [vmem:[#allocation8 + $0xf8] sm:$0xf]
        %v1536 = vld [vmem:[#allocation8 + $0xfc] sm:$0xff]
        %v1537 = vld [vmem:[#allocation8 + $0x104] sm:$0xf]
        %v1538 = vld [vmem:[#allocation8 + $0x108] sm:$0xff]
        %v1539 = vld [vmem:[#allocation8 + $0x110] sm:$0xf]
        %v1540 = vld [vmem:[#allocation8 + $0x114] sm:$0xff]
        %v1541 = vld [vmem:[#allocation8 + $0x11c] sm:$0xf]
        %v1542 = vld [vmem:[#allocation8 + $0x120] sm:$0xff]
        %v1543 = vld [vmem:[#allocation8 + $0x128] sm:$0xf]
        %v1544 = vld [vmem:[#allocation8 + $0x12c] sm:$0xff]
        %v1545 = vld [vmem:[#allocation8 + $0x134] sm:$0xf]
        %v1546 = vld [vmem:[#allocation8 + $0x138] sm:$0xff]
        %v1547 = vld [vmem:[#allocation8 + $0x140] sm:$0xf]
        %v1548 = vld [vmem:[#allocation8 + $0x144] sm:$0xff]
        %v1549 = vld [vmem:[#allocation8 + $0x14c] sm:$0xf]
        %v1550 = vld [vmem:[#allocation8 + $0x150] sm:$0xff]
        %v1551 = vld [vmem:[#allocation8 + $0x158] sm:$0xf]
        %v1552 = vld [vmem:[#allocation8 + $0x15c] sm:$0xff]
        %v1553 = vld [vmem:[#allocation8 + $0x164] sm:$0xf]
        %v1554 = vld [vmem:[#allocation8 + $0x168] sm:$0xff]
        %v1555 = vld [vmem:[#allocation8 + $0x170] sm:$0xf]
        %v1556 = vld [vmem:[#allocation8 + $0x174] sm:$0xff]
        %v1557 = vld [vmem:[#allocation8 + $0x17c] sm:$0xf]
        %v1558 = vld [vmem:[#allocation8 + $0x180] sm:$0xff]
        %v1559 = vld [vmem:[#allocation8 + $0x188] sm:$0xf]
        %v1560 = vld [vmem:[#allocation8 + $0x18c] sm:$0xff]
        %v1561 = vld [vmem:[#allocation8 + $0x194] sm:$0xf]
        %v1562 = vld [vmem:[#allocation8 + $0x198] sm:$0xff]
        %v1563 = vld [vmem:[#allocation8 + $0x1a0] sm:$0xf]
        %v1564 = vld [vmem:[#allocation8 + $0x1a4] sm:$0xff]
        %v1565 = vld [vmem:[#allocation8 + $0x1ac] sm:$0xf]
        %v1566 = vld [vmem:[#allocation8 + $0x1b0] sm:$0xff]
        %v1567 = vld [vmem:[#allocation8 + $0x1b8] sm:$0xf]
        %v1568 = vld [vmem:[#allocation8 + $0x1bc] sm:$0xff]
        %v1569 = vld [vmem:[#allocation8 + $0x1c4] sm:$0xf]
        %v1570 = vld [vmem:[#allocation8 + $0x1c8] sm:$0xff]
        %v1571 = vld [vmem:[#allocation8 + $0x1d0] sm:$0xf]
        %v1572 = vld [vmem:[#allocation8 + $0x1d4] sm:$0xff]
        %v1573 = vld [vmem:[#allocation8 + $0x1dc] sm:$0xf]
        %v1574 = vld [vmem:[#allocation8 + $0x1e0] sm:$0xff]
        %v1575 = vld [vmem:[#allocation8 + $0x1e8] sm:$0xf]
        %v1576 = vld [vmem:[#allocation8 + $0x1ec] sm:$0xff]
        %v1577 = vld [vmem:[#allocation8 + $0x1f4] sm:$0xf]
        %v1578 = vld [vmem:[#allocation8 + $0x1f8] sm:$0xff]
        %v1579 = vld [vmem:[#allocation8 + $0x200] sm:$0xf]
        %v1580 = vld [vmem:[#allocation8 + $0x204] sm:$0xff]
        %v1581 = vld [vmem:[#allocation8 + $0x20c] sm:$0xf]
        %v1582 = vld [vmem:[#allocation8 + $0x210] sm:$0xff]
        %v1583 = vld [vmem:[#allocation8 + $0x218] sm:$0xf]
        %v1584 = vld [vmem:[#allocation8 + $0x21c] sm:$0xff]
        %v1585 = vld [vmem:[#allocation8 + $0x224] sm:$0xf]
        %v1586 = vld [vmem:[#allocation8 + $0x228] sm:$0xff]
        %v1587 = vld [vmem:[#allocation8 + $0x230] sm:$0xf]
        %v1588 = vld [vmem:[#allocation8 + $0x234] sm:$0xff]
        %v1589 = vld [vmem:[#allocation8 + $0x23c] sm:$0xf]
        %v1590 = vld [vmem:[%s5] sm:$0x7]
        %v1592 = vlaneseq
        %v1593 = vshrl.u32 %v1592, 7
        %v1594 = vsub.s32 0, %v1593
        %v1595 = vrot.slane %v1590, %v1594
        %v1596 = vlaneseq
        %v1597 = vshrl.u32 %v1596, 7
        %v1598 = vsub.s32 1, %v1597
        %v1599 = vrot.slane %v1590, %v1598
        %v1600 = vlaneseq
        %v1601 = vshrl.u32 %v1600, 7
        %v1602 = vsub.s32 2, %v1601
        %v1603 = vrot.slane %v1590, %v1602
        %v1655 = vunpack.c.l.b16 %v1446
        %v1656 = vunpack.c.l.b16 %v1447
        %v1657 = vunpack.c.l.b16 %v1448
        %v1658 = vunpack.c.l.b16 %v1449
        %v1659 = vunpack.c.l.b16 %v1450
        %v1660 = vunpack.c.l.b16 %v1451
        %v1661 = vunpack.c.l.b16 %v1452
        %v1662 = vunpack.c.l.b16 %v1453
        %v1663 = vunpack.c.l.b16 %v1454
        %v1664 = vunpack.c.l.b16 %v1455
        %v1665 = vunpack.c.l.b16 %v1456
        %v1666 = vunpack.c.l.b16 %v1457
        %v1667 = vunpack.c.l.b16 %v1458
        %v1668 = vunpack.c.l.b16 %v1459
        %v1669 = vunpack.c.l.b16 %v1460
        %v1670 = vunpack.c.l.b16 %v1461
        %v1671 = vunpack.c.l.b16 %v1462
        %v1672 = vunpack.c.l.b16 %v1463
        %v1673 = vunpack.c.l.b16 %v1464
        %v1674 = vunpack.c.l.b16 %v1465
        %v1675 = vunpack.c.l.b16 %v1466
        %v1676 = vunpack.c.l.b16 %v1467
        %v1677 = vunpack.c.l.b16 %v1468
        %v1678 = vunpack.c.l.b16 %v1469
        %v1679 = vunpack.c.l.b16 %v1470
        %v1680 = vunpack.c.l.b16 %v1471
        %v1681 = vunpack.c.l.b16 %v1472
        %v1682 = vunpack.c.l.b16 %v1473
        %v1683 = vunpack.c.l.b16 %v1474
        %v1684 = vunpack.c.l.b16 %v1475
        %v1685 = vunpack.c.l.b16 %v1476
        %v1686 = vunpack.c.l.b16 %v1477
        %v1687 = vunpack.c.l.b16 %v1478
        %v1688 = vunpack.c.l.b16 %v1479
        %v1689 = vunpack.c.l.b16 %v1480
        %v1690 = vunpack.c.l.b16 %v1481
        %v1691 = vunpack.c.l.b16 %v1482
        %v1692 = vunpack.c.l.b16 %v1483
        %v1693 = vunpack.c.l.b16 %v1484
        %v1694 = vunpack.c.l.b16 %v1485
        %v1695 = vunpack.c.l.b16 %v1486
        %v1696 = vunpack.c.l.b16 %v1487
        %v1697 = vunpack.c.l.b16 %v1488
        %v1698 = vunpack.c.l.b16 %v1489
        %v1699 = vunpack.c.l.b16 %v1490
        %v1700 = vunpack.c.l.b16 %v1491
        %v1701 = vunpack.c.l.b16 %v1492
        %v1702 = vunpack.c.l.b16 %v1493
        %v1703 = vsel %vm620, %v1658, %v1655
        %v1704 = vsel %vm622, %v1661, %v1703
        %v1705 = vsel %vm624, %v1664, %v1704
        %v1706 = vsel %vm626, %v1667, %v1705
        %v1707 = vsel %vm628, %v1670, %v1706
        %v1708 = vsel %vm630, %v1673, %v1707
        %v1709 = vsel %vm632, %v1676, %v1708
        %v1710 = vsel %vm620, %v1659, %v1656
        %v1711 = vsel %vm622, %v1662, %v1710
        %v1712 = vsel %vm624, %v1665, %v1711
        %v1713 = vsel %vm626, %v1668, %v1712
        %v1714 = vsel %vm628, %v1671, %v1713
        %v1715 = vsel %vm630, %v1674, %v1714
        %v1716 = vsel %vm632, %v1677, %v1715
        %v1717 = vsel %vm620, %v1660, %v1657
        %v1718 = vsel %vm622, %v1663, %v1717
        %v1719 = vsel %vm624, %v1666, %v1718
        %v1720 = vsel %vm626, %v1669, %v1719
        %v1721 = vsel %vm628, %v1672, %v1720
        %v1722 = vsel %vm630, %v1675, %v1721
        %v1723 = vsel %vm632, %v1678, %v1722
        %v1724 = vsel %vm620, %v1682, %v1679
        %v1725 = vsel %vm622, %v1685, %v1724
        %v1726 = vsel %vm624, %v1688, %v1725
        %v1727 = vsel %vm626, %v1691, %v1726
        %v1728 = vsel %vm628, %v1694, %v1727
        %v1729 = vsel %vm630, %v1697, %v1728
        %v1730 = vsel %vm632, %v1700, %v1729
        %v1731 = vsel %vm620, %v1683, %v1680
        %v1732 = vsel %vm622, %v1686, %v1731
        %v1733 = vsel %vm624, %v1689, %v1732
        %v1734 = vsel %vm626, %v1692, %v1733
        %v1735 = vsel %vm628, %v1695, %v1734
        %v1736 = vsel %vm630, %v1698, %v1735
        %v1737 = vsel %vm632, %v1701, %v1736
        %v1738 = vsel %vm620, %v1684, %v1681
        %v1739 = vsel %vm622, %v1687, %v1738
        %v1740 = vsel %vm624, %v1690, %v1739
        %v1741 = vsel %vm626, %v1693, %v1740
        %v1742 = vsel %vm628, %v1696, %v1741
        %v1743 = vsel %vm630, %v1699, %v1742
        %v1744 = vsel %vm632, %v1702, %v1743
        %v1745 = vpack.c.b16 %v1730, %v1709
        %v1746 = vpack.c.b16 %v1737, %v1716
        %v1747 = vpack.c.b16 %v1744, %v1723
        %v1847 = vunpack.c.l.b16 %v1494
        %v1848 = vunpack.c.h.b16 %v1494
        %v1849 = vunpack.c.l.b16 %v1495
        %v1850 = vunpack.c.l.b16 %v1496
        %v1851 = vunpack.c.h.b16 %v1496
        %v1852 = vunpack.c.l.b16 %v1497
        %v1853 = vunpack.c.l.b16 %v1498
        %v1854 = vunpack.c.h.b16 %v1498
        %v1855 = vunpack.c.l.b16 %v1499
        %v1856 = vunpack.c.l.b16 %v1500
        %v1857 = vunpack.c.h.b16 %v1500
        %v1858 = vunpack.c.l.b16 %v1501
        %v1859 = vunpack.c.l.b16 %v1502
        %v1860 = vunpack.c.h.b16 %v1502
        %v1861 = vunpack.c.l.b16 %v1503
        %v1862 = vunpack.c.l.b16 %v1504
        %v1863 = vunpack.c.h.b16 %v1504
        %v1864 = vunpack.c.l.b16 %v1505
        %v1865 = vunpack.c.l.b16 %v1506
        %v1866 = vunpack.c.h.b16 %v1506
        %v1867 = vunpack.c.l.b16 %v1507
        %v1868 = vunpack.c.l.b16 %v1508
        %v1869 = vunpack.c.h.b16 %v1508
        %v1870 = vunpack.c.l.b16 %v1509
        %v1871 = vunpack.c.l.b16 %v1510
        %v1872 = vunpack.c.h.b16 %v1510
        %v1873 = vunpack.c.l.b16 %v1511
        %v1874 = vunpack.c.l.b16 %v1512
        %v1875 = vunpack.c.h.b16 %v1512
        %v1876 = vunpack.c.l.b16 %v1513
        %v1877 = vunpack.c.l.b16 %v1514
        %v1878 = vunpack.c.h.b16 %v1514
        %v1879 = vunpack.c.l.b16 %v1515
        %v1880 = vunpack.c.l.b16 %v1516
        %v1881 = vunpack.c.h.b16 %v1516
        %v1882 = vunpack.c.l.b16 %v1517
        %v1883 = vunpack.c.l.b16 %v1518
        %v1884 = vunpack.c.h.b16 %v1518
        %v1885 = vunpack.c.l.b16 %v1519
        %v1886 = vunpack.c.l.b16 %v1520
        %v1887 = vunpack.c.h.b16 %v1520
        %v1888 = vunpack.c.l.b16 %v1521
        %v1889 = vunpack.c.l.b16 %v1522
        %v1890 = vunpack.c.h.b16 %v1522
        %v1891 = vunpack.c.l.b16 %v1523
        %v1892 = vunpack.c.l.b16 %v1524
        %v1893 = vunpack.c.h.b16 %v1524
        %v1894 = vunpack.c.l.b16 %v1525
        %v1895 = vunpack.c.l.b16 %v1526
        %v1896 = vunpack.c.h.b16 %v1526
        %v1897 = vunpack.c.l.b16 %v1527
        %v1898 = vunpack.c.l.b16 %v1528
        %v1899 = vunpack.c.h.b16 %v1528
        %v1900 = vunpack.c.l.b16 %v1529
        %v1901 = vunpack.c.l.b16 %v1530
        %v1902 = vunpack.c.h.b16 %v1530
        %v1903 = vunpack.c.l.b16 %v1531
        %v1904 = vunpack.c.l.b16 %v1532
        %v1905 = vunpack.c.h.b16 %v1532
        %v1906 = vunpack.c.l.b16 %v1533
        %v1907 = vunpack.c.l.b16 %v1534
        %v1908 = vunpack.c.h.b16 %v1534
        %v1909 = vunpack.c.l.b16 %v1535
        %v1910 = vunpack.c.l.b16 %v1536
        %v1911 = vunpack.c.h.b16 %v1536
        %v1912 = vunpack.c.l.b16 %v1537
        %v1913 = vunpack.c.l.b16 %v1538
        %v1914 = vunpack.c.h.b16 %v1538
        %v1915 = vunpack.c.l.b16 %v1539
        %v1916 = vunpack.c.l.b16 %v1540
        %v1917 = vunpack.c.h.b16 %v1540
        %v1918 = vunpack.c.l.b16 %v1541
        %v1919 = vunpack.c.l.b16 %v1542
        %v1920 = vunpack.c.h.b16 %v1542
        %v1921 = vunpack.c.l.b16 %v1543
        %v1922 = vunpack.c.l.b16 %v1544
        %v1923 = vunpack.c.h.b16 %v1544
        %v1924 = vunpack.c.l.b16 %v1545
        %v1925 = vunpack.c.l.b16 %v1546
        %v1926 = vunpack.c.h.b16 %v1546
        %v1927 = vunpack.c.l.b16 %v1547
        %v1928 = vunpack.c.l.b16 %v1548
        %v1929 = vunpack.c.h.b16 %v1548
        %v1930 = vunpack.c.l.b16 %v1549
        %v1931 = vunpack.c.l.b16 %v1550
        %v1932 = vunpack.c.h.b16 %v1550
        %v1933 = vunpack.c.l.b16 %v1551
        %v1934 = vunpack.c.l.b16 %v1552
        %v1935 = vunpack.c.h.b16 %v1552
        %v1936 = vunpack.c.l.b16 %v1553
        %v1937 = vunpack.c.l.b16 %v1554
        %v1938 = vunpack.c.h.b16 %v1554
        %v1939 = vunpack.c.l.b16 %v1555
        %v1940 = vunpack.c.l.b16 %v1556
        %v1941 = vunpack.c.h.b16 %v1556
        %v1942 = vunpack.c.l.b16 %v1557
        %v1943 = vunpack.c.l.b16 %v1558
        %v1944 = vunpack.c.h.b16 %v1558
        %v1945 = vunpack.c.l.b16 %v1559
        %v1946 = vunpack.c.l.b16 %v1560
        %v1947 = vunpack.c.h.b16 %v1560
        %v1948 = vunpack.c.l.b16 %v1561
        %v1949 = vunpack.c.l.b16 %v1562
        %v1950 = vunpack.c.h.b16 %v1562
        %v1951 = vunpack.c.l.b16 %v1563
        %v1952 = vunpack.c.l.b16 %v1564
        %v1953 = vunpack.c.h.b16 %v1564
        %v1954 = vunpack.c.l.b16 %v1565
        %v1955 = vunpack.c.l.b16 %v1566
        %v1956 = vunpack.c.h.b16 %v1566
        %v1957 = vunpack.c.l.b16 %v1567
        %v1958 = vunpack.c.l.b16 %v1568
        %v1959 = vunpack.c.h.b16 %v1568
        %v1960 = vunpack.c.l.b16 %v1569
        %v1961 = vunpack.c.l.b16 %v1570
        %v1962 = vunpack.c.h.b16 %v1570
        %v1963 = vunpack.c.l.b16 %v1571
        %v1964 = vunpack.c.l.b16 %v1572
        %v1965 = vunpack.c.h.b16 %v1572
        %v1966 = vunpack.c.l.b16 %v1573
        %v1967 = vunpack.c.l.b16 %v1574
        %v1968 = vunpack.c.h.b16 %v1574
        %v1969 = vunpack.c.l.b16 %v1575
        %v1970 = vunpack.c.l.b16 %v1576
        %v1971 = vunpack.c.h.b16 %v1576
        %v1972 = vunpack.c.l.b16 %v1577
        %v1973 = vunpack.c.l.b16 %v1578
        %v1974 = vunpack.c.h.b16 %v1578
        %v1975 = vunpack.c.l.b16 %v1579
        %v1976 = vunpack.c.l.b16 %v1580
        %v1977 = vunpack.c.h.b16 %v1580
        %v1978 = vunpack.c.l.b16 %v1581
        %v1979 = vunpack.c.l.b16 %v1582
        %v1980 = vunpack.c.h.b16 %v1582
        %v1981 = vunpack.c.l.b16 %v1583
        %v1982 = vunpack.c.l.b16 %v1584
        %v1983 = vunpack.c.h.b16 %v1584
        %v1984 = vunpack.c.l.b16 %v1585
        %v1985 = vunpack.c.l.b16 %v1586
        %v1986 = vunpack.c.h.b16 %v1586
        %v1987 = vunpack.c.l.b16 %v1587
        %v1988 = vunpack.c.l.b16 %v1588
        %v1989 = vunpack.c.h.b16 %v1588
        %v1990 = vunpack.c.l.b16 %v1589
        %v1991 = vpack.c.b16 %v1850, %v1847
        %v1992 = vpack.c.b16 %v1851, %v1848
        %v1993 = vpack.c.b16 %v1852, %v1849
        %v1994 = vpack.c.b16 %v1856, %v1853
        %v1995 = vpack.c.b16 %v1857, %v1854
        %v1996 = vpack.c.b16 %v1858, %v1855
        %v1997 = vpack.c.b16 %v1862, %v1859
        %v1998 = vpack.c.b16 %v1863, %v1860
        %v1999 = vpack.c.b16 %v1864, %v1861
        %v2000 = vpack.c.b16 %v1868, %v1865
        %v2001 = vpack.c.b16 %v1869, %v1866
        %v2002 = vpack.c.b16 %v1870, %v1867
        %v2003 = vpack.c.b16 %v1874, %v1871
        %v2004 = vpack.c.b16 %v1875, %v1872
        %v2005 = vpack.c.b16 %v1876, %v1873
        %v2006 = vpack.c.b16 %v1880, %v1877
        %v2007 = vpack.c.b16 %v1881, %v1878
        %v2008 = vpack.c.b16 %v1882, %v1879
        %v2009 = vpack.c.b16 %v1886, %v1883
        %v2010 = vpack.c.b16 %v1887, %v1884
        %v2011 = vpack.c.b16 %v1888, %v1885
        %v2012 = vpack.c.b16 %v1892, %v1889
        %v2013 = vpack.c.b16 %v1893, %v1890
        %v2014 = vpack.c.b16 %v1894, %v1891
        %v2015 = vpack.c.b16 %v1898, %v1895
        %v2016 = vpack.c.b16 %v1899, %v1896
        %v2017 = vpack.c.b16 %v1900, %v1897
        %v2018 = vpack.c.b16 %v1904, %v1901
        %v2019 = vpack.c.b16 %v1905, %v1902
        %v2020 = vpack.c.b16 %v1906, %v1903
        %v2021 = vpack.c.b16 %v1910, %v1907
        %v2022 = vpack.c.b16 %v1911, %v1908
        %v2023 = vpack.c.b16 %v1912, %v1909
        %v2024 = vpack.c.b16 %v1916, %v1913
        %v2025 = vpack.c.b16 %v1917, %v1914
        %v2026 = vpack.c.b16 %v1918, %v1915
        %v2027 = vpack.c.b16 %v1922, %v1919
        %v2028 = vpack.c.b16 %v1923, %v1920
        %v2029 = vpack.c.b16 %v1924, %v1921
        %v2030 = vpack.c.b16 %v1928, %v1925
        %v2031 = vpack.c.b16 %v1929, %v1926
        %v2032 = vpack.c.b16 %v1930, %v1927
        %v2033 = vpack.c.b16 %v1934, %v1931
        %v2034 = vpack.c.b16 %v1935, %v1932
        %v2035 = vpack.c.b16 %v1936, %v1933
        %v2036 = vpack.c.b16 %v1940, %v1937
        %v2037 = vpack.c.b16 %v1941, %v1938
        %v2038 = vpack.c.b16 %v1942, %v1939
        %v2039 = vpack.c.b16 %v1946, %v1943
        %v2040 = vpack.c.b16 %v1947, %v1944
        %v2041 = vpack.c.b16 %v1948, %v1945
        %v2042 = vpack.c.b16 %v1952, %v1949
        %v2043 = vpack.c.b16 %v1953, %v1950
        %v2044 = vpack.c.b16 %v1954, %v1951
        %v2045 = vpack.c.b16 %v1958, %v1955
        %v2046 = vpack.c.b16 %v1959, %v1956
        %v2047 = vpack.c.b16 %v1960, %v1957
        %v2048 = vpack.c.b16 %v1964, %v1961
        %v2049 = vpack.c.b16 %v1965, %v1962
        %v2050 = vpack.c.b16 %v1966, %v1963
        %v2051 = vpack.c.b16 %v1970, %v1967
        %v2052 = vpack.c.b16 %v1971, %v1968
        %v2053 = vpack.c.b16 %v1972, %v1969
        %v2054 = vpack.c.b16 %v1976, %v1973
        %v2055 = vpack.c.b16 %v1977, %v1974
        %v2056 = vpack.c.b16 %v1978, %v1975
        %v2057 = vpack.c.b16 %v1982, %v1979
        %v2058 = vpack.c.b16 %v1983, %v1980
        %v2059 = vpack.c.b16 %v1984, %v1981
        %v2060 = vpack.c.b16 %v1988, %v1985
        %v2061 = vpack.c.b16 %v1989, %v1986
        %v2062 = vpack.c.b16 %v1990, %v1987
        %2135 = vmatprep.subr.bf16.mxu0 %v2013
        %2136 = vmatpush1.bf16.xpose.msra.mxu0 %v2012
        %2137 = vmatprep.subr.bf16.mxu0 %v2010
        %2138 = vmatpush1.bf16.xpose.msra.mxu0 %v2009
        %2139 = vmatprep.subr.bf16.mxu0 %v2007
        %2140 = vmatpush1.bf16.xpose.msra.mxu0 %v2006
        %2141 = vmatprep.subr.bf16.mxu0 %v2004
        %2142 = vmatpush1.bf16.xpose.msra.mxu0 %v2003
        %2143 = vmatprep.subr.bf16.mxu0 %v2001
        %2144 = vmatpush1.bf16.xpose.msra.mxu0 %v2000
        %2145 = vmatprep.subr.bf16.mxu0 %v1998
        %2146 = vmatpush1.bf16.xpose.msra.mxu0 %v1997
        %2147 = vmatprep.subr.bf16.mxu0 %v1995
        %2148 = vmatpush1.bf16.xpose.msra.mxu0 %v1994
        %2149 = vmatprep.subr.bf16.mxu0 %v1992
        %2150 = vmatpush1.bf16.xpose.msra.mxu0 %v1991
        %2151 = vmatprep.subr.bf16.mxu0 %v2037
        %2152 = vmatpush2.bf16.xpose.msra.mxu0 %v2036
        %2153 = vmatprep.subr.bf16.mxu0 %v2034
        %2154 = vmatpush2.bf16.xpose.msra.mxu0 %v2033
        %2155 = vmatprep.subr.bf16.mxu0 %v2031
        %2156 = vmatpush2.bf16.xpose.msra.mxu0 %v2030
        %2157 = vmatprep.subr.bf16.mxu0 %v2028
        %2158 = vmatpush2.bf16.xpose.msra.mxu0 %v2027
        %2159 = vmatprep.subr.bf16.mxu0 %v2025
        %2160 = vmatpush2.bf16.xpose.msra.mxu0 %v2024
        %2161 = vmatprep.subr.bf16.mxu0 %v2022
        %2162 = vmatpush2.bf16.xpose.msra.mxu0 %v2021
        %2163 = vmatprep.subr.bf16.mxu0 %v2019
        %2164 = vmatpush2.bf16.xpose.msra.mxu0 %v2018
        %2165 = vmatprep.subr.bf16.mxu0 %v2016
        %2166 = vmatpush2.bf16.xpose.msra.mxu0 %v2015
        %2167 = vmatprep.mubr.bf16.mxu0 %v1746
        %2168 = vmatmul.mubr.bf16.gmra.mxu0 %v1745
        %v2169 = vpop.f32.mrf.mxu0
        %v2170 = vadd.f32 %v1595, %v2169
        %v2171 = vpop.f32.mrf.mxu0
        %v2172 = vadd.f32 %v1599, %v2171
        %v2173 = vpop.f32.mrf.mxu0
        %v2174 = vadd.f32 %v1595, %v2173
        %v2175 = vpop.f32.mrf.mxu0
        %v2176 = vadd.f32 %v1599, %v2175
        %2177 = vdwg.mxu0
        %2178 = vmatprep.subr.bf16.mxu0 0
        %2179 = vmatpush1.bf16.xpose.msra.mxu0 %v2014
        %2180 = vmatprep.subr.bf16.mxu0 0
        %2181 = vmatpush1.bf16.xpose.msra.mxu0 %v2011
        %2182 = vmatprep.subr.bf16.mxu0 0
        %2183 = vmatpush1.bf16.xpose.msra.mxu0 %v2008
        %2184 = vmatprep.subr.bf16.mxu0 0
        %2185 = vmatpush1.bf16.xpose.msra.mxu0 %v2005
        %2186 = vmatprep.subr.bf16.mxu0 0
        %2187 = vmatpush1.bf16.xpose.msra.mxu0 %v2002
        %2188 = vmatprep.subr.bf16.mxu0 0
        %2189 = vmatpush1.bf16.xpose.msra.mxu0 %v1999
        %2190 = vmatprep.subr.bf16.mxu0 0
        %2191 = vmatpush1.bf16.xpose.msra.mxu0 %v1996
        %2192 = vmatprep.subr.bf16.mxu0 0
        %2193 = vmatpush1.bf16.xpose.msra.mxu0 %v1993
        %2194 = vmatprep.subr.bf16.mxu0 0
        %2195 = vmatpush2.bf16.xpose.msra.mxu0 %v2038
        %2196 = vmatprep.subr.bf16.mxu0 0
        %2197 = vmatpush2.bf16.xpose.msra.mxu0 %v2035
        %2198 = vmatprep.subr.bf16.mxu0 0
        %2199 = vmatpush2.bf16.xpose.msra.mxu0 %v2032
        %2200 = vmatprep.subr.bf16.mxu0 0
        %2201 = vmatpush2.bf16.xpose.msra.mxu0 %v2029
        %2202 = vmatprep.subr.bf16.mxu0 0
        %2203 = vmatpush2.bf16.xpose.msra.mxu0 %v2026
        %2204 = vmatprep.subr.bf16.mxu0 0
        %2205 = vmatpush2.bf16.xpose.msra.mxu0 %v2023
        %2206 = vmatprep.subr.bf16.mxu0 0
        %2207 = vmatpush2.bf16.xpose.msra.mxu0 %v2020
        %2208 = vmatprep.subr.bf16.mxu0 0
        %2209 = vmatpush2.bf16.xpose.msra.mxu0 %v2017
        %2210 = vmatprep.mubr.bf16.mxu0 0
        %2211 = vmatmul.mubr.bf16.gmra.mxu0 %v1747
        %v2212 = vpop.f32.mrf.mxu0
        %v2213 = vadd.f32 %v2170, %v2212
        %v2214 = vpop.f32.mrf.mxu0
        %v2215 = vadd.f32 %v2172, %v2214
        %v2216 = vpop.f32.mrf.mxu0
        %v2217 = vadd.f32 %v2174, %v2216
        %v2218 = vpop.f32.mrf.mxu0
        %v2219 = vadd.f32 %v2176, %v2218
        %2220 = vdwg.mxu0
        %2221 = vmatprep.subr.bf16.mxu0 %v2061
        %2222 = vmatpush1.bf16.xpose.msra.mxu0 %v2060
        %2223 = vmatprep.subr.bf16.mxu0 %v2058
        %2224 = vmatpush1.bf16.xpose.msra.mxu0 %v2057
        %2225 = vmatprep.subr.bf16.mxu0 %v2055
        %2226 = vmatpush1.bf16.xpose.msra.mxu0 %v2054
        %2227 = vmatprep.subr.bf16.mxu0 %v2052
        %2228 = vmatpush1.bf16.xpose.msra.mxu0 %v2051
        %2229 = vmatprep.subr.bf16.mxu0 %v2049
        %2230 = vmatpush1.bf16.xpose.msra.mxu0 %v2048
        %2231 = vmatprep.subr.bf16.mxu0 %v2046
        %2232 = vmatpush1.bf16.xpose.msra.mxu0 %v2045
        %2233 = vmatprep.subr.bf16.mxu0 %v2043
        %2234 = vmatpush1.bf16.xpose.msra.mxu0 %v2042
        %2235 = vmatprep.subr.bf16.mxu0 %v2040
        %2236 = vmatpush1.bf16.xpose.msra.mxu0 %v2039
        %2237 = vmatprep.subr.bf16.mxu0 0
        %2238 = vmatpush2.bf16.xpose.msra.mxu0 0
        %2239 = vmatprep.subr.bf16.mxu0 0
        %2240 = vmatpush2.bf16.xpose.msra.mxu0 0
        %2241 = vmatprep.subr.bf16.mxu0 0
        %2242 = vmatpush2.bf16.xpose.msra.mxu0 0
        %2243 = vmatprep.subr.bf16.mxu0 0
        %2244 = vmatpush2.bf16.xpose.msra.mxu0 0
        %2245 = vmatprep.subr.bf16.mxu0 0
        %2246 = vmatpush2.bf16.xpose.msra.mxu0 0
        %2247 = vmatprep.subr.bf16.mxu0 0
        %2248 = vmatpush2.bf16.xpose.msra.mxu0 0
        %2249 = vmatprep.subr.bf16.mxu0 0
        %2250 = vmatpush2.bf16.xpose.msra.mxu0 0
        %2251 = vmatprep.subr.bf16.mxu0 0
        %2252 = vmatpush2.bf16.xpose.msra.mxu0 0
        %2253 = vmatprep.mubr.bf16.mxu0 %v1746
        %2254 = vmatmul.mubr.bf16.gmra.mxu0 %v1745
        %v2255 = vpop.f32.mrf.mxu0
        %v2256 = vadd.f32 %v1603, %v2255
        %v2257 = vpop.f32.mrf.mxu0
        %v2258 = vpop.f32.mrf.mxu0
        %v2259 = vadd.f32 %v1603, %v2258
        %v2260 = vpop.f32.mrf.mxu0
        %2261 = vdwg.mxu0
        %2262 = vmatprep.subr.bf16.mxu0 0
        %2263 = vmatpush1.bf16.xpose.msra.mxu0 %v2062
        %2264 = vmatprep.subr.bf16.mxu0 0
        %2265 = vmatpush1.bf16.xpose.msra.mxu0 %v2059
        %2266 = vmatprep.subr.bf16.mxu0 0
        %2267 = vmatpush1.bf16.xpose.msra.mxu0 %v2056
        %2268 = vmatprep.subr.bf16.mxu0 0
        %2269 = vmatpush1.bf16.xpose.msra.mxu0 %v2053
        %2270 = vmatprep.subr.bf16.mxu0 0
        %2271 = vmatpush1.bf16.xpose.msra.mxu0 %v2050
        %2272 = vmatprep.subr.bf16.mxu0 0
        %2273 = vmatpush1.bf16.xpose.msra.mxu0 %v2047
        %2274 = vmatprep.subr.bf16.mxu0 0
        %2275 = vmatpush1.bf16.xpose.msra.mxu0 %v2044
        %2276 = vmatprep.subr.bf16.mxu0 0
        %2277 = vmatpush1.bf16.xpose.msra.mxu0 %v2041
        %2278 = vmatprep.subr.bf16.mxu0 0
        %2279 = vmatpush2.bf16.xpose.msra.mxu0 0
        %2280 = vmatprep.subr.bf16.mxu0 0
        %2281 = vmatpush2.bf16.xpose.msra.mxu0 0
        %2282 = vmatprep.subr.bf16.mxu0 0
        %2283 = vmatpush2.bf16.xpose.msra.mxu0 0
        %2284 = vmatprep.subr.bf16.mxu0 0
        %2285 = vmatpush2.bf16.xpose.msra.mxu0 0
        %2286 = vmatprep.subr.bf16.mxu0 0
        %2287 = vmatpush2.bf16.xpose.msra.mxu0 0
        %2288 = vmatprep.subr.bf16.mxu0 0
        %2289 = vmatpush2.bf16.xpose.msra.mxu0 0
        %2290 = vmatprep.subr.bf16.mxu0 0
        %2291 = vmatpush2.bf16.xpose.msra.mxu0 0
        %2292 = vmatprep.subr.bf16.mxu0 0
        %2293 = vmatpush2.bf16.xpose.msra.mxu0 0
        %2294 = vmatprep.mubr.bf16.mxu0 0
        %2295 = vmatmul.mubr.bf16.gmra.mxu0 %v1747
        %v2296 = vpop.f32.mrf.mxu0
        %v2297 = vadd.f32 %v2256, %v2296
        %v2298 = vpop.f32.mrf.mxu0
        %v2299 = vpop.f32.mrf.mxu0
        %v2300 = vadd.f32 %v2259, %v2299
        %v2301 = vpop.f32.mrf.mxu0
        %2302 = vdwg.mxu0
        %v2303 = vmul.f32 %v1163, %v1163
        %v2304 = vmul.f32 %v1169, %v1169
        %v2305 = vmul.f32 %v1175, %v1175
        %v2306 = vmul.f32 %v1181, %v1181
        %v2307 = vmul.f32 %v1187, %v1187
        %v2308 = vmul.f32 %v1193, %v1193
        %v2309 = vmul.f32 %v1199, %v1199
        %v2310 = vmul.f32 %v1205, %v1205
        %v2311 = vmul.f32 %v1211, %v1211
        %v2312 = vmul.f32 %v1217, %v1217
        %v2313 = vmul.f32 %v1223, %v1223
        %v2314 = vmul.f32 %v1229, %v1229
        %v2315 = vmul.f32 %v1235, %v1235
        %v2316 = vmul.f32 %v1241, %v1241
        %v2317 = vmul.f32 %v1247, %v1247
        %v2318 = vmul.f32 %v1253, %v1253
        %v2319 = vmul.f32 %v1259, %v1259
        %v2320 = vmul.f32 %v1265, %v1265
        %v2321 = vmul.f32 %v1271, %v1271
        %v2322 = vmul.f32 %v1277, %v1277
        %v2323 = vmul.f32 %v1283, %v1283
        %v2324 = vmul.f32 %v1289, %v1289
        %v2325 = vmul.f32 %v1295, %v1295
        %v2326 = vmul.f32 %v1301, %v1301
        %v2327 = vmul.f32 %v1307, %v1307
        %v2328 = vmul.f32 %v1313, %v1313
        %v2329 = vmul.f32 %v1319, %v1319
        %v2330 = vmul.f32 %v1325, %v1325
        %v2331 = vmul.f32 %v1331, %v1331
        %v2332 = vmul.f32 %v1337, %v1337
        %v2333 = vmul.f32 %v1343, %v1343
        %v2334 = vmul.f32 %v1349, %v1349
        %v2335 = vmul.f32 %v1355, %v1355
        %v2336 = vmul.f32 %v1361, %v1361
        %v2337 = vmul.f32 %v1367, %v1367
        %v2338 = vmul.f32 %v1373, %v1373
        %v2339 = vmul.f32 %v1379, %v1379
        %v2340 = vmul.f32 %v1385, %v1385
        %v2341 = vmul.f32 %v1391, %v1391
        %v2342 = vmul.f32 %v1397, %v1397
        %v2343 = vmul.f32 %v1403, %v1403
        %v2344 = vmul.f32 %v1409, %v1409
        %v2345 = vmul.f32 %v1415, %v1415
        %v2346 = vmul.f32 %v1421, %v1421
        %v2347 = vmul.f32 %v1427, %v1427
        %v2348 = vmul.f32 %v1433, %v1433
        %v2349 = vmul.f32 %v1439, %v1439
        %v2350 = vmul.f32 %v1445, %v1445
        %v2399 = vsel %vm620, %v2306, %v2303
        %v2400 = vsel %vm622, %v2309, %v2399
        %v2401 = vsel %vm624, %v2312, %v2400
        %v2402 = vsel %vm626, %v2315, %v2401
        %v2403 = vsel %vm628, %v2318, %v2402
        %v2404 = vsel %vm630, %v2321, %v2403
        %v2405 = vsel %vm632, %v2324, %v2404
        %v2406 = vsel %vm620, %v2307, %v2304
        %v2407 = vsel %vm622, %v2310, %v2406
        %v2408 = vsel %vm624, %v2313, %v2407
        %v2409 = vsel %vm626, %v2316, %v2408
        %v2410 = vsel %vm628, %v2319, %v2409
        %v2411 = vsel %vm630, %v2322, %v2410
        %v2412 = vsel %vm632, %v2325, %v2411
        %v2413 = vsel %vm620, %v2308, %v2305
        %v2414 = vsel %vm622, %v2311, %v2413
        %v2415 = vsel %vm624, %v2314, %v2414
        %v2416 = vsel %vm626, %v2317, %v2415
        %v2417 = vsel %vm628, %v2320, %v2416
        %v2418 = vsel %vm630, %v2323, %v2417
        %v2419 = vsel %vm632, %v2326, %v2418
        %v2420 = vsel %vm620, %v2330, %v2327
        %v2421 = vsel %vm622, %v2333, %v2420
        %v2422 = vsel %vm624, %v2336, %v2421
        %v2423 = vsel %vm626, %v2339, %v2422
        %v2424 = vsel %vm628, %v2342, %v2423
        %v2425 = vsel %vm630, %v2345, %v2424
        %v2426 = vsel %vm632, %v2348, %v2425
        %v2427 = vsel %vm620, %v2331, %v2328
        %v2428 = vsel %vm622, %v2334, %v2427
        %v2429 = vsel %vm624, %v2337, %v2428
        %v2430 = vsel %vm626, %v2340, %v2429
        %v2431 = vsel %vm628, %v2343, %v2430
        %v2432 = vsel %vm630, %v2346, %v2431
        %v2433 = vsel %vm632, %v2349, %v2432
        %v2434 = vsel %vm620, %v2332, %v2329
        %v2435 = vsel %vm622, %v2335, %v2434
        %v2436 = vsel %vm624, %v2338, %v2435
        %v2437 = vsel %vm626, %v2341, %v2436
        %v2438 = vsel %vm628, %v2344, %v2437
        %v2439 = vsel %vm630, %v2347, %v2438
        %v2440 = vsel %vm632, %v2350, %v2439
        %v2447 = vadd.f32 %v2405, %v2412
        %v2448 = vadd.f32 %v2447, %v2419
        %2449 = vadd.xlane.f32.xlu0 %v2448
        %v2450 = vpop.xlane.xlu0 %2449
        %v2451 = vadd.f32 %v2426, %v2433
        %v2452 = vadd.f32 %v2451, %v2440
        %2453 = vadd.xlane.f32.xlu0 %v2452
        %v2454 = vpop.xlane.xlu0 %2453
        %v2455 = vmax.f32 %v2450, 1e-12
        %v2456 = vmax.f32 %v2454, 1e-12
        %v2457 = vrsqrt.pop %v2455
        %v2458 = vrsqrt.pop %v2456
        %v2461 = vrot.slane %v2457, 1
        %v2462 = vrot.slane %v2457, 2
        %v2463 = vrot.slane %v2457, 3
        %v2464 = vrot.slane %v2457, 4
        %v2465 = vrot.slane %v2457, 5
        %v2466 = vrot.slane %v2457, 6
        %v2467 = vrot.slane %v2457, 7
        %v2468 = vrot.slane %v2458, 1
        %v2469 = vrot.slane %v2458, 2
        %v2470 = vrot.slane %v2458, 3
        %v2471 = vrot.slane %v2458, 4
        %v2472 = vrot.slane %v2458, 5
        %v2473 = vrot.slane %v2458, 6
        %v2474 = vrot.slane %v2458, 7
        %v2491 = vmul.f32 %v1163, %v2457
        %v2492 = vmul.f32 %v1169, %v2457
        %v2493 = vmul.f32 %v1175, %v2457
        %v2494 = vmul.f32 %v1181, %v2461
        %v2495 = vmul.f32 %v1187, %v2461
        %v2496 = vmul.f32 %v1193, %v2461
        %v2497 = vmul.f32 %v1199, %v2462
        %v2498 = vmul.f32 %v1205, %v2462
        %v2499 = vmul.f32 %v1211, %v2462
        %v2500 = vmul.f32 %v1217, %v2463
        %v2501 = vmul.f32 %v1223, %v2463
        %v2502 = vmul.f32 %v1229, %v2463
        %v2503 = vmul.f32 %v1235, %v2464
        %v2504 = vmul.f32 %v1241, %v2464
        %v2505 = vmul.f32 %v1247, %v2464
        %v2506 = vmul.f32 %v1253, %v2465
        %v2507 = vmul.f32 %v1259, %v2465
        %v2508 = vmul.f32 %v1265, %v2465
        %v2509 = vmul.f32 %v1271, %v2466
        %v2510 = vmul.f32 %v1277, %v2466
        %v2511 = vmul.f32 %v1283, %v2466
        %v2512 = vmul.f32 %v1289, %v2467
        %v2513 = vmul.f32 %v1295, %v2467
        %v2514 = vmul.f32 %v1301, %v2467
        %v2515 = vmul.f32 %v1307, %v2458
        %v2516 = vmul.f32 %v1313, %v2458
        %v2517 = vmul.f32 %v1319, %v2458
        %v2518 = vmul.f32 %v1325, %v2468
        %v2519 = vmul.f32 %v1331, %v2468
        %v2520 = vmul.f32 %v1337, %v2468
        %v2521 = vmul.f32 %v1343, %v2469
        %v2522 = vmul.f32 %v1349, %v2469
        %v2523 = vmul.f32 %v1355, %v2469
        %v2524 = vmul.f32 %v1361, %v2470
        %v2525 = vmul.f32 %v1367, %v2470
        %v2526 = vmul.f32 %v1373, %v2470
        %v2527 = vmul.f32 %v1379, %v2471
        %v2528 = vmul.f32 %v1385, %v2471
        %v2529 = vmul.f32 %v1391, %v2471
        %v2530 = vmul.f32 %v1397, %v2472
        %v2531 = vmul.f32 %v1403, %v2472
        %v2532 = vmul.f32 %v1409, %v2472
        %v2533 = vmul.f32 %v1415, %v2473
        %v2534 = vmul.f32 %v1421, %v2473
        %v2535 = vmul.f32 %v1427, %v2473
        %v2536 = vmul.f32 %v1433, %v2474
        %v2537 = vmul.f32 %v1439, %v2474
        %v2538 = vmul.f32 %v1445, %v2474
        %v2539 = vmul.f32 %v2213, %v2213
        %v2540 = vmul.f32 %v2215, %v2215
        %v2541 = vmul.f32 %v2297, %v2297
        %v2542 = vmul.f32 %v2217, %v2217
        %v2543 = vmul.f32 %v2219, %v2219
        %v2544 = vmul.f32 %v2300, %v2300
        %v2545 = vadd.f32 %v2539, %v2540
        %v2546 = vadd.f32 %v2545, %v2541
        %2547 = vadd.xlane.f32.xlu0 %v2546
        %v2548 = vpop.xlane.xlu0 %2547
        %v2549 = vadd.f32 %v2542, %v2543
        %v2550 = vadd.f32 %v2549, %v2544
        %2551 = vadd.xlane.f32.xlu0 %v2550
        %v2552 = vpop.xlane.xlu0 %2551
        %v2553 = vmax.f32 %v2548, 1e-12
        %v2554 = vmax.f32 %v2552, 1e-12
        %v2555 = vrsqrt.pop %v2553
        %v2556 = vrsqrt.pop %v2554
        %v2557 = vmul.f32 %v2213, %v2555
        %v2558 = vmul.f32 %v2215, %v2555
        %v2559 = vmul.f32 %v2297, %v2555
        %v2560 = vmul.f32 %v2217, %v2556
        %v2561 = vmul.f32 %v2219, %v2556
        %v2562 = vmul.f32 %v2300, %v2556
        %v2569 = vrot.slane %v2557, 1
        %v2570 = vrot.slane %v2558, 1
        %v2571 = vrot.slane %v2559, 1
        %v2572 = vrot.slane %v2557, 2
        %v2573 = vrot.slane %v2558, 2
        %v2574 = vrot.slane %v2559, 2
        %v2575 = vrot.slane %v2557, 3
        %v2576 = vrot.slane %v2558, 3
        %v2577 = vrot.slane %v2559, 3
        %v2578 = vrot.slane %v2557, 4
        %v2579 = vrot.slane %v2558, 4
        %v2580 = vrot.slane %v2559, 4
        %v2581 = vrot.slane %v2557, 5
        %v2582 = vrot.slane %v2558, 5
        %v2583 = vrot.slane %v2559, 5
        %v2584 = vrot.slane %v2557, 6
        %v2585 = vrot.slane %v2558, 6
        %v2586 = vrot.slane %v2559, 6
        %v2587 = vrot.slane %v2557, 7
        %v2588 = vrot.slane %v2558, 7
        %v2589 = vrot.slane %v2559, 7
        %v2590 = vrot.slane %v2560, 1
        %v2591 = vrot.slane %v2561, 1
        %v2592 = vrot.slane %v2562, 1
        %v2593 = vrot.slane %v2560, 2
        %v2594 = vrot.slane %v2561, 2
        %v2595 = vrot.slane %v2562, 2
        %v2596 = vrot.slane %v2560, 3
        %v2597 = vrot.slane %v2561, 3
        %v2598 = vrot.slane %v2562, 3
        %v2599 = vrot.slane %v2560, 4
        %v2600 = vrot.slane %v2561, 4
        %v2601 = vrot.slane %v2562, 4
        %v2602 = vrot.slane %v2560, 5
        %v2603 = vrot.slane %v2561, 5
        %v2604 = vrot.slane %v2562, 5
        %v2605 = vrot.slane %v2560, 6
        %v2606 = vrot.slane %v2561, 6
        %v2607 = vrot.slane %v2562, 6
        %v2608 = vrot.slane %v2560, 7
        %v2609 = vrot.slane %v2561, 7
        %v2610 = vrot.slane %v2562, 7
        %v2659 = vadd.f32 %v2491, %v2557
        %v2660 = vadd.f32 %v2492, %v2558
        %v2661 = vadd.f32 %v2493, %v2559
        %v2662 = vadd.f32 %v2494, %v2569
        %v2663 = vadd.f32 %v2495, %v2570
        %v2664 = vadd.f32 %v2496, %v2571
        %v2665 = vadd.f32 %v2497, %v2572
        %v2666 = vadd.f32 %v2498, %v2573
        %v2667 = vadd.f32 %v2499, %v2574
        %v2668 = vadd.f32 %v2500, %v2575
        %v2669 = vadd.f32 %v2501, %v2576
        %v2670 = vadd.f32 %v2502, %v2577
        %v2671 = vadd.f32 %v2503, %v2578
        %v2672 = vadd.f32 %v2504, %v2579
        %v2673 = vadd.f32 %v2505, %v2580
        %v2674 = vadd.f32 %v2506, %v2581
        %v2675 = vadd.f32 %v2507, %v2582
        %v2676 = vadd.f32 %v2508, %v2583
        %v2677 = vadd.f32 %v2509, %v2584
        %v2678 = vadd.f32 %v2510, %v2585
        %v2679 = vadd.f32 %v2511, %v2586
        %v2680 = vadd.f32 %v2512, %v2587
        %v2681 = vadd.f32 %v2513, %v2588
        %v2682 = vadd.f32 %v2514, %v2589
        %v2683 = vadd.f32 %v2515, %v2560
        %v2684 = vadd.f32 %v2516, %v2561
        %v2685 = vadd.f32 %v2517, %v2562
        %v2686 = vadd.f32 %v2518, %v2590
        %v2687 = vadd.f32 %v2519, %v2591
        %v2688 = vadd.f32 %v2520, %v2592
        %v2689 = vadd.f32 %v2521, %v2593
        %v2690 = vadd.f32 %v2522, %v2594
        %v2691 = vadd.f32 %v2523, %v2595
        %v2692 = vadd.f32 %v2524, %v2596
        %v2693 = vadd.f32 %v2525, %v2597
        %v2694 = vadd.f32 %v2526, %v2598
        %v2695 = vadd.f32 %v2527, %v2599
        %v2696 = vadd.f32 %v2528, %v2600
        %v2697 = vadd.f32 %v2529, %v2601
        %v2698 = vadd.f32 %v2530, %v2602
        %v2699 = vadd.f32 %v2531, %v2603
        %v2700 = vadd.f32 %v2532, %v2604
        %v2701 = vadd.f32 %v2533, %v2605
        %v2702 = vadd.f32 %v2534, %v2606
        %v2703 = vadd.f32 %v2535, %v2607
        %v2704 = vadd.f32 %v2536, %v2608
        %v2705 = vadd.f32 %v2537, %v2609
        %v2706 = vadd.f32 %v2538, %v2610
        %v2707 = vmul.f32 %v2659, %v2659
        %v2708 = vmul.f32 %v2660, %v2660
        %v2709 = vmul.f32 %v2661, %v2661
        %v2710 = vmul.f32 %v2662, %v2662
        %v2711 = vmul.f32 %v2663, %v2663
        %v2712 = vmul.f32 %v2664, %v2664
        %v2713 = vmul.f32 %v2665, %v2665
        %v2714 = vmul.f32 %v2666, %v2666
        %v2715 = vmul.f32 %v2667, %v2667
        %v2716 = vmul.f32 %v2668, %v2668
        %v2717 = vmul.f32 %v2669, %v2669
        %v2718 = vmul.f32 %v2670, %v2670
        %v2719 = vmul.f32 %v2671, %v2671
        %v2720 = vmul.f32 %v2672, %v2672
        %v2721 = vmul.f32 %v2673, %v2673
        %v2722 = vmul.f32 %v2674, %v2674
        %v2723 = vmul.f32 %v2675, %v2675
        %v2724 = vmul.f32 %v2676, %v2676
        %v2725 = vmul.f32 %v2677, %v2677
        %v2726 = vmul.f32 %v2678, %v2678
        %v2727 = vmul.f32 %v2679, %v2679
        %v2728 = vmul.f32 %v2680, %v2680
        %v2729 = vmul.f32 %v2681, %v2681
        %v2730 = vmul.f32 %v2682, %v2682
        %v2731 = vmul.f32 %v2683, %v2683
        %v2732 = vmul.f32 %v2684, %v2684
        %v2733 = vmul.f32 %v2685, %v2685
        %v2734 = vmul.f32 %v2686, %v2686
        %v2735 = vmul.f32 %v2687, %v2687
        %v2736 = vmul.f32 %v2688, %v2688
        %v2737 = vmul.f32 %v2689, %v2689
        %v2738 = vmul.f32 %v2690, %v2690
        %v2739 = vmul.f32 %v2691, %v2691
        %v2740 = vmul.f32 %v2692, %v2692
        %v2741 = vmul.f32 %v2693, %v2693
        %v2742 = vmul.f32 %v2694, %v2694
        %v2743 = vmul.f32 %v2695, %v2695
        %v2744 = vmul.f32 %v2696, %v2696
        %v2745 = vmul.f32 %v2697, %v2697
        %v2746 = vmul.f32 %v2698, %v2698
        %v2747 = vmul.f32 %v2699, %v2699
        %v2748 = vmul.f32 %v2700, %v2700
        %v2749 = vmul.f32 %v2701, %v2701
        %v2750 = vmul.f32 %v2702, %v2702
        %v2751 = vmul.f32 %v2703, %v2703
        %v2752 = vmul.f32 %v2704, %v2704
        %v2753 = vmul.f32 %v2705, %v2705
        %v2754 = vmul.f32 %v2706, %v2706
        %v2803 = vrot.slane %v2710, 7
        %v2804 = vsel %vm620, %v2803, %v2707
        %v2805 = vrot.slane %v2713, 6
        %v2806 = vsel %vm622, %v2805, %v2804
        %v2807 = vrot.slane %v2716, 5
        %v2808 = vsel %vm624, %v2807, %v2806
        %v2809 = vrot.slane %v2719, 4
        %v2810 = vsel %vm626, %v2809, %v2808
        %v2811 = vrot.slane %v2722, 3
        %v2812 = vsel %vm628, %v2811, %v2810
        %v2813 = vrot.slane %v2725, 2
        %v2814 = vsel %vm630, %v2813, %v2812
        %v2815 = vrot.slane %v2728, 1
        %v2816 = vsel %vm632, %v2815, %v2814
        %v2817 = vrot.slane %v2711, 7
        %v2818 = vsel %vm620, %v2817, %v2708
        %v2819 = vrot.slane %v2714, 6
        %v2820 = vsel %vm622, %v2819, %v2818
        %v2821 = vrot.slane %v2717, 5
        %v2822 = vsel %vm624, %v2821, %v2820
        %v2823 = vrot.slane %v2720, 4
        %v2824 = vsel %vm626, %v2823, %v2822
        %v2825 = vrot.slane %v2723, 3
        %v2826 = vsel %vm628, %v2825, %v2824
        %v2827 = vrot.slane %v2726, 2
        %v2828 = vsel %vm630, %v2827, %v2826
        %v2829 = vrot.slane %v2729, 1
        %v2830 = vsel %vm632, %v2829, %v2828
        %v2831 = vrot.slane %v2712, 7
        %v2832 = vsel %vm620, %v2831, %v2709
        %v2833 = vrot.slane %v2715, 6
        %v2834 = vsel %vm622, %v2833, %v2832
        %v2835 = vrot.slane %v2718, 5
        %v2836 = vsel %vm624, %v2835, %v2834
        %v2837 = vrot.slane %v2721, 4
        %v2838 = vsel %vm626, %v2837, %v2836
        %v2839 = vrot.slane %v2724, 3
        %v2840 = vsel %vm628, %v2839, %v2838
        %v2841 = vrot.slane %v2727, 2
        %v2842 = vsel %vm630, %v2841, %v2840
        %v2843 = vrot.slane %v2730, 1
        %v2844 = vsel %vm632, %v2843, %v2842
        %v2845 = vrot.slane %v2734, 7
        %v2846 = vsel %vm620, %v2845, %v2731
        %v2847 = vrot.slane %v2737, 6
        %v2848 = vsel %vm622, %v2847, %v2846
        %v2849 = vrot.slane %v2740, 5
        %v2850 = vsel %vm624, %v2849, %v2848
        %v2851 = vrot.slane %v2743, 4
        %v2852 = vsel %vm626, %v2851, %v2850
        %v2853 = vrot.slane %v2746, 3
        %v2854 = vsel %vm628, %v2853, %v2852
        %v2855 = vrot.slane %v2749, 2
        %v2856 = vsel %vm630, %v2855, %v2854
        %v2857 = vrot.slane %v2752, 1
        %v2858 = vsel %vm632, %v2857, %v2856
        %v2859 = vrot.slane %v2735, 7
        %v2860 = vsel %vm620, %v2859, %v2732
        %v2861 = vrot.slane %v2738, 6
        %v2862 = vsel %vm622, %v2861, %v2860
        %v2863 = vrot.slane %v2741, 5
        %v2864 = vsel %vm624, %v2863, %v2862
        %v2865 = vrot.slane %v2744, 4
        %v2866 = vsel %vm626, %v2865, %v2864
        %v2867 = vrot.slane %v2747, 3
        %v2868 = vsel %vm628, %v2867, %v2866
        %v2869 = vrot.slane %v2750, 2
        %v2870 = vsel %vm630, %v2869, %v2868
        %v2871 = vrot.slane %v2753, 1
        %v2872 = vsel %vm632, %v2871, %v2870
        %v2873 = vrot.slane %v2736, 7
        %v2874 = vsel %vm620, %v2873, %v2733
        %v2875 = vrot.slane %v2739, 6
        %v2876 = vsel %vm622, %v2875, %v2874
        %v2877 = vrot.slane %v2742, 5
        %v2878 = vsel %vm624, %v2877, %v2876
        %v2879 = vrot.slane %v2745, 4
        %v2880 = vsel %vm626, %v2879, %v2878
        %v2881 = vrot.slane %v2748, 3
        %v2882 = vsel %vm628, %v2881, %v2880
        %v2883 = vrot.slane %v2751, 2
        %v2884 = vsel %vm630, %v2883, %v2882
        %v2885 = vrot.slane %v2754, 1
        %v2886 = vsel %vm632, %v2885, %v2884
        %v2893 = vadd.f32 %v2816, %v2830
        %v2894 = vadd.f32 %v2893, %v2844
        %2895 = vadd.xlane.f32.xlu0 %v2894
        %v2896 = vpop.xlane.xlu0 %2895
        %v2897 = vadd.f32 %v2858, %v2872
        %v2898 = vadd.f32 %v2897, %v2886
        %2899 = vadd.xlane.f32.xlu0 %v2898
        %v2900 = vpop.xlane.xlu0 %2899
        %v2901 = vmax.f32 %v2896, 1e-12
        %v2902 = vmax.f32 %v2900, 1e-12
        %v2903 = vrsqrt.pop %v2901
        %v2904 = vrsqrt.pop %v2902
        %v2907 = vrot.slane %v2903, 1
        %v2908 = vrot.slane %v2903, 2
        %v2909 = vrot.slane %v2903, 3
        %v2910 = vrot.slane %v2903, 4
        %v2911 = vrot.slane %v2903, 5
        %v2912 = vrot.slane %v2903, 6
        %v2913 = vrot.slane %v2903, 7
        %v2914 = vrot.slane %v2904, 1
        %v2915 = vrot.slane %v2904, 2
        %v2916 = vrot.slane %v2904, 3
        %v2917 = vrot.slane %v2904, 4
        %v2918 = vrot.slane %v2904, 5
        %v2919 = vrot.slane %v2904, 6
        %v2920 = vrot.slane %v2904, 7
        %v2937 = vmul.f32 %v2659, %v2903
        %v2938 = vmul.f32 %v2660, %v2903
        %v2939 = vmul.f32 %v2661, %v2903
        %v2940 = vmul.f32 %v2662, %v2907
        %v2941 = vmul.f32 %v2663, %v2907
        %v2942 = vmul.f32 %v2664, %v2907
        %v2943 = vmul.f32 %v2665, %v2908
        %v2944 = vmul.f32 %v2666, %v2908
        %v2945 = vmul.f32 %v2667, %v2908
        %v2946 = vmul.f32 %v2668, %v2909
        %v2947 = vmul.f32 %v2669, %v2909
        %v2948 = vmul.f32 %v2670, %v2909
        %v2949 = vmul.f32 %v2671, %v2910
        %v2950 = vmul.f32 %v2672, %v2910
        %v2951 = vmul.f32 %v2673, %v2910
        %v2952 = vmul.f32 %v2674, %v2911
        %v2953 = vmul.f32 %v2675, %v2911
        %v2954 = vmul.f32 %v2676, %v2911
        %v2955 = vmul.f32 %v2677, %v2912
        %v2956 = vmul.f32 %v2678, %v2912
        %v2957 = vmul.f32 %v2679, %v2912
        %v2958 = vmul.f32 %v2680, %v2913
        %v2959 = vmul.f32 %v2681, %v2913
        %v2960 = vmul.f32 %v2682, %v2913
        %v2961 = vmul.f32 %v2683, %v2904
        %v2962 = vmul.f32 %v2684, %v2904
        %v2963 = vmul.f32 %v2685, %v2904
        %v2964 = vmul.f32 %v2686, %v2914
        %v2965 = vmul.f32 %v2687, %v2914
        %v2966 = vmul.f32 %v2688, %v2914
        %v2967 = vmul.f32 %v2689, %v2915
        %v2968 = vmul.f32 %v2690, %v2915
        %v2969 = vmul.f32 %v2691, %v2915
        %v2970 = vmul.f32 %v2692, %v2916
        %v2971 = vmul.f32 %v2693, %v2916
        %v2972 = vmul.f32 %v2694, %v2916
        %v2973 = vmul.f32 %v2695, %v2917
        %v2974 = vmul.f32 %v2696, %v2917
        %v2975 = vmul.f32 %v2697, %v2917
        %v2976 = vmul.f32 %v2698, %v2918
        %v2977 = vmul.f32 %v2699, %v2918
        %v2978 = vmul.f32 %v2700, %v2918
        %v2979 = vmul.f32 %v2701, %v2919
        %v2980 = vmul.f32 %v2702, %v2919
        %v2981 = vmul.f32 %v2703, %v2919
        %v2982 = vmul.f32 %v2704, %v2920
        %v2983 = vmul.f32 %v2705, %v2920
        %v2984 = vmul.f32 %v2706, %v2920
        %v2985 = vld [vmem:[#allocation6] sm:$0xff]
        %v2986 = vld [vmem:[#allocation6 + $0x8] sm:$0xff]
        %v2987 = vld [vmem:[#allocation6 + $0x10] sm:$0xff]
        %v2988 = vld [vmem:[#allocation6 + $0x18] sm:$0xff]
        %v2989 = vld [vmem:[#allocation6 + $0x20] sm:$0xff]
        %v2990 = vld [vmem:[#allocation6 + $0x28] sm:$0xff]
        %v2991 = vld [vmem:[#allocation6 + $0x30] sm:$0xff]
        %v2992 = vld [vmem:[#allocation6 + $0x38] sm:$0xff]
        %v2993 = vld [vmem:[#allocation6 + $0x40] sm:$0xff]
        %v2994 = vld [vmem:[#allocation6 + $0x48] sm:$0xff]
        %v2995 = vld [vmem:[#allocation6 + $0x50] sm:$0xff]
        %v2996 = vld [vmem:[#allocation6 + $0x58] sm:$0xff]
        %v2997 = vld [vmem:[#allocation6 + $0x60] sm:$0xff]
        %v2998 = vld [vmem:[#allocation6 + $0x68] sm:$0xff]
        %v2999 = vld [vmem:[#allocation6 + $0x70] sm:$0xff]
        %v3000 = vld [vmem:[#allocation6 + $0x78] sm:$0xff]
        %v3001 = vld [vmem:[#allocation6 + $0x80] sm:$0xff]
        %v3002 = vld [vmem:[#allocation6 + $0x88] sm:$0xff]
        %v3003 = vld [vmem:[#allocation6 + $0x90] sm:$0xff]
        %v3004 = vld [vmem:[#allocation6 + $0x98] sm:$0xff]
        %v3005 = vld [vmem:[#allocation6 + $0xa0] sm:$0xff]
        %v3006 = vld [vmem:[#allocation6 + $0xa8] sm:$0xff]
        %v3007 = vld [vmem:[#allocation6 + $0xb0] sm:$0xff]
        %v3008 = vld [vmem:[#allocation6 + $0xb8] sm:$0xff]
        %v3009 = vld [vmem:[#allocation6 + $0xc0] sm:$0xff]
        %v3010 = vld [vmem:[#allocation6 + $0xc8] sm:$0xff]
        %v3011 = vld [vmem:[#allocation6 + $0xd0] sm:$0xff]
        %v3012 = vld [vmem:[#allocation6 + $0xd8] sm:$0xff]
        %v3013 = vld [vmem:[#allocation6 + $0xe0] sm:$0xff]
        %v3014 = vld [vmem:[#allocation6 + $0xe8] sm:$0xff]
        %v3015 = vld [vmem:[#allocation6 + $0xf0] sm:$0xff]
        %v3016 = vld [vmem:[#allocation6 + $0xf8] sm:$0xff]
        %v3017 = vld [vmem:[#allocation6 + $0x100] sm:$0xff]
        %v3018 = vld [vmem:[#allocation6 + $0x108] sm:$0xff]
        %v3019 = vld [vmem:[#allocation6 + $0x110] sm:$0xff]
        %v3020 = vld [vmem:[#allocation6 + $0x118] sm:$0xff]
        %v3021 = vld [vmem:[#allocation6 + $0x120] sm:$0xff]
        %v3022 = vld [vmem:[#allocation6 + $0x128] sm:$0xff]
        %v3023 = vld [vmem:[#allocation6 + $0x130] sm:$0xff]
        %v3024 = vld [vmem:[#allocation6 + $0x138] sm:$0xff]
        %v3025 = vld [vmem:[#allocation6 + $0x140] sm:$0xff]
        %v3026 = vld [vmem:[#allocation6 + $0x148] sm:$0xff]
        %v3027 = vld [vmem:[#allocation6 + $0x150] sm:$0xff]
        %v3028 = vld [vmem:[#allocation6 + $0x158] sm:$0xff]
        %v3029 = vld [vmem:[#allocation6 + $0x160] sm:$0xff]
        %v3030 = vld [vmem:[#allocation6 + $0x168] sm:$0xff]
        %v3031 = vld [vmem:[#allocation6 + $0x170] sm:$0xff]
        %v3032 = vld [vmem:[#allocation6 + $0x178] sm:$0xff]
        %v3033 = vmul.f32 %v2985, %v2985
        %v3034 = vmul.f32 %v2986, %v2986
        %v3035 = vmul.f32 %v2987, %v2987
        %v3036 = vmul.f32 %v2988, %v2988
        %v3037 = vmul.f32 %v2989, %v2989
        %v3038 = vmul.f32 %v2990, %v2990
        %v3039 = vmul.f32 %v2991, %v2991
        %v3040 = vmul.f32 %v2992, %v2992
        %v3041 = vmul.f32 %v2993, %v2993
        %v3042 = vmul.f32 %v2994, %v2994
        %v3043 = vmul.f32 %v2995, %v2995
        %v3044 = vmul.f32 %v2996, %v2996
        %v3045 = vmul.f32 %v2997, %v2997
        %v3046 = vmul.f32 %v2998, %v2998
        %v3047 = vmul.f32 %v2999, %v2999
        %v3048 = vmul.f32 %v3000, %v3000
        %v3049 = vmul.f32 %v3001, %v3001
        %v3050 = vmul.f32 %v3002, %v3002
        %v3051 = vmul.f32 %v3003, %v3003
        %v3052 = vmul.f32 %v3004, %v3004
        %v3053 = vmul.f32 %v3005, %v3005
        %v3054 = vmul.f32 %v3006, %v3006
        %v3055 = vmul.f32 %v3007, %v3007
        %v3056 = vmul.f32 %v3008, %v3008
        %v3057 = vmul.f32 %v3009, %v3009
        %v3058 = vmul.f32 %v3010, %v3010
        %v3059 = vmul.f32 %v3011, %v3011
        %v3060 = vmul.f32 %v3012, %v3012
        %v3061 = vmul.f32 %v3013, %v3013
        %v3062 = vmul.f32 %v3014, %v3014
        %v3063 = vmul.f32 %v3015, %v3015
        %v3064 = vmul.f32 %v3016, %v3016
        %v3065 = vmul.f32 %v3017, %v3017
        %v3066 = vmul.f32 %v3018, %v3018
        %v3067 = vmul.f32 %v3019, %v3019
        %v3068 = vmul.f32 %v3020, %v3020
        %v3069 = vmul.f32 %v3021, %v3021
        %v3070 = vmul.f32 %v3022, %v3022
        %v3071 = vmul.f32 %v3023, %v3023
        %v3072 = vmul.f32 %v3024, %v3024
        %v3073 = vmul.f32 %v3025, %v3025
        %v3074 = vmul.f32 %v3026, %v3026
        %v3075 = vmul.f32 %v3027, %v3027
        %v3076 = vmul.f32 %v3028, %v3028
        %v3077 = vmul.f32 %v3029, %v3029
        %v3078 = vmul.f32 %v3030, %v3030
        %v3079 = vmul.f32 %v3031, %v3031
        %v3080 = vmul.f32 %v3032, %v3032
        %v3081 = vadd.f32 %v3033, %v3034
        %v3082 = vadd.f32 %v3081, %v3035
        %3083 = vadd.xlane.f32.xlu0 %v3082
        %v3084 = vpop.xlane.xlu0 %3083
        %v3085 = vadd.f32 %v3036, %v3037
        %v3086 = vadd.f32 %v3085, %v3038
        %3087 = vadd.xlane.f32.xlu0 %v3086
        %v3088 = vpop.xlane.xlu0 %3087
        %v3089 = vadd.f32 %v3039, %v3040
        %v3090 = vadd.f32 %v3089, %v3041
        %3091 = vadd.xlane.f32.xlu0 %v3090
        %v3092 = vpop.xlane.xlu0 %3091
        %v3093 = vadd.f32 %v3042, %v3043
        %v3094 = vadd.f32 %v3093, %v3044
        %3095 = vadd.xlane.f32.xlu0 %v3094
        %v3096 = vpop.xlane.xlu0 %3095
        %v3097 = vadd.f32 %v3045, %v3046
        %v3098 = vadd.f32 %v3097, %v3047
        %3099 = vadd.xlane.f32.xlu0 %v3098
        %v3100 = vpop.xlane.xlu0 %3099
        %v3101 = vadd.f32 %v3048, %v3049
        %v3102 = vadd.f32 %v3101, %v3050
        %3103 = vadd.xlane.f32.xlu0 %v3102
        %v3104 = vpop.xlane.xlu0 %3103
        %v3105 = vadd.f32 %v3051, %v3052
        %v3106 = vadd.f32 %v3105, %v3053
        %3107 = vadd.xlane.f32.xlu0 %v3106
        %v3108 = vpop.xlane.xlu0 %3107
        %v3109 = vadd.f32 %v3054, %v3055
        %v3110 = vadd.f32 %v3109, %v3056
        %3111 = vadd.xlane.f32.xlu0 %v3110
        %v3112 = vpop.xlane.xlu0 %3111
        %v3113 = vadd.f32 %v3057, %v3058
        %v3114 = vadd.f32 %v3113, %v3059
        %3115 = vadd.xlane.f32.xlu0 %v3114
        %v3116 = vpop.xlane.xlu0 %3115
        %v3117 = vadd.f32 %v3060, %v3061
        %v3118 = vadd.f32 %v3117, %v3062
        %3119 = vadd.xlane.f32.xlu0 %v3118
        %v3120 = vpop.xlane.xlu0 %3119
        %v3121 = vadd.f32 %v3063, %v3064
        %v3122 = vadd.f32 %v3121, %v3065
        %3123 = vadd.xlane.f32.xlu0 %v3122
        %v3124 = vpop.xlane.xlu0 %3123
        %v3125 = vadd.f32 %v3066, %v3067
        %v3126 = vadd.f32 %v3125, %v3068
        %3127 = vadd.xlane.f32.xlu0 %v3126
        %v3128 = vpop.xlane.xlu0 %3127
        %v3129 = vadd.f32 %v3069, %v3070
        %v3130 = vadd.f32 %v3129, %v3071
        %3131 = vadd.xlane.f32.xlu0 %v3130
        %v3132 = vpop.xlane.xlu0 %3131
        %v3133 = vadd.f32 %v3072, %v3073
        %v3134 = vadd.f32 %v3133, %v3074
        %3135 = vadd.xlane.f32.xlu0 %v3134
        %v3136 = vpop.xlane.xlu0 %3135
        %v3137 = vadd.f32 %v3075, %v3076
        %v3138 = vadd.f32 %v3137, %v3077
        %3139 = vadd.xlane.f32.xlu0 %v3138
        %v3140 = vpop.xlane.xlu0 %3139
        %v3141 = vadd.f32 %v3078, %v3079
        %v3142 = vadd.f32 %v3141, %v3080
        %3143 = vadd.xlane.f32.xlu0 %v3142
        %v3144 = vpop.xlane.xlu0 %3143
        %v3145 = vmax.f32 %v3084, 1e-12
        %v3146 = vmax.f32 %v3088, 1e-12
        %v3147 = vmax.f32 %v3092, 1e-12
        %v3148 = vmax.f32 %v3096, 1e-12
        %v3149 = vmax.f32 %v3100, 1e-12
        %v3150 = vmax.f32 %v3104, 1e-12
        %v3151 = vmax.f32 %v3108, 1e-12
        %v3152 = vmax.f32 %v3112, 1e-12
        %v3153 = vmax.f32 %v3116, 1e-12
        %v3154 = vmax.f32 %v3120, 1e-12
        %v3155 = vmax.f32 %v3124, 1e-12
        %v3156 = vmax.f32 %v3128, 1e-12
        %v3157 = vmax.f32 %v3132, 1e-12
        %v3158 = vmax.f32 %v3136, 1e-12
        %v3159 = vmax.f32 %v3140, 1e-12
        %v3160 = vmax.f32 %v3144, 1e-12
        %v3161 = vrsqrt.pop %v3145
        %v3162 = vrsqrt.pop %v3146
        %v3163 = vrsqrt.pop %v3147
        %v3164 = vrsqrt.pop %v3148
        %v3165 = vrsqrt.pop %v3149
        %v3166 = vrsqrt.pop %v3150
        %v3167 = vrsqrt.pop %v3151
        %v3168 = vrsqrt.pop %v3152
        %v3169 = vrsqrt.pop %v3153
        %v3170 = vrsqrt.pop %v3154
        %v3171 = vrsqrt.pop %v3155
        %v3172 = vrsqrt.pop %v3156
        %v3173 = vrsqrt.pop %v3157
        %v3174 = vrsqrt.pop %v3158
        %v3175 = vrsqrt.pop %v3159
        %v3176 = vrsqrt.pop %v3160
        %v3177 = vmul.f32 %v2985, %v3161
        %v3178 = vmul.f32 %v2986, %v3161
        %v3179 = vmul.f32 %v2987, %v3161
        %v3180 = vmul.f32 %v2988, %v3162
        %v3181 = vmul.f32 %v2989, %v3162
        %v3182 = vmul.f32 %v2990, %v3162
        %v3183 = vmul.f32 %v2991, %v3163
        %v3184 = vmul.f32 %v2992, %v3163
        %v3185 = vmul.f32 %v2993, %v3163
        %v3186 = vmul.f32 %v2994, %v3164
        %v3187 = vmul.f32 %v2995, %v3164
        %v3188 = vmul.f32 %v2996, %v3164
        %v3189 = vmul.f32 %v2997, %v3165
        %v3190 = vmul.f32 %v2998, %v3165
        %v3191 = vmul.f32 %v2999, %v3165
        %v3192 = vmul.f32 %v3000, %v3166
        %v3193 = vmul.f32 %v3001, %v3166
        %v3194 = vmul.f32 %v3002, %v3166
        %v3195 = vmul.f32 %v3003, %v3167
        %v3196 = vmul.f32 %v3004, %v3167
        %v3197 = vmul.f32 %v3005, %v3167
        %v3198 = vmul.f32 %v3006, %v3168
        %v3199 = vmul.f32 %v3007, %v3168
        %v3200 = vmul.f32 %v3008, %v3168
        %v3201 = vmul.f32 %v3009, %v3169
        %v3202 = vmul.f32 %v3010, %v3169
        %v3203 = vmul.f32 %v3011, %v3169
        %v3204 = vmul.f32 %v3012, %v3170
        %v3205 = vmul.f32 %v3013, %v3170
        %v3206 = vmul.f32 %v3014, %v3170
        %v3207 = vmul.f32 %v3015, %v3171
        %v3208 = vmul.f32 %v3016, %v3171
        %v3209 = vmul.f32 %v3017, %v3171
        %v3210 = vmul.f32 %v3018, %v3172
        %v3211 = vmul.f32 %v3019, %v3172
        %v3212 = vmul.f32 %v3020, %v3172
        %v3213 = vmul.f32 %v3021, %v3173
        %v3214 = vmul.f32 %v3022, %v3173
        %v3215 = vmul.f32 %v3023, %v3173
        %v3216 = vmul.f32 %v3024, %v3174
        %v3217 = vmul.f32 %v3025, %v3174
        %v3218 = vmul.f32 %v3026, %v3174
        %v3219 = vmul.f32 %v3027, %v3175
        %v3220 = vmul.f32 %v3028, %v3175
        %v3221 = vmul.f32 %v3029, %v3175
        %v3222 = vmul.f32 %v3030, %v3176
        %v3223 = vmul.f32 %v3031, %v3176
        %v3224 = vmul.f32 %v3032, %v3176
        %v3225 = vpack.c.bf16 %v2937, %v2937
        %v3226 = vpack.c.bf16 %v2938, %v2938
        %v3227 = vpack.c.bf16 %v2939, %v2939
        %v3228 = vpack.c.bf16 %v2940, %v2940
        %v3229 = vpack.c.bf16 %v2941, %v2941
        %v3230 = vpack.c.bf16 %v2942, %v2942
        %v3231 = vpack.c.bf16 %v2943, %v2943
        %v3232 = vpack.c.bf16 %v2944, %v2944
        %v3233 = vpack.c.bf16 %v2945, %v2945
        %v3234 = vpack.c.bf16 %v2946, %v2946
        %v3235 = vpack.c.bf16 %v2947, %v2947
        %v3236 = vpack.c.bf16 %v2948, %v2948
        %v3237 = vpack.c.bf16 %v2949, %v2949
        %v3238 = vpack.c.bf16 %v2950, %v2950
        %v3239 = vpack.c.bf16 %v2951, %v2951
        %v3240 = vpack.c.bf16 %v2952, %v2952
        %v3241 = vpack.c.bf16 %v2953, %v2953
        %v3242 = vpack.c.bf16 %v2954, %v2954
        %v3243 = vpack.c.bf16 %v2955, %v2955
        %v3244 = vpack.c.bf16 %v2956, %v2956
        %v3245 = vpack.c.bf16 %v2957, %v2957
        %v3246 = vpack.c.bf16 %v2958, %v2958
        %v3247 = vpack.c.bf16 %v2959, %v2959
        %v3248 = vpack.c.bf16 %v2960, %v2960
        %v3249 = vpack.c.bf16 %v2961, %v2961
        %v3250 = vpack.c.bf16 %v2962, %v2962
        %v3251 = vpack.c.bf16 %v2963, %v2963
        %v3252 = vpack.c.bf16 %v2964, %v2964
        %v3253 = vpack.c.bf16 %v2965, %v2965
        %v3254 = vpack.c.bf16 %v2966, %v2966
        %v3255 = vpack.c.bf16 %v2967, %v2967
        %v3256 = vpack.c.bf16 %v2968, %v2968
        %v3257 = vpack.c.bf16 %v2969, %v2969
        %v3258 = vpack.c.bf16 %v2970, %v2970
        %v3259 = vpack.c.bf16 %v2971, %v2971
        %v3260 = vpack.c.bf16 %v2972, %v2972
        %v3261 = vpack.c.bf16 %v2973, %v2973
        %v3262 = vpack.c.bf16 %v2974, %v2974
        %v3263 = vpack.c.bf16 %v2975, %v2975
        %v3264 = vpack.c.bf16 %v2976, %v2976
        %v3265 = vpack.c.bf16 %v2977, %v2977
        %v3266 = vpack.c.bf16 %v2978, %v2978
        %v3267 = vpack.c.bf16 %v2979, %v2979
        %v3268 = vpack.c.bf16 %v2980, %v2980
        %v3269 = vpack.c.bf16 %v2981, %v2981
        %v3270 = vpack.c.bf16 %v2982, %v2982
        %v3271 = vpack.c.bf16 %v2983, %v2983
        %v3272 = vpack.c.bf16 %v2984, %v2984
        %v3273 = vpack.c.bf16 %v3180, %v3177
        %v3274 = vpack.c.bf16 %v3181, %v3178
        %v3275 = vpack.c.bf16 %v3182, %v3179
        %v3276 = vpack.c.bf16 %v3186, %v3183
        %v3277 = vpack.c.bf16 %v3187, %v3184
        %v3278 = vpack.c.bf16 %v3188, %v3185
        %v3279 = vpack.c.bf16 %v3192, %v3189
        %v3280 = vpack.c.bf16 %v3193, %v3190
        %v3281 = vpack.c.bf16 %v3194, %v3191
        %v3282 = vpack.c.bf16 %v3198, %v3195
        %v3283 = vpack.c.bf16 %v3199, %v3196
        %v3284 = vpack.c.bf16 %v3200, %v3197
        %v3285 = vpack.c.bf16 %v3204, %v3201
        %v3286 = vpack.c.bf16 %v3205, %v3202
        %v3287 = vpack.c.bf16 %v3206, %v3203
        %v3288 = vpack.c.bf16 %v3210, %v3207
        %v3289 = vpack.c.bf16 %v3211, %v3208
        %v3290 = vpack.c.bf16 %v3212, %v3209
        %v3291 = vpack.c.bf16 %v3216, %v3213
        %v3292 = vpack.c.bf16 %v3217, %v3214
        %v3293 = vpack.c.bf16 %v3218, %v3215
        %v3294 = vpack.c.bf16 %v3222, %v3219
        %v3295 = vpack.c.bf16 %v3223, %v3220
        %v3296 = vpack.c.bf16 %v3224, %v3221
        %v3345 = vunpack.c.l.b16 %v3225
        %v3346 = vunpack.c.l.b16 %v3226
        %v3347 = vunpack.c.l.b16 %v3227
        %v3348 = vunpack.c.l.b16 %v3228
        %v3349 = vunpack.c.l.b16 %v3229
        %v3350 = vunpack.c.l.b16 %v3230
        %v3351 = vunpack.c.l.b16 %v3231
        %v3352 = vunpack.c.l.b16 %v3232
        %v3353 = vunpack.c.l.b16 %v3233
        %v3354 = vunpack.c.l.b16 %v3234
        %v3355 = vunpack.c.l.b16 %v3235
        %v3356 = vunpack.c.l.b16 %v3236
        %v3357 = vunpack.c.l.b16 %v3237
        %v3358 = vunpack.c.l.b16 %v3238
        %v3359 = vunpack.c.l.b16 %v3239
        %v3360 = vunpack.c.l.b16 %v3240
        %v3361 = vunpack.c.l.b16 %v3241
        %v3362 = vunpack.c.l.b16 %v3242
        %v3363 = vunpack.c.l.b16 %v3243
        %v3364 = vunpack.c.l.b16 %v3244
        %v3365 = vunpack.c.l.b16 %v3245
        %v3366 = vunpack.c.l.b16 %v3246
        %v3367 = vunpack.c.l.b16 %v3247
        %v3368 = vunpack.c.l.b16 %v3248
        %v3369 = vunpack.c.l.b16 %v3249
        %v3370 = vunpack.c.l.b16 %v3250
        %v3371 = vunpack.c.l.b16 %v3251
        %v3372 = vunpack.c.l.b16 %v3252
        %v3373 = vunpack.c.l.b16 %v3253
        %v3374 = vunpack.c.l.b16 %v3254
        %v3375 = vunpack.c.l.b16 %v3255
        %v3376 = vunpack.c.l.b16 %v3256
        %v3377 = vunpack.c.l.b16 %v3257
        %v3378 = vunpack.c.l.b16 %v3258
        %v3379 = vunpack.c.l.b16 %v3259
        %v3380 = vunpack.c.l.b16 %v3260
        %v3381 = vunpack.c.l.b16 %v3261
        %v3382 = vunpack.c.l.b16 %v3262
        %v3383 = vunpack.c.l.b16 %v3263
        %v3384 = vunpack.c.l.b16 %v3264
        %v3385 = vunpack.c.l.b16 %v3265
        %v3386 = vunpack.c.l.b16 %v3266
        %v3387 = vunpack.c.l.b16 %v3267
        %v3388 = vunpack.c.l.b16 %v3268
        %v3389 = vunpack.c.l.b16 %v3269
        %v3390 = vunpack.c.l.b16 %v3270
        %v3391 = vunpack.c.l.b16 %v3271
        %v3392 = vunpack.c.l.b16 %v3272
        %v3393 = vrot.slane %v3348, 7
        %v3394 = vsel %vm620, %v3393, %v3345
        %v3395 = vrot.slane %v3351, 6
        %v3396 = vsel %vm622, %v3395, %v3394
        %v3397 = vrot.slane %v3354, 5
        %v3398 = vsel %vm624, %v3397, %v3396
        %v3399 = vrot.slane %v3357, 4
        %v3400 = vsel %vm626, %v3399, %v3398
        %v3401 = vrot.slane %v3360, 3
        %v3402 = vsel %vm628, %v3401, %v3400
        %v3403 = vrot.slane %v3363, 2
        %v3404 = vsel %vm630, %v3403, %v3402
        %v3405 = vrot.slane %v3366, 1
        %v3406 = vsel %vm632, %v3405, %v3404
        %v3407 = vrot.slane %v3349, 7
        %v3408 = vsel %vm620, %v3407, %v3346
        %v3409 = vrot.slane %v3352, 6
        %v3410 = vsel %vm622, %v3409, %v3408
        %v3411 = vrot.slane %v3355, 5
        %v3412 = vsel %vm624, %v3411, %v3410
        %v3413 = vrot.slane %v3358, 4
        %v3414 = vsel %vm626, %v3413, %v3412
        %v3415 = vrot.slane %v3361, 3
        %v3416 = vsel %vm628, %v3415, %v3414
        %v3417 = vrot.slane %v3364, 2
        %v3418 = vsel %vm630, %v3417, %v3416
        %v3419 = vrot.slane %v3367, 1
        %v3420 = vsel %vm632, %v3419, %v3418
        %v3421 = vrot.slane %v3350, 7
        %v3422 = vsel %vm620, %v3421, %v3347
        %v3423 = vrot.slane %v3353, 6
        %v3424 = vsel %vm622, %v3423, %v3422
        %v3425 = vrot.slane %v3356, 5
        %v3426 = vsel %vm624, %v3425, %v3424
        %v3427 = vrot.slane %v3359, 4
        %v3428 = vsel %vm626, %v3427, %v3426
        %v3429 = vrot.slane %v3362, 3
        %v3430 = vsel %vm628, %v3429, %v3428
        %v3431 = vrot.slane %v3365, 2
        %v3432 = vsel %vm630, %v3431, %v3430
        %v3433 = vrot.slane %v3368, 1
        %v3434 = vsel %vm632, %v3433, %v3432
        %v3435 = vrot.slane %v3372, 7
        %v3436 = vsel %vm620, %v3435, %v3369
        %v3437 = vrot.slane %v3375, 6
        %v3438 = vsel %vm622, %v3437, %v3436
        %v3439 = vrot.slane %v3378, 5
        %v3440 = vsel %vm624, %v3439, %v3438
        %v3441 = vrot.slane %v3381, 4
        %v3442 = vsel %vm626, %v3441, %v3440
        %v3443 = vrot.slane %v3384, 3
        %v3444 = vsel %vm628, %v3443, %v3442
        %v3445 = vrot.slane %v3387, 2
        %v3446 = vsel %vm630, %v3445, %v3444
        %v3447 = vrot.slane %v3390, 1
        %v3448 = vsel %vm632, %v3447, %v3446
        %v3449 = vrot.slane %v3373, 7
        %v3450 = vsel %vm620, %v3449, %v3370
        %v3451 = vrot.slane %v3376, 6
        %v3452 = vsel %vm622, %v3451, %v3450
        %v3453 = vrot.slane %v3379, 5
        %v3454 = vsel %vm624, %v3453, %v3452
        %v3455 = vrot.slane %v3382, 4
        %v3456 = vsel %vm626, %v3455, %v3454
        %v3457 = vrot.slane %v3385, 3
        %v3458 = vsel %vm628, %v3457, %v3456
        %v3459 = vrot.slane %v3388, 2
        %v3460 = vsel %vm630, %v3459, %v3458
        %v3461 = vrot.slane %v3391, 1
        %v3462 = vsel %vm632, %v3461, %v3460
        %v3463 = vrot.slane %v3374, 7
        %v3464 = vsel %vm620, %v3463, %v3371
        %v3465 = vrot.slane %v3377, 6
        %v3466 = vsel %vm622, %v3465, %v3464
        %v3467 = vrot.slane %v3380, 5
        %v3468 = vsel %vm624, %v3467, %v3466
        %v3469 = vrot.slane %v3383, 4
        %v3470 = vsel %vm626, %v3469, %v3468
        %v3471 = vrot.slane %v3386, 3
        %v3472 = vsel %vm628, %v3471, %v3470
        %v3473 = vrot.slane %v3389, 2
        %v3474 = vsel %vm630, %v3473, %v3472
        %v3475 = vrot.slane %v3392, 1
        %v3476 = vsel %vm632, %v3475, %v3474
        %v3477 = vpack.c.b16 %v3448, %v3406
        %v3478 = vpack.c.b16 %v3462, %v3420
        %v3479 = vpack.c.b16 %v3476, %v3434
        %3483 = vmatprep.subr.bf16.mxu0 %v3295
        %3484 = vmatpush1.bf16.xpose.msra.mxu0 %v3294
        %3485 = vmatprep.subr.bf16.mxu0 %v3292
        %3486 = vmatpush1.bf16.xpose.msra.mxu0 %v3291
        %3487 = vmatprep.subr.bf16.mxu0 %v3289
        %3488 = vmatpush1.bf16.xpose.msra.mxu0 %v3288
        %3489 = vmatprep.subr.bf16.mxu0 %v3286
        %3490 = vmatpush1.bf16.xpose.msra.mxu0 %v3285
        %3491 = vmatprep.subr.bf16.mxu0 %v3283
        %3492 = vmatpush1.bf16.xpose.msra.mxu0 %v3282
        %3493 = vmatprep.subr.bf16.mxu0 %v3280
        %3494 = vmatpush1.bf16.xpose.msra.mxu0 %v3279
        %3495 = vmatprep.subr.bf16.mxu0 %v3277
        %3496 = vmatpush1.bf16.xpose.msra.mxu0 %v3276
        %3497 = vmatprep.subr.bf16.mxu0 %v3274
        %3498 = vmatpush1.bf16.xpose.msra.mxu0 %v3273
        %3499 = vmatprep.subr.bf16.mxu0 0
        %3500 = vmatpush2.bf16.xpose.msra.mxu0 0
        %3501 = vmatprep.subr.bf16.mxu0 0
        %3502 = vmatpush2.bf16.xpose.msra.mxu0 0
        %3503 = vmatprep.subr.bf16.mxu0 0
        %3504 = vmatpush2.bf16.xpose.msra.mxu0 0
        %3505 = vmatprep.subr.bf16.mxu0 0
        %3506 = vmatpush2.bf16.xpose.msra.mxu0 0
        %3507 = vmatprep.subr.bf16.mxu0 0
        %3508 = vmatpush2.bf16.xpose.msra.mxu0 0
        %3509 = vmatprep.subr.bf16.mxu0 0
        %3510 = vmatpush2.bf16.xpose.msra.mxu0 0
        %3511 = vmatprep.subr.bf16.mxu0 0
        %3512 = vmatpush2.bf16.xpose.msra.mxu0 0
        %3513 = vmatprep.subr.bf16.mxu0 0
        %3514 = vmatpush2.bf16.xpose.msra.mxu0 0
        %3515 = vmatprep.mubr.bf16.mxu0 %v3478
        %3516 = vmatmul.mubr.bf16.gmra.mxu0 %v3477
        %v3517 = vpop.f32.mrf.mxu0
        %v3518 = vadd.f32 0.0, %v3517
        %v3519 = vpop.f32.mrf.mxu0
        %v3520 = vpop.f32.mrf.mxu0
        %v3521 = vadd.f32 0.0, %v3520
        %v3522 = vpop.f32.mrf.mxu0
        %3523 = vdwg.mxu0
        %3524 = vmatprep.subr.bf16.mxu0 0
        %3525 = vmatpush1.bf16.xpose.msra.mxu0 %v3296
        %3526 = vmatprep.subr.bf16.mxu0 0
        %3527 = vmatpush1.bf16.xpose.msra.mxu0 %v3293
        %3528 = vmatprep.subr.bf16.mxu0 0
        %3529 = vmatpush1.bf16.xpose.msra.mxu0 %v3290
        %3530 = vmatprep.subr.bf16.mxu0 0
        %3531 = vmatpush1.bf16.xpose.msra.mxu0 %v3287
        %3532 = vmatprep.subr.bf16.mxu0 0
        %3533 = vmatpush1.bf16.xpose.msra.mxu0 %v3284
        %3534 = vmatprep.subr.bf16.mxu0 0
        %3535 = vmatpush1.bf16.xpose.msra.mxu0 %v3281
        %3536 = vmatprep.subr.bf16.mxu0 0
        %3537 = vmatpush1.bf16.xpose.msra.mxu0 %v3278
        %3538 = vmatprep.subr.bf16.mxu0 0
        %3539 = vmatpush1.bf16.xpose.msra.mxu0 %v3275
        %3540 = vmatprep.subr.bf16.mxu0 0
        %3541 = vmatpush2.bf16.xpose.msra.mxu0 0
        %3542 = vmatprep.subr.bf16.mxu0 0
        %3543 = vmatpush2.bf16.xpose.msra.mxu0 0
        %3544 = vmatprep.subr.bf16.mxu0 0
        %3545 = vmatpush2.bf16.xpose.msra.mxu0 0
        %3546 = vmatprep.subr.bf16.mxu0 0
        %3547 = vmatpush2.bf16.xpose.msra.mxu0 0
        %3548 = vmatprep.subr.bf16.mxu0 0
        %3549 = vmatpush2.bf16.xpose.msra.mxu0 0
        %3550 = vmatprep.subr.bf16.mxu0 0
        %3551 = vmatpush2.bf16.xpose.msra.mxu0 0
        %3552 = vmatprep.subr.bf16.mxu0 0
        %3553 = vmatpush2.bf16.xpose.msra.mxu0 0
        %3554 = vmatprep.subr.bf16.mxu0 0
        %3555 = vmatpush2.bf16.xpose.msra.mxu0 0
        %3556 = vmatprep.mubr.bf16.mxu0 0
        %3557 = vmatmul.mubr.bf16.gmra.mxu0 %v3479
        %v3558 = vpop.f32.mrf.mxu0
        %v3559 = vadd.f32 %v3518, %v3558
        %v3560 = vpop.f32.mrf.mxu0
        %v3561 = vpop.f32.mrf.mxu0
        %v3562 = vadd.f32 %v3521, %v3561
        %v3563 = vpop.f32.mrf.mxu0
        %3564 = vdwg.mxu0
        %v3613 = vrot.slane %v2940, 7
        %v3614 = vsel %vm620, %v3613, %v2937
        %v3615 = vrot.slane %v2943, 6
        %v3616 = vsel %vm622, %v3615, %v3614
        %v3617 = vrot.slane %v2946, 5
        %v3618 = vsel %vm624, %v3617, %v3616
        %v3619 = vrot.slane %v2949, 4
        %v3620 = vsel %vm626, %v3619, %v3618
        %v3621 = vrot.slane %v2952, 3
        %v3622 = vsel %vm628, %v3621, %v3620
        %v3623 = vrot.slane %v2955, 2
        %v3624 = vsel %vm630, %v3623, %v3622
        %v3625 = vrot.slane %v2958, 1
        %v3626 = vsel %vm632, %v3625, %v3624
        %v3627 = vrot.slane %v2941, 7
        %v3628 = vsel %vm620, %v3627, %v2938
        %v3629 = vrot.slane %v2944, 6
        %v3630 = vsel %vm622, %v3629, %v3628
        %v3631 = vrot.slane %v2947, 5
        %v3632 = vsel %vm624, %v3631, %v3630
        %v3633 = vrot.slane %v2950, 4
        %v3634 = vsel %vm626, %v3633, %v3632
        %v3635 = vrot.slane %v2953, 3
        %v3636 = vsel %vm628, %v3635, %v3634
        %v3637 = vrot.slane %v2956, 2
        %v3638 = vsel %vm630, %v3637, %v3636
        %v3639 = vrot.slane %v2959, 1
        %v3640 = vsel %vm632, %v3639, %v3638
        %v3641 = vrot.slane %v2942, 7
        %v3642 = vsel %vm620, %v3641, %v2939
        %v3643 = vrot.slane %v2945, 6
        %v3644 = vsel %vm622, %v3643, %v3642
        %v3645 = vrot.slane %v2948, 5
        %v3646 = vsel %vm624, %v3645, %v3644
        %v3647 = vrot.slane %v2951, 4
        %v3648 = vsel %vm626, %v3647, %v3646
        %v3649 = vrot.slane %v2954, 3
        %v3650 = vsel %vm628, %v3649, %v3648
        %v3651 = vrot.slane %v2957, 2
        %v3652 = vsel %vm630, %v3651, %v3650
        %v3653 = vrot.slane %v2960, 1
        %v3654 = vsel %vm632, %v3653, %v3652
        %v3655 = vrot.slane %v2964, 7
        %v3656 = vsel %vm620, %v3655, %v2961
        %v3657 = vrot.slane %v2967, 6
        %v3658 = vsel %vm622, %v3657, %v3656
        %v3659 = vrot.slane %v2970, 5
        %v3660 = vsel %vm624, %v3659, %v3658
        %v3661 = vrot.slane %v2973, 4
        %v3662 = vsel %vm626, %v3661, %v3660
        %v3663 = vrot.slane %v2976, 3
        %v3664 = vsel %vm628, %v3663, %v3662
        %v3665 = vrot.slane %v2979, 2
        %v3666 = vsel %vm630, %v3665, %v3664
        %v3667 = vrot.slane %v2982, 1
        %v3668 = vsel %vm632, %v3667, %v3666
        %v3669 = vrot.slane %v2965, 7
        %v3670 = vsel %vm620, %v3669, %v2962
        %v3671 = vrot.slane %v2968, 6
        %v3672 = vsel %vm622, %v3671, %v3670
        %v3673 = vrot.slane %v2971, 5
        %v3674 = vsel %vm624, %v3673, %v3672
        %v3675 = vrot.slane %v2974, 4
        %v3676 = vsel %vm626, %v3675, %v3674
        %v3677 = vrot.slane %v2977, 3
        %v3678 = vsel %vm628, %v3677, %v3676
        %v3679 = vrot.slane %v2980, 2
        %v3680 = vsel %vm630, %v3679, %v3678
        %v3681 = vrot.slane %v2983, 1
        %v3682 = vsel %vm632, %v3681, %v3680
        %v3683 = vrot.slane %v2966, 7
        %v3684 = vsel %vm620, %v3683, %v2963
        %v3685 = vrot.slane %v2969, 6
        %v3686 = vsel %vm622, %v3685, %v3684
        %v3687 = vrot.slane %v2972, 5
        %v3688 = vsel %vm624, %v3687, %v3686
        %v3689 = vrot.slane %v2975, 4
        %v3690 = vsel %vm626, %v3689, %v3688
        %v3691 = vrot.slane %v2978, 3
        %v3692 = vsel %vm628, %v3691, %v3690
        %v3693 = vrot.slane %v2981, 2
        %v3694 = vsel %vm630, %v3693, %v3692
        %v3695 = vrot.slane %v2984, 1
        %v3696 = vsel %vm632, %v3695, %v3694
        %3703 = vst [vmem:[%s331] sm:$0xff] %v3626
        %3704 = vst [vmem:[%s331 + $0x8] sm:$0xff] %v3640
        %3705 = vst [vmem:[%s331 + $0x10] sm:$0xff] %v3654
        %3706 = vst [vmem:[%s331 + $0x18] sm:$0xff] %v3668
        %3707 = vst [vmem:[%s331 + $0x20] sm:$0xff] %v3682
        %3708 = vst [vmem:[%s331 + $0x28] sm:$0xff] %v3696
        %3709 = vst [vmem:[%s338] sm:$0xff] %v3559
        %3710 = vst [vmem:[%s338 + $0x8] sm:$0xff] %v3562
        %s3711 = sand.u32 %s169, 1
        %s3712 = scalar_lea.sflag [#allocation5], %s3711
        %s3713 = sand.u32 %s169, 1
        %s3714 = smul.addr %s3713, 48
        %s3715 = scalar_lea.vmem [#allocation9], %s3714
        %s3716 = sand.u32 %s195, 1
        %s3717 = scalar_lea.sflag [#allocation11], %s3716
        %s3718 = sand.u32 %s195, 1
        %s3719 = smul.addr %s3718, 16
        %s3720 = scalar_lea.vmem [#allocation10], %s3719
        // Predicated region
        $region57: #{tpu_custom_call.1} parent=43 // pred_check
          %p3721 = pneg %p179
        $region58: #{tpu_custom_call.1} parent=43 // pred_check_branch
          %3723 = sbr.rel (%p3721) target = $region60
        $region59: #{tpu_custom_call.1} parent=43 // pred_region
          %s3724 = smul.u32 2, %s30
          %s3726 = ssub.s32 768, 768
          %3727 = vsyncadd %s3712, %s3726
          %s3728 = smul.addr %s3724, 3
          %s3729 = smul.addr %s3728, 128
          %s3730 = scalar_lea.hbm %s6, %s3729
          %s3731 = sshll.u32 %s3715, 4
          %s3732 = int_to_ptr.vmem [resolvable:$true] %s3731
          %3737 = dma.vmem_to_hbm [thread:$0]  %s3732, 768, %s3730, %s3712, 384, 384, 24
        $region60: #{tpu_custom_call.1} parent=43 // pred_fallthru
          _
        // Predicated region
        $region61: #{tpu_custom_call.1} parent=43 // pred_check
          %p3738 = pneg %p205
        $region62: #{tpu_custom_call.1} parent=43 // pred_check_branch
          %3740 = sbr.rel (%p3738) target = $region64
        $region63: #{tpu_custom_call.1} parent=43 // pred_region
          %s3741 = smul.u32 2, %s30
          %s3743 = ssub.s32 256, 256
          %3744 = vsyncadd %s3717, %s3743
          %s3745 = smul.addr %s3741, 128
          %s3746 = scalar_lea.hbm %s7, %s3745
          %s3747 = sshll.u32 %s3720, 4
          %s3748 = int_to_ptr.vmem [resolvable:$true] %s3747
          %3753 = dma.vmem_to_hbm [thread:$0]  %s3748, 256, %s3746, %s3717, 128, 128, 8
        $region64: #{tpu_custom_call.1} parent=43 // pred_fallthru
          _
      $region44: #{tpu_custom_call.1} parent=5 // pred_fallthru
        _
      %p3754 = scmp.le.s32.totalorder 2, %s25
      // Predicated region
      $region65: #{tpu_custom_call.1} parent=5 // pred_check
        %p3755 = pneg %p3754
      $region66: #{tpu_custom_call.1} parent=5 // pred_check_branch
        %3757 = sbr.rel (%p3755) target = $region68
      $region67: #{tpu_custom_call.1} parent=5 // pred_region
        %s3758 = ssub.s32 %s25, 2
        // Predicated region
        $region69: #{tpu_custom_call.1} parent=67 // pred_check
          %p3759 = pneg %p185
        $region70: #{tpu_custom_call.1} parent=67 // pred_check_branch
          %3761 = sbr.rel (%p3759) target = $region72
        $region71: #{tpu_custom_call.1} parent=67 // pred_region
          %s3762 = sand.u32 %s170, 1
          %s3763 = scalar_lea.sflag [#allocation5], %s3762
          %s3764 = sand.u32 %s170, 1
          %s3765 = smul.addr %s3764, 48
          %s3766 = scalar_lea.vmem [#allocation9], %s3765
          %3767 = dma.done %s3763, 768
        $region72: #{tpu_custom_call.1} parent=67 // pred_fallthru
          _
        // Predicated region
        $region73: #{tpu_custom_call.1} parent=67 // pred_check
          %p3768 = pneg %p211
        $region74: #{tpu_custom_call.1} parent=67 // pred_check_branch
          %3770 = sbr.rel (%p3768) target = $region76
        $region75: #{tpu_custom_call.1} parent=67 // pred_region
          %s3771 = sand.u32 %s196, 1
          %s3772 = scalar_lea.sflag [#allocation11], %s3771
          %s3773 = sand.u32 %s196, 1
          %s3774 = smul.addr %s3773, 16
          %s3775 = scalar_lea.vmem [#allocation10], %s3774
          %3776 = dma.done %s3772, 256
        $region76: #{tpu_custom_call.1} parent=67 // pred_fallthru
          _
      $region68: #{tpu_custom_call.1} parent=5 // pred_fallthru
        _
    $region6: #{tpu_custom_call.1} parent=1 // loop_footer
      %s29 = sadd.s32 1, %s25
    $region7: #{tpu_custom_call.1} parent=1 // loop_footer_branch
      %24 = sbr.rel target = $region3
    $region8: #{tpu_custom_call.1} parent=1 // loop_exit
      _
    %3777 = vsyncpa [#allocation4], 1
    %s3778 = scalar_lea.sflag [#allocation4], 1
    %3779 = vsyncpa %s3778, 1
    %3780 = vsyncpa [#allocation7], 1
    %3781 = vsyncpa [#allocation5], 1
    %s3782 = scalar_lea.sflag [#allocation5], 1
    %3783 = vsyncpa %s3782, 1
    %3784 = vsyncpa [#allocation11], 1
    %s3785 = scalar_lea.sflag [#allocation11], 1
    %3786 = vsyncpa %s3785, 1

</llo_original>
